<compile_context>
chip_gen: v7x
topology: tpu7x:2x2x1
jax: 0.10.0
libtpu: 0.0.40
codegen_flags: <defaults>
</compile_context>

<pallas_src>
import math
from functools import partial

import jax
import jax.numpy as jnp
from jax.experimental import pallas as pl
from jax.experimental.pallas import tpu as pltpu

NEG_INF = -9e15  # same finite masking value as the PyTorch reference


def _tile(dim, target):
    """Largest-practical tile: `target` if it divides dim, else the full dim."""
    return target if (dim % target == 0) else dim


def _erf_approx(x):
    # Abramowitz & Stegun 7.1.26 (|err| <= 1.5e-7): built from mul/add/exp only,
    # guaranteed to lower on Mosaic (avoids relying on a lax.erf lowering rule).
    a1, a2, a3, a4, a5 = (0.254829592, -0.284496736, 1.421413741,
                          -1.453152027, 1.061405429)
    p = 0.3275911
    ax = jnp.abs(x)
    t = 1.0 / (1.0 + p * ax)
    poly = ((((a5 * t + a4) * t + a3) * t + a2) * t + a1) * t
    y = 1.0 - poly * jnp.exp(-ax * ax)
    return jnp.where(x >= 0.0, y, -y)


# ----------------------------- QKV projection -----------------------------

def _matmul_bias_kernel(x_ref, w_ref, b_ref, o_ref, acc_ref, *, nk):
    k = pl.program_id(2)

    @pl.when(k == 0)
    def _():
        acc_ref[...] = jnp.zeros_like(acc_ref)

    acc_ref[...] += jnp.dot(x_ref[...], w_ref[...],
                            preferred_element_type=jnp.float32)

    @pl.when(k == nk - 1)
    def _():
        o_ref[...] = (acc_ref[...] + b_ref[...]).astype(o_ref.dtype)


def matmul_bias(x, w, b, *, tm=256, tn=256, tk=256):
    M, K = x.shape
    N = w.shape[1]
    tm, tn, tk = _tile(M, tm), _tile(N, tn), _tile(K, tk)
    grid = (M // tm, N // tn, K // tk)
    return pl.pallas_call(
        partial(_matmul_bias_kernel, nk=grid[2]),
        out_shape=jax.ShapeDtypeStruct((M, N), x.dtype),
        grid=grid,
        in_specs=[pl.BlockSpec((tm, tk), lambda i, j, k: (i, k)),
                  pl.BlockSpec((tk, tn), lambda i, j, k: (k, j)),
                  pl.BlockSpec((1, tn), lambda i, j, k: (0, j))],
        out_specs=pl.BlockSpec((tm, tn), lambda i, j, k: (i, j)),
        scratch_shapes=[pltpu.VMEM((tm, tn), jnp.float32)],
        compiler_params=pltpu.CompilerParams(
            dimension_semantics=("parallel", "parallel", "arbitrary")),
    )(x, w, b)


# ------------------- o-projection + residual + LayerNorm -------------------

def _matmul_res_ln_kernel(res_ref, a_ref, w_ref, b_ref, g_ref, be_ref,
                          o_ref, acc_ref, *, eps, nk):
    k = pl.program_id(1)

    @pl.when(k == 0)
    def _():
        acc_ref[...] = jnp.zeros_like(acc_ref)

    acc_ref[...] += jnp.dot(a_ref[...], w_ref[...],
                            preferred_element_type=jnp.float32)

    @pl.when(k == nk - 1)
    def _():
        z = acc_ref[...] + b_ref[...] + res_ref[...].astype(jnp.float32)
        mean = jnp.mean(z, axis=-1, keepdims=True)
        c = z - mean
        var = jnp.mean(c * c, axis=-1, keepdims=True)
        o_ref[...] = (c * jax.lax.rsqrt(var + eps) * g_ref[...]
                      + be_ref[...]).astype(o_ref.dtype)


def matmul_residual_layernorm(res, a, w, b, gamma, beta, *, eps=1e-5,
                              tm=256, tk=256):
    # out = LayerNorm(res + a @ w + b); LN statistics need full rows, so the
    # output feature dim stays un-tiled while M and K are tiled.
    M, K = a.shape
    N = w.shape[1]
    tm, tk = _tile(M, tm), _tile(K, tk)
    grid = (M // tm, K // tk)
    return pl.pallas_call(
        partial(_matmul_res_ln_kernel, eps=eps, nk=grid[1]),
        out_shape=jax.ShapeDtypeStruct((M, N), a.dtype),
        grid=grid,
        in_specs=[pl.BlockSpec((tm, N), lambda i, k: (i, 0)),   # residual
                  pl.BlockSpec((tm, tk), lambda i, k: (i, k)),  # activations
                  pl.BlockSpec((tk, N), lambda i, k: (k, 0)),   # weight
                  pl.BlockSpec((1, N), lambda i, k: (0, 0)),    # bias
                  pl.BlockSpec((1, N), lambda i, k: (0, 0)),    # gamma
                  pl.BlockSpec((1, N), lambda i, k: (0, 0))],   # beta
        out_specs=pl.BlockSpec((tm, N), lambda i, k: (i, 0)),
        scratch_shapes=[pltpu.VMEM((tm, N), jnp.float32)],
        compiler_params=pltpu.CompilerParams(
            dimension_semantics=("parallel", "arbitrary")),
    )(res, a, w, b, gamma, beta)


# ------------------ FFN (fc1->GELU->fc2) + residual + LN ------------------

def _ffn_res_ln_kernel(x_ref, w1_ref, b1_ref, w2_ref, b2_ref, g_ref, be_ref,
                       o_ref, acc_ref, *, eps, nh):
    j = pl.program_id(1)

    @pl.when(j == 0)
    def _():
        acc_ref[...] = jnp.zeros_like(acc_ref)

    h = jnp.dot(x_ref[...], w1_ref[...],
                preferred_element_type=jnp.float32) + b1_ref[...]
    h = 0.5 * h * (1.0 + _erf_approx(h * (1.0 / math.sqrt(2.0))))  # exact GELU
    acc_ref[...] += jnp.dot(h, w2_ref[...], preferred_element_type=jnp.float32)

    @pl.when(j == nh - 1)
    def _():
        z = acc_ref[...] + b2_ref[...] + x_ref[...].astype(jnp.float32)
        mean = jnp.mean(z, axis=-1, keepdims=True)
        c = z - mean
        var = jnp.mean(c * c, axis=-1, keepdims=True)
        o_ref[...] = (c * jax.lax.rsqrt(var + eps) * g_ref[...]
                      + be_ref[...]).astype(o_ref.dtype)


def ffn_residual_layernorm(x, w1, b1, w2, b2, gamma, beta, *, eps=1e-5,
                           tm=256, th=512):
    # out = LayerNorm(x + fc2(GELU(fc1(x)))); hidden dim is the tiled reduction
    # axis (hidden activations never touch HBM).
    M, E = x.shape
    HID = w1.shape[1]
    tm, th = _tile(M, tm), _tile(HID, th)
    grid = (M // tm, HID // th)
    return pl.pallas_call(
        partial(_ffn_res_ln_kernel, eps=eps, nh=grid[1]),
        out_shape=jax.ShapeDtypeStruct((M, E), x.dtype),
        grid=grid,
        in_specs=[pl.BlockSpec((tm, E), lambda i, j: (i, 0)),   # x (also residual)
                  pl.BlockSpec((E, th), lambda i, j: (0, j)),   # w1
                  pl.BlockSpec((1, th), lambda i, j: (0, j)),   # b1
                  pl.BlockSpec((th, E), lambda i, j: (j, 0)),   # w2
                  pl.BlockSpec((1, E), lambda i, j: (0, 0)),    # b2
                  pl.BlockSpec((1, E), lambda i, j: (0, 0)),    # gamma
                  pl.BlockSpec((1, E), lambda i, j: (0, 0))],   # beta
        out_specs=pl.BlockSpec((tm, E), lambda i, j: (i, 0)),
        scratch_shapes=[pltpu.VMEM((tm, E), jnp.float32)],
        compiler_params=pltpu.CompilerParams(
            dimension_semantics=("parallel", "arbitrary")),
    )(x, w1, b1, w2, b2, gamma, beta)


# ---------------- banded sliding-window attention (online softmax) ----------------

def _band_attn_kernel(q_ref, k_ref, v_ref, mask_ref, o_ref,
                      m_sc, l_sc, acc_sc, *,
                      T, w, pre, nq, num_heads, head_dim, scale):
    qi = pl.program_id(1)
    ki = pl.program_id(2)

    @pl.when(ki == 0)
    def _():
        m_sc[...] = jnp.full_like(m_sc, -jnp.inf)
        l_sc[...] = jnp.zeros_like(l_sc)
        acc_sc[...] = jnp.zeros_like(acc_sc)

    kv_block = qi - pre + ki                       # unclamped kv tile index
    tile_in_range = jnp.logical_and(kv_block >= 0, kv_block < nq)

    @pl.when(tile_in_range)
    def _():
        qt = q_ref[0].astype(jnp.float32) * scale  # fold 1/sqrt(hd) into q
        kt = k_ref[0].astype(jnp.float32)
        vt = v_ref[0].astype(jnp.float32)

        # Band / padding mask, computed once per tile and shared by all heads.
        q_pos = qi * T + jax.lax.broadcasted_iota(jnp.int32, (T, T), 0)
        k_pos = kv_block * T + jax.lax.broadcasted_iota(jnp.int32, (T, T), 1)
        band = jnp.abs(q_pos - k_pos) <= w
        key_valid = mask_ref[0] > 0.5              # [1, T] -> broadcast to rows
        valid = jnp.logical_and(band, key_valid)

        for h in range(num_heads):                 # heads are column slabs
            lo = h * head_dim
            hi = lo + head_dim
            s = jax.lax.dot_general(qt[:, lo:hi], kt[:, lo:hi],
                                    (((1,), (1,)), ((), ())),
                                    preferred_element_type=jnp.float32)  # [T,T]
            s = jnp.where(valid, s, NEG_INF)
            m_prev = m_sc[h]
            m_new = jnp.maximum(m_prev, jnp.max(s, axis=-1, keepdims=True))
            alpha = jnp.exp(m_prev - m_new)
            e = jnp.exp(s - m_new)
            l_sc[h] = alpha * l_sc[h] + jnp.sum(e, axis=-1, keepdims=True)
            p = jnp.where(valid, e, 0.0)           # exactly-0 weight on masked keys
            acc_sc[h] = alpha * acc_sc[h] + jnp.dot(
                p, vt[:, lo:hi], preferred_element_type=jnp.float32)
            m_sc[h] = m_new

    @pl.when(ki == pl.num_programs(2) - 1)
    def _():
        outs = [acc_sc[h] * pl.reciprocal(l_sc[h], approx=True)
                for h in range(num_heads)]
        # One lane-dense [T, E] store covering all heads.
        o_ref[0] = jnp.concatenate(outs, axis=-1).astype(o_ref.dtype)


def sliding_window_attention_pallas(q, k, v, mask, *, num_heads, window_size):
    # q, k, v: [B, S, E] with head h occupying columns [h*hd, (h+1)*hd)
    # mask:    [B, 1, S]  (1.0 = valid key, 0.0 = padding)
    B, S, E = q.shape
    hd = E // num_heads
    w_half = window_size // 2
    scale = 1.0 / math.sqrt(hd)

    T = 128 if S % 128 == 0 else S          # query/kv tile along the sequence
    nq = S // T
    pre = -(-w_half // T)                   # ceil(w/T) kv tiles on each side
    nkv = 2 * pre + 1                       # kv tiles visited per query tile

    def q_idx(b, qi, ki):
        return (b, qi, 0)

    def kv_idx(b, qi, ki):
        return (b, jnp.clip(qi - pre + ki, 0, nq - 1), 0)

    def m_idx(b, qi, ki):
        return (b, 0, jnp.clip(qi - pre + ki, 0, nq - 1))

    return pl.pallas_call(
        partial(_band_attn_kernel, T=T, w=w_half, pre=pre, nq=nq,
                num_heads=num_heads, head_dim=hd, scale=scale),
        out_shape=jax.ShapeDtypeStruct((B, S, E), q.dtype),
        grid=(B, nq, nkv),
        in_specs=[pl.BlockSpec((1, T, E), q_idx),
                  pl.BlockSpec((1, T, E), kv_idx),
                  pl.BlockSpec((1, T, E), kv_idx),
                  pl.BlockSpec((1, 1, T), m_idx)],
        out_specs=pl.BlockSpec((1, T, E), q_idx),
        scratch_shapes=[pltpu.VMEM((num_heads, T, 1), jnp.float32),   # m
                        pltpu.VMEM((num_heads, T, 1), jnp.float32),   # l
                        pltpu.VMEM((num_heads, T, hd), jnp.float32)], # acc
        compiler_params=pltpu.CompilerParams(
            dimension_semantics=("parallel", "parallel", "arbitrary")),
    )(q, k, v, mask)


# ----------------------------- parameter setup -----------------------------

def init_params(key, embed_dim, hidden_dim, num_heads):
    def xavier(k, fan_in, fan_out):
        lim = math.sqrt(6.0 / (fan_in + fan_out))
        return jax.random.uniform(k, (fan_in, fan_out), jnp.float32, -lim, lim)

    hd = embed_dim // num_heads
    ks = jax.random.split(key, 4)

    # PyTorch qkv_proj layout interleaves (q_h, k_h, v_h) per head; permute the
    # weight columns ONCE so the projection output is [Q | K | V] with each head
    # as a contiguous hd-wide column slab (what the attention kernel expects).
    head_starts = (jnp.arange(num_heads) * 3 * hd)[:, None]
    offs = jnp.arange(hd)[None, :]
    q_cols = (head_starts + offs).reshape(-1)
    perm = jnp.concatenate([q_cols, q_cols + hd, q_cols + 2 * hd])

    w_qkv_pt = xavier(ks[0], embed_dim, 3 * embed_dim)
    b_qkv_pt = jnp.zeros((1, 3 * embed_dim), jnp.float32)

    return {
        "w_qkv": w_qkv_pt[:, perm],
        "b_qkv": b_qkv_pt[:, perm],
        "w_o": xavier(ks[1], embed_dim, embed_dim),
        "b_o": jnp.zeros((1, embed_dim), jnp.float32),
        "w1": xavier(ks[2], embed_dim, hidden_dim),
        "b1": jnp.zeros((1, hidden_dim), jnp.float32),
        "w2": xavier(ks[3], hidden_dim, embed_dim),
        "b2": jnp.zeros((1, embed_dim), jnp.float32),
        "g1": jnp.ones((1, embed_dim), jnp.float32),
        "be1": jnp.zeros((1, embed_dim), jnp.float32),
        "g2": jnp.ones((1, embed_dim), jnp.float32),
        "be2": jnp.zeros((1, embed_dim), jnp.float32),
    }


# ----------------------------- forward pass -----------------------------

def encoder_layer_forward(params, x, padding_mask, *, num_heads, window_size):
    B, S, E = x.shape
    assert E % num_heads == 0
    assert window_size % 2 == 0
    # The reference pads the sequence to a multiple of the window and crops the
    # result; because padded keys get exactly-zero weight and padded query rows
    # are cropped, banded attention on the unpadded sequence is equivalent, so
    # no explicit padding is required here.

    xf = x.reshape(B * S, E)

    # QKV projection (tiled matmul); output columns are [Q | K | V], head-major.
    qkv = matmul_bias(xf, params["w_qkv"], params["b_qkv"]).reshape(B, S, 3 * E)
    q, k, v = qkv[..., :E], qkv[..., E:2 * E], qkv[..., 2 * E:]
    mask = padding_mask.astype(jnp.float32).reshape(B, 1, S)

    # Banded sliding-window attention, lane-dense [B, S, E] output.
    attn = sliding_window_attention_pallas(q, k, v, mask,
                                           num_heads=num_heads,
                                           window_size=window_size)

    # TODO(synk): nn.Dropout(p=0.1) omitted (eval-mode identity).
    # o-projection + residual + LayerNorm fused in one kernel.
    x1 = matmul_residual_layernorm(xf, attn.reshape(B * S, E),
                                   params["w_o"], params["b_o"],
                                   params["g1"], params["be1"])
    # fc1 -> GELU -> fc2 + residual + LayerNorm fused in one kernel.
    x2 = ffn_residual_layernorm(x1, params["w1"], params["b1"],
                                params["w2"], params["b2"],
                                params["g2"], params["be2"])
    return x2.reshape(B, S, E)


# ----------------------------- pure-JAX reference -----------------------------

def _reference_forward(params, x, padding_mask, *, num_heads, window_size):
    B, S, E = x.shape
    hd = E // num_heads
    w = window_size // 2
    xf = x.reshape(B * S, E).astype(jnp.float32)
    qkv = (xf @ params["w_qkv"] + params["b_qkv"]).reshape(B, S, 3 * E)
    q = qkv[..., :E].reshape(B, S, num_heads, hd).transpose(0, 2, 1, 3)
    k = qkv[..., E:2 * E].reshape(B, S, num_heads, hd).transpose(0, 2, 1, 3)
    v = qkv[..., 2 * E:].reshape(B, S, num_heads, hd).transpose(0, 2, 1, 3)
    s = jnp.einsum("bhqd,bhkd->bhqk", q, k) / math.sqrt(hd)
    i = jnp.arange(S)[:, None]
    j = jnp.arange(S)[None, :]
    band = jnp.abs(i - j) <= w
    keyv = padding_mask.astype(bool)[:, None, None, :]
    valid = jnp.logical_and(band[None, None, :, :], keyv)
    s = jnp.where(valid, s, NEG_INF)
    p = jax.nn.softmax(s, axis=-1)
    p = jnp.where(valid, p, 0.0)
    attn = jnp.einsum("bhqk,bhkd->bhqd", p, v)
    attn = attn.transpose(0, 2, 1, 3).reshape(B * S, E)

    def ln(z, g, b):
        mu = jnp.mean(z, -1, keepdims=True)
        c = z - mu
        var = jnp.mean(c * c, -1, keepdims=True)
        return c * jax.lax.rsqrt(var + 1e-5) * g + b

    x1 = ln(xf + attn @ params["w_o"] + params["b_o"], params["g1"], params["be1"])
    h = x1 @ params["w1"] + params["b1"]
    h = 0.5 * h * (1.0 + jax.scipy.special.erf(h * (1.0 / math.sqrt(2.0))))
    x2 = ln(x1 + h @ params["w2"] + params["b2"], params["g2"], params["be2"])
    return x2.reshape(B, S, E)


# ----------------------------- demo / smoke test -----------------------------

if __name__ == "__main__":
    B, S, E, H, HID, WIN = 2, 8, 32, 4, 64, 4   # WIN even
    key = jax.random.PRNGKey(0)
    kx, kp = jax.random.split(key)

    x = jax.random.normal(kx, (B, S, E), dtype=jnp.float32)
    # padding mask: 1 = valid token, 0 = padding (second batch has 2 padded tokens)
    padding_mask = jnp.array([[1, 1, 1, 1, 1, 1, 1, 1],
                              [1, 1, 1, 1, 1, 1, 0, 0]], dtype=jnp.float32)

    params = init_params(kp, E, HID, H)

    fwd = jax.jit(partial(encoder_layer_forward, num_heads=H, window_size=WIN))
    out = jax.block_until_ready(fwd(params, x, padding_mask))

    assert out.shape == (B, S, E)
    assert bool(jnp.all(jnp.isfinite(out)))

    ref = _reference_forward(params, x, padding_mask, num_heads=H, window_size=WIN)
    max_err = float(jnp.max(jnp.abs(out - ref)))
    assert max_err < 1e-2, f"max abs error vs reference: {max_err}"

    print("KERNEL_OK")
</pallas_src>

<mosaic_0001>
module attributes {stable_mosaic.version = 11 : i64} {
  func.func @_matmul_res_ln_kernel(%arg0: i32, %arg1: i32, %arg2: memref<16x32xf32, #tpu.memory_space<vmem>>, %arg3: memref<16x32xf32, #tpu.memory_space<vmem>>, %arg4: memref<32x32xf32, #tpu.memory_space<vmem>>, %arg5: memref<1x32xf32, #tpu.memory_space<vmem>>, %arg6: memref<1x32xf32, #tpu.memory_space<vmem>>, %arg7: memref<1x32xf32, #tpu.memory_space<vmem>>, %arg8: memref<16x32xf32, #tpu.memory_space<vmem>>, %arg9: memref<16x32xf32, #tpu.memory_space<vmem>>) attributes {dimension_semantics = [#tpu.dimension_semantics<parallel>, #tpu.dimension_semantics<arbitrary>], iteration_bounds = array<i64: 1, 1>, scalar_prefetch = 0 : i64, scratch_operands = 1 : i64, tpu.core_type = #tpu.core_type<tc>, window_params = [{transform_indices = @transform_0, window_bounds = array<i64: 16, 32>}, {transform_indices = @transform_1, window_bounds = array<i64: 16, 32>}, {transform_indices = @transform_2, window_bounds = array<i64: 32, 32>}, {pipeline_mode = #tpu.pipeline_mode<synchronous>, transform_indices = @transform_3, window_bounds = array<i64: 1, 32>}, {pipeline_mode = #tpu.pipeline_mode<synchronous>, transform_indices = @transform_4, window_bounds = array<i64: 1, 32>}, {pipeline_mode = #tpu.pipeline_mode<synchronous>, transform_indices = @transform_5, window_bounds = array<i64: 1, 32>}, {transform_indices = @transform_6, window_bounds = array<i64: 16, 32>}]} {
    %c0_i32 = arith.constant 0 : i32
    %0 = arith.cmpi eq, %arg1, %c0_i32 : i32
    %1 = arith.extui %0 : i1 to i32
    %c0_i32_0 = arith.constant 0 : i32
    %2 = arith.cmpi ne, %1, %c0_i32_0 : i32
    scf.if %2 {
      %cst_10 = arith.constant 0.000000e+00 : f32
      %12 = vector.broadcast %cst_10 : f32 to vector<16x32xf32>
      %c0_11 = arith.constant 0 : index
      %c0_12 = arith.constant 0 : index
      %13 = vector.load %arg9[%c0_11, %c0_12] : memref<16x32xf32, #tpu.memory_space<vmem>>, vector<16x32xf32>
      tpu.vector_store %arg9[%c0_11, %c0_12], %12 {strides = array<i32>} : memref<16x32xf32, #tpu.memory_space<vmem>>, vector<16x32xf32>,
    } else {
    }
    %c0 = arith.constant 0 : index
    %c0_1 = arith.constant 0 : index
    %3 = vector.load %arg9[%c0, %c0_1] : memref<16x32xf32, #tpu.memory_space<vmem>>, vector<16x32xf32>
    %c0_2 = arith.constant 0 : index
    %c0_3 = arith.constant 0 : index
    %4 = vector.load %arg3[%c0_2, %c0_3] : memref<16x32xf32, #tpu.memory_space<vmem>>, vector<16x32xf32>
    %c0_4 = arith.constant 0 : index
    %c0_5 = arith.constant 0 : index
    %5 = vector.load %arg4[%c0_4, %c0_5] : memref<32x32xf32, #tpu.memory_space<vmem>>, vector<32x32xf32>
    %cst = arith.constant dense<0.000000e+00> : vector<16x32xf32>
    %6 = tpu.matmul %4, %5, %cst {dimension_numbers = #tpu.dot_dimension_numbers<[1], [0], [0], [1], [0, 0, 1, 1], [], []>} : vector<16x32xf32>, vector<32x32xf32>, vector<16x32xf32> -> vector<16x32xf32>
    %7 = arith.addf %3, %6 : vector<16x32xf32>
    %c0_6 = arith.constant 0 : index
    %c0_7 = arith.constant 0 : index
    %8 = vector.load %arg9[%c0_6, %c0_7] : memref<16x32xf32, #tpu.memory_space<vmem>>, vector<16x32xf32>
    tpu.vector_store %arg9[%c0_6, %c0_7], %7 {strides = array<i32>} : memref<16x32xf32, #tpu.memory_space<vmem>>, vector<16x32xf32>,
    %c0_i32_8 = arith.constant 0 : i32
    %9 = arith.cmpi eq, %arg1, %c0_i32_8 : i32
    %10 = arith.extui %9 : i1 to i32
    %c0_i32_9 = arith.constant 0 : i32
    %11 = arith.cmpi ne, %10, %c0_i32_9 : i32
    scf.if %11 {
      %c0_10 = arith.constant 0 : index
      %c0_11 = arith.constant 0 : index
      %12 = vector.load %arg9[%c0_10, %c0_11] : memref<16x32xf32, #tpu.memory_space<vmem>>, vector<16x32xf32>
      %c0_12 = arith.constant 0 : index
      %c0_13 = arith.constant 0 : index
      %13 = vector.load %arg5[%c0_12, %c0_13] : memref<1x32xf32, #tpu.memory_space<vmem>>, vector<1x32xf32>
      %14 = vector.broadcast %13 : vector<1x32xf32> to vector<16x32xf32>
      %15 = arith.addf %12, %14 : vector<16x32xf32>
      %c0_14 = arith.constant 0 : index
      %c0_15 = arith.constant 0 : index
      %16 = vector.load %arg2[%c0_14, %c0_15] : memref<16x32xf32, #tpu.memory_space<vmem>>, vector<16x32xf32>
      %17 = arith.addf %15, %16 : vector<16x32xf32>
      %cst_16 = arith.constant dense<0.000000e+00> : vector<16xf32>
      %18 = vector.multi_reduction <add>, %17, %cst_16 [1] : vector<16x32xf32> to vector<16xf32>
      %19 = vector.shape_cast %18 : vector<16xf32> to vector<16x1xf32>
      %cst_17 = arith.constant 3.200000e+01 : f32
      %20 = vector.broadcast %cst_17 : f32 to vector<16x1xf32>
      %21 = arith.divf %19, %20 : vector<16x1xf32>
      %22 = vector.broadcast %21 : vector<16x1xf32> to vector<16x32xf32>
      %23 = arith.subf %17, %22 : vector<16x32xf32>
      %24 = arith.mulf %23, %23 : vector<16x32xf32>
      %cst_18 = arith.constant dense<0.000000e+00> : vector<16xf32>
      %25 = vector.multi_reduction <add>, %24, %cst_18 [1] : vector<16x32xf32> to vector<16xf32>
      %26 = vector.shape_cast %25 : vector<16xf32> to vector<16x1xf32>
      %cst_19 = arith.constant 3.200000e+01 : f32
      %27 = vector.broadcast %cst_19 : f32 to vector<16x1xf32>
      %28 = arith.divf %26, %27 : vector<16x1xf32>
      %cst_20 = arith.constant 9.99999974E-6 : f32
      %29 = vector.broadcast %cst_20 : f32 to vector<16x1xf32>
      %30 = arith.addf %28, %29 : vector<16x1xf32>
      %31 = math.rsqrt %30 : vector<16x1xf32>
      %32 = vector.broadcast %31 : vector<16x1xf32> to vector<16x32xf32>
      %33 = arith.mulf %23, %32 : vector<16x32xf32>
      %c0_21 = arith.constant 0 : index
      %c0_22 = arith.constant 0 : index
      %34 = vector.load %arg6[%c0_21, %c0_22] : memref<1x32xf32, #tpu.memory_space<vmem>>, vector<1x32xf32>
      %35 = vector.broadcast %34 : vector<1x32xf32> to vector<16x32xf32>
      %36 = arith.mulf %33, %35 : vector<16x32xf32>
      %c0_23 = arith.constant 0 : index
      %c0_24 = arith.constant 0 : index
      %37 = vector.load %arg7[%c0_23, %c0_24] : memref<1x32xf32, #tpu.memory_space<vmem>>, vector<1x32xf32>
      %38 = vector.broadcast %37 : vector<1x32xf32> to vector<16x32xf32>
      %39 = arith.addf %36, %38 : vector<16x32xf32>
      %c0_25 = arith.constant 0 : index
      %c0_26 = arith.constant 0 : index
      %40 = vector.load %arg8[%c0_25, %c0_26] : memref<16x32xf32, #tpu.memory_space<vmem>>, vector<16x32xf32>
      tpu.vector_store %arg8[%c0_25, %c0_26], %39 {strides = array<i32>} : memref<16x32xf32, #tpu.memory_space<vmem>>, vector<16x32xf32>,
    } else {
    }
    return
  }
  func.func @transform_0(%arg0: i32, %arg1: i32) -> (i32, i32) {
    %c0_i32 = arith.constant 0 : i32
    %c0_i32_0 = arith.constant 0 : i32
    return %arg0, %c0_i32 : i32, i32
  }
  func.func @transform_1(%arg0: i32, %arg1: i32) -> (i32, i32) {
    %c0_i32 = arith.constant 0 : i32
    return %arg0, %arg1 : i32, i32
  }
  func.func @transform_2(%arg0: i32, %arg1: i32) -> (i32, i32) {
    %c0_i32 = arith.constant 0 : i32
    %c0_i32_0 = arith.constant 0 : i32
    return %arg1, %c0_i32 : i32, i32
  }
  func.func @transform_3(%arg0: i32, %arg1: i32) -> (i32, i32) {
    %c0_i32 = arith.constant 0 : i32
    %c0_i32_0 = arith.constant 0 : i32
    %c0_i32_1 = arith.constant 0 : i32
    return %c0_i32, %c0_i32_0 : i32, i32
  }
  func.func @transform_4(%arg0: i32, %arg1: i32) -> (i32, i32) {
    %c0_i32 = arith.constant 0 : i32
    %c0_i32_0 = arith.constant 0 : i32
    %c0_i32_1 = arith.constant 0 : i32
    return %c0_i32, %c0_i32_0 : i32, i32
  }
  func.func @transform_5(%arg0: i32, %arg1: i32) -> (i32, i32) {
    %c0_i32 = arith.constant 0 : i32
    %c0_i32_0 = arith.constant 0 : i32
    %c0_i32_1 = arith.constant 0 : i32
    return %c0_i32, %c0_i32_0 : i32, i32
  }
  func.func @transform_6(%arg0: i32, %arg1: i32) -> (i32, i32) {
    %c0_i32 = arith.constant 0 : i32
    %c0_i32_0 = arith.constant 0 : i32
    return %arg0, %c0_i32 : i32, i32
  }
}

module attributes {stable_mosaic.version = 11 : i64} {
  func.func @_matmul_bias_kernel(%arg0: i32, %arg1: i32, %arg2: i32, %arg3: memref<16x32xf32, #tpu.memory_space<vmem>>, %arg4: memref<32x96xf32, #tpu.memory_space<vmem>>, %arg5: memref<1x96xf32, #tpu.memory_space<vmem>>, %arg6: memref<16x96xf32, #tpu.memory_space<vmem>>, %arg7: memref<16x96xf32, #tpu.memory_space<vmem>>) attributes {dimension_semantics = [#tpu.dimension_semantics<parallel>, #tpu.dimension_semantics<parallel>, #tpu.dimension_semantics<arbitrary>], iteration_bounds = array<i64: 1, 1, 1>, scalar_prefetch = 0 : i64, scratch_operands = 1 : i64, tpu.core_type = #tpu.core_type<tc>, window_params = [{transform_indices = @transform_0, window_bounds = array<i64: 16, 32>}, {transform_indices = @transform_1, window_bounds = array<i64: 32, 96>}, {transform_indices = @transform_2, window_bounds = array<i64: 1, 96>}, {transform_indices = @transform_3, window_bounds = array<i64: 16, 96>}]} {
    %c0_i32 = arith.constant 0 : i32
    %0 = arith.cmpi eq, %arg2, %c0_i32 : i32
    %1 = arith.extui %0 : i1 to i32
    %c0_i32_0 = arith.constant 0 : i32
    %2 = arith.cmpi ne, %1, %c0_i32_0 : i32
    scf.if %2 {
      %cst_10 = arith.constant 0.000000e+00 : f32
      %12 = vector.broadcast %cst_10 : f32 to vector<16x96xf32>
      %c0_11 = arith.constant 0 : index
      %c0_12 = arith.constant 0 : index
      %13 = vector.load %arg7[%c0_11, %c0_12] : memref<16x96xf32, #tpu.memory_space<vmem>>, vector<16x96xf32>
      tpu.vector_store %arg7[%c0_11, %c0_12], %12 {strides = array<i32>} : memref<16x96xf32, #tpu.memory_space<vmem>>, vector<16x96xf32>,
    } else {
    }
    %c0 = arith.constant 0 : index
    %c0_1 = arith.constant 0 : index
    %3 = vector.load %arg7[%c0, %c0_1] : memref<16x96xf32, #tpu.memory_space<vmem>>, vector<16x96xf32>
    %c0_2 = arith.constant 0 : index
    %c0_3 = arith.constant 0 : index
    %4 = vector.load %arg3[%c0_2, %c0_3] : memref<16x32xf32, #tpu.memory_space<vmem>>, vector<16x32xf32>
    %c0_4 = arith.constant 0 : index
    %c0_5 = arith.constant 0 : index
    %5 = vector.load %arg4[%c0_4, %c0_5] : memref<32x96xf32, #tpu.memory_space<vmem>>, vector<32x96xf32>
    %cst = arith.constant dense<0.000000e+00> : vector<16x96xf32>
    %6 = tpu.matmul %4, %5, %cst {dimension_numbers = #tpu.dot_dimension_numbers<[1], [0], [0], [1], [0, 0, 1, 1], [], []>} : vector<16x32xf32>, vector<32x96xf32>, vector<16x96xf32> -> vector<16x96xf32>
    %7 = arith.addf %3, %6 : vector<16x96xf32>
    %c0_6 = arith.constant 0 : index
    %c0_7 = arith.constant 0 : index
    %8 = vector.load %arg7[%c0_6, %c0_7] : memref<16x96xf32, #tpu.memory_space<vmem>>, vector<16x96xf32>
    tpu.vector_store %arg7[%c0_6, %c0_7], %7 {strides = array<i32>} : memref<16x96xf32, #tpu.memory_space<vmem>>, vector<16x96xf32>,
    %c0_i32_8 = arith.constant 0 : i32
    %9 = arith.cmpi eq, %arg2, %c0_i32_8 : i32
    %10 = arith.extui %9 : i1 to i32
    %c0_i32_9 = arith.constant 0 : i32
    %11 = arith.cmpi ne, %10, %c0_i32_9 : i32
    scf.if %11 {
      %c0_10 = arith.constant 0 : index
      %c0_11 = arith.constant 0 : index
      %12 = vector.load %arg7[%c0_10, %c0_11] : memref<16x96xf32, #tpu.memory_space<vmem>>, vector<16x96xf32>
      %c0_12 = arith.constant 0 : index
      %c0_13 = arith.constant 0 : index
      %13 = vector.load %arg5[%c0_12, %c0_13] : memref<1x96xf32, #tpu.memory_space<vmem>>, vector<1x96xf32>
      %14 = vector.broadcast %13 : vector<1x96xf32> to vector<16x96xf32>
      %15 = arith.addf %12, %14 : vector<16x96xf32>
      %c0_14 = arith.constant 0 : index
      %c0_15 = arith.constant 0 : index
      %16 = vector.load %arg6[%c0_14, %c0_15] : memref<16x96xf32, #tpu.memory_space<vmem>>, vector<16x96xf32>
      tpu.vector_store %arg6[%c0_14, %c0_15], %15 {strides = array<i32>} : memref<16x96xf32, #tpu.memory_space<vmem>>, vector<16x96xf32>,
    } else {
    }
    return
  }
  func.func @transform_0(%arg0: i32, %arg1: i32, %arg2: i32) -> (i32, i32) {
    %c0_i32 = arith.constant 0 : i32
    return %arg0, %arg2 : i32, i32
  }
  func.func @transform_1(%arg0: i32, %arg1: i32, %arg2: i32) -> (i32, i32) {
    %c0_i32 = arith.constant 0 : i32
    return %arg2, %arg1 : i32, i32
  }
  func.func @transform_2(%arg0: i32, %arg1: i32, %arg2: i32) -> (i32, i32) {
    %c0_i32 = arith.constant 0 : i32
    %c0_i32_0 = arith.constant 0 : i32
    return %c0_i32, %arg1 : i32, i32
  }
  func.func @transform_3(%arg0: i32, %arg1: i32, %arg2: i32) -> (i32, i32) {
    %c0_i32 = arith.constant 0 : i32
    return %arg0, %arg1 : i32, i32
  }
}

module attributes {stable_mosaic.version = 11 : i64} {
  func.func @_band_attn_kernel(%arg0: i32, %arg1: i32, %arg2: i32, %arg3: memref<1x8x32xf32, #tpu.memory_space<vmem>>, %arg4: memref<1x8x32xf32, #tpu.memory_space<vmem>>, %arg5: memref<1x8x32xf32, #tpu.memory_space<vmem>>, %arg6: memref<1x1x8xf32, #tpu.memory_space<vmem>>, %arg7: memref<1x8x32xf32, #tpu.memory_space<vmem>>, %arg8: memref<4x8x1xf32, #tpu.memory_space<vmem>>, %arg9: memref<4x8x1xf32, #tpu.memory_space<vmem>>, %arg10: memref<4x8x8xf32, #tpu.memory_space<vmem>>) attributes {dimension_semantics = [#tpu.dimension_semantics<parallel>, #tpu.dimension_semantics<parallel>, #tpu.dimension_semantics<arbitrary>], iteration_bounds = array<i64: 2, 1, 3>, scalar_prefetch = 0 : i64, scratch_operands = 3 : i64, tpu.core_type = #tpu.core_type<tc>, window_params = [{transform_indices = @transform_0, window_bounds = array<i64: 1, 8, 32>}, {transform_indices = @transform_1, window_bounds = array<i64: 1, 8, 32>}, {transform_indices = @transform_2, window_bounds = array<i64: 1, 8, 32>}, {transform_indices = @transform_3, window_bounds = array<i64: 1, 1, 8>}, {transform_indices = @transform_4, window_bounds = array<i64: 1, 8, 32>}]} {
    %c0_i32 = arith.constant 0 : i32
    %0 = arith.cmpi eq, %arg2, %c0_i32 : i32
    %1 = arith.extui %0 : i1 to i32
    %c0_i32_0 = arith.constant 0 : i32
    %2 = arith.cmpi ne, %1, %c0_i32_0 : i32
    scf.if %2 {
      %cst = arith.constant 0xFF800000 : f32
      %13 = vector.broadcast %cst : f32 to vector<4x8x1xf32>
      %c0 = arith.constant 0 : index
      %c0_5 = arith.constant 0 : index
      %c0_6 = arith.constant 0 : index
      %14 = vector.load %arg8[%c0, %c0_5, %c0_6] : memref<4x8x1xf32, #tpu.memory_space<vmem>>, vector<4x8x1xf32>
      tpu.vector_store %arg8[%c0, %c0_5, %c0_6], %13 {strides = array<i32>} : memref<4x8x1xf32, #tpu.memory_space<vmem>>, vector<4x8x1xf32>,
      %cst_7 = arith.constant 0.000000e+00 : f32
      %15 = vector.broadcast %cst_7 : f32 to vector<4x8x1xf32>
      %c0_8 = arith.constant 0 : index
      %c0_9 = arith.constant 0 : index
      %c0_10 = arith.constant 0 : index
      %16 = vector.load %arg9[%c0_8, %c0_9, %c0_10] : memref<4x8x1xf32, #tpu.memory_space<vmem>>, vector<4x8x1xf32>
      tpu.vector_store %arg9[%c0_8, %c0_9, %c0_10], %15 {strides = array<i32>} : memref<4x8x1xf32, #tpu.memory_space<vmem>>, vector<4x8x1xf32>,
      %cst_11 = arith.constant 0.000000e+00 : f32
      %17 = vector.broadcast %cst_11 : f32 to vector<4x8x8xf32>
      %c0_12 = arith.constant 0 : index
      %c0_13 = arith.constant 0 : index
      %c0_14 = arith.constant 0 : index
      %18 = vector.load %arg10[%c0_12, %c0_13, %c0_14] : memref<4x8x8xf32, #tpu.memory_space<vmem>>, vector<4x8x8xf32>
      tpu.vector_store %arg10[%c0_12, %c0_13, %c0_14], %17 {strides = array<i32>} : memref<4x8x8xf32, #tpu.memory_space<vmem>>, vector<4x8x8xf32>,
    } else {
    }
    %c1_i32 = arith.constant 1 : i32
    %3 = arith.subi %arg1, %c1_i32 : i32
    %4 = arith.addi %3, %arg2 : i32
    %c0_i32_1 = arith.constant 0 : i32
    %5 = arith.cmpi sge, %4, %c0_i32_1 : i32
    %c1_i32_2 = arith.constant 1 : i32
    %6 = arith.cmpi slt, %4, %c1_i32_2 : i32
    %7 = arith.andi %5, %6 : i1
    %8 = arith.extui %7 : i1 to i32
    %c0_i32_3 = arith.constant 0 : i32
    %9 = arith.cmpi ne, %8, %c0_i32_3 : i32
    scf.if %9 {
      %c0 = arith.constant 0 : index
      %c0_5 = arith.constant 0 : index
      %c0_6 = arith.constant 0 : index
      %13 = vector.load %arg3[%c0, %c0_5, %c0_6] : memref<1x8x32xf32, #tpu.memory_space<vmem>>, vector<1x8x32xf32>
      %14 = vector.shape_cast %13 : vector<1x8x32xf32> to vector<8x32xf32>
      %cst = arith.constant 0.353553385 : f32
      %15 = vector.broadcast %cst : f32 to vector<8x32xf32>
      %16 = arith.mulf %14, %15 : vector<8x32xf32>
      %c0_7 = arith.constant 0 : index
      %c0_8 = arith.constant 0 : index
      %c0_9 = arith.constant 0 : index
      %17 = vector.load %arg4[%c0_7, %c0_8, %c0_9] : memref<1x8x32xf32, #tpu.memory_space<vmem>>, vector<1x8x32xf32>
      %18 = vector.shape_cast %17 : vector<1x8x32xf32> to vector<8x32xf32>
      %c0_10 = arith.constant 0 : index
      %c0_11 = arith.constant 0 : index
      %c0_12 = arith.constant 0 : index
      %19 = vector.load %arg5[%c0_10, %c0_11, %c0_12] : memref<1x8x32xf32, #tpu.memory_space<vmem>>, vector<1x8x32xf32>
      %20 = vector.shape_cast %19 : vector<1x8x32xf32> to vector<8x32xf32>
      %c8_i32 = arith.constant 8 : i32
      %21 = arith.muli %arg1, %c8_i32 : i32
      %22 = tpu.iota {dimensions = array<i32: 0>} : vector<8x8xi32>
      %23 = vector.broadcast %21 : i32 to vector<8x8xi32>
      %24 = arith.addi %23, %22 : vector<8x8xi32>
      %c8_i32_13 = arith.constant 8 : i32
      %25 = arith.muli %4, %c8_i32_13 : i32
      %26 = tpu.iota {dimensions = array<i32: 1>} : vector<8x8xi32>
      %27 = vector.broadcast %25 : i32 to vector<8x8xi32>
      %28 = arith.addi %27, %26 : vector<8x8xi32>
      %29 = arith.subi %24, %28 : vector<8x8xi32>
      %30 = math.absi %29 : vector<8x8xi32>
      %c2_i32_14 = arith.constant 2 : i32
      %31 = vector.broadcast %c2_i32_14 : i32 to vector<8x8xi32>
      %32 = arith.cmpi sle, %30, %31 : vector<8x8xi32>
      %c0_15 = arith.constant 0 : index
      %c0_16 = arith.constant 0 : index
      %c0_17 = arith.constant 0 : index
      %33 = vector.load %arg6[%c0_15, %c0_16, %c0_17] : memref<1x1x8xf32, #tpu.memory_space<vmem>>, vector<1x1x8xf32>
      %34 = vector.shape_cast %33 : vector<1x1x8xf32> to vector<1x8xf32>
      %cst_18 = arith.constant 5.000000e-01 : f32
      %35 = vector.broadcast %cst_18 : f32 to vector<1x8xf32>
      %36 = arith.cmpf ogt, %34, %35 : vector<1x8xf32>
      %37 = vector.broadcast %36 : vector<1x8xi1> to vector<8x8xi1>
      %38 = arith.andi %32, %37 : vector<8x8xi1>
      %39 = vector.extract_strided_slice %16 {offsets = [0, 0], sizes = [8, 8], strides = [1, 1]} : vector<8x32xf32> to vector<8x8xf32>
      %40 = vector.extract_strided_slice %18 {offsets = [0, 0], sizes = [8, 8], strides = [1, 1]} : vector<8x32xf32> to vector<8x8xf32>
      %cst_19 = arith.constant dense<0.000000e+00> : vector<8x8xf32>
      %41 = tpu.matmul %39, %40, %cst_19 {dimension_numbers = #tpu.dot_dimension_numbers<[1], [1], [0], [0], [0, 0, 1, 0], [], []>} : vector<8x8xf32>, vector<8x8xf32>, vector<8x8xf32> -> vector<8x8xf32>
      %cst_20 = arith.constant -9.000000e+15 : f32
      %42 = vector.broadcast %cst_20 : f32 to vector<8x8xf32>
      %43 = arith.select %38, %41, %42 : vector<8x8xi1>, vector<8x8xf32>
      %c0_21 = arith.constant 0 : index
      %c0_22 = arith.constant 0 : index
      %c0_23 = arith.constant 0 : index
      %44 = vector.load %arg8[%c0_21, %c0_22, %c0_23] : memref<4x8x1xf32, #tpu.memory_space<vmem>>, vector<1x8x1xf32>
      %45 = vector.shape_cast %44 : vector<1x8x1xf32> to vector<8x1xf32>
      %cst_24 = arith.constant dense<0xFF800000> : vector<8xf32>
      %46 = vector.multi_reduction <maximumf>, %43, %cst_24 [1] : vector<8x8xf32> to vector<8xf32>
      %47 = vector.shape_cast %46 : vector<8xf32> to vector<8x1xf32>
      %48 = arith.maximumf %45, %47 : vector<8x1xf32>
      %49 = arith.subf %45, %48 : vector<8x1xf32>
      %50 = math.exp %49 : vector<8x1xf32>
      %51 = vector.broadcast %48 : vector<8x1xf32> to vector<8x8xf32>
      %52 = arith.subf %43, %51 : vector<8x8xf32>
      %53 = math.exp %52 : vector<8x8xf32>
      %c0_25 = arith.constant 0 : index
      %c0_26 = arith.constant 0 : index
      %c0_27 = arith.constant 0 : index
      %54 = vector.load %arg9[%c0_25, %c0_26, %c0_27] : memref<4x8x1xf32, #tpu.memory_space<vmem>>, vector<1x8x1xf32>
      %55 = vector.shape_cast %54 : vector<1x8x1xf32> to vector<8x1xf32>
      %56 = arith.mulf %50, %55 : vector<8x1xf32>
      %cst_28 = arith.constant dense<0.000000e+00> : vector<8xf32>
      %57 = vector.multi_reduction <add>, %53, %cst_28 [1] : vector<8x8xf32> to vector<8xf32>
      %58 = vector.shape_cast %57 : vector<8xf32> to vector<8x1xf32>
      %59 = arith.addf %56, %58 : vector<8x1xf32>
      %c0_29 = arith.constant 0 : index
      %c0_30 = arith.constant 0 : index
      %c0_31 = arith.constant 0 : index
      %60 = vector.load %arg9[%c0_29, %c0_30, %c0_31] : memref<4x8x1xf32, #tpu.memory_space<vmem>>, vector<1x8x1xf32>
      %61 = vector.shape_cast %60 : vector<1x8x1xf32> to vector<8x1xf32>
      %62 = vector.shape_cast %59 : vector<8x1xf32> to vector<1x8x1xf32>
      tpu.vector_store %arg9[%c0_29, %c0_30, %c0_31], %62 {strides = array<i32>} : memref<4x8x1xf32, #tpu.memory_space<vmem>>, vector<1x8x1xf32>,
      %cst_32 = arith.constant 0.000000e+00 : f32
      %63 = vector.broadcast %cst_32 : f32 to vector<8x8xf32>
      %64 = arith.select %38, %53, %63 : vector<8x8xi1>, vector<8x8xf32>
      %c0_33 = arith.constant 0 : index
      %c0_34 = arith.constant 0 : index
      %c0_35 = arith.constant 0 : index
      %65 = vector.load %arg10[%c0_33, %c0_34, %c0_35] : memref<4x8x8xf32, #tpu.memory_space<vmem>>, vector<1x8x8xf32>
      %66 = vector.shape_cast %65 : vector<1x8x8xf32> to vector<8x8xf32>
      %67 = vector.broadcast %50 : vector<8x1xf32> to vector<8x8xf32>
      %68 = arith.mulf %67, %66 : vector<8x8xf32>
      %69 = vector.extract_strided_slice %20 {offsets = [0, 0], sizes = [8, 8], strides = [1, 1]} : vector<8x32xf32> to vector<8x8xf32>
      %cst_36 = arith.constant dense<0.000000e+00> : vector<8x8xf32>
      %70 = tpu.matmul %64, %69, %cst_36 {dimension_numbers = #tpu.dot_dimension_numbers<[1], [0], [0], [1], [0, 0, 1, 1], [], []>} : vector<8x8xf32>, vector<8x8xf32>, vector<8x8xf32> -> vector<8x8xf32>
      %71 = arith.addf %68, %70 : vector<8x8xf32>
      %c0_37 = arith.constant 0 : index
      %c0_38 = arith.constant 0 : index
      %c0_39 = arith.constant 0 : index
      %72 = vector.load %arg10[%c0_37, %c0_38, %c0_39] : memref<4x8x8xf32, #tpu.memory_space<vmem>>, vector<1x8x8xf32>
      %73 = vector.shape_cast %72 : vector<1x8x8xf32> to vector<8x8xf32>
      %74 = vector.shape_cast %71 : vector<8x8xf32> to vector<1x8x8xf32>
      tpu.vector_store %arg10[%c0_37, %c0_38, %c0_39], %74 {strides = array<i32>} : memref<4x8x8xf32, #tpu.memory_space<vmem>>, vector<1x8x8xf32>,
      %c0_40 = arith.constant 0 : index
      %c0_41 = arith.constant 0 : index
      %c0_42 = arith.constant 0 : index
      %75 = vector.load %arg8[%c0_40, %c0_41, %c0_42] : memref<4x8x1xf32, #tpu.memory_space<vmem>>, vector<1x8x1xf32>
      %76 = vector.shape_cast %75 : vector<1x8x1xf32> to vector<8x1xf32>
      %77 = vector.shape_cast %48 : vector<8x1xf32> to vector<1x8x1xf32>
      tpu.vector_store %arg8[%c0_40, %c0_41, %c0_42], %77 {strides = array<i32>} : memref<4x8x1xf32, #tpu.memory_space<vmem>>, vector<1x8x1xf32>,
      %78 = vector.extract_strided_slice %16 {offsets = [0, 8], sizes = [8, 8], strides = [1, 1]} : vector<8x32xf32> to vector<8x8xf32>
      %79 = vector.extract_strided_slice %18 {offsets = [0, 8], sizes = [8, 8], strides = [1, 1]} : vector<8x32xf32> to vector<8x8xf32>
      %cst_43 = arith.constant dense<0.000000e+00> : vector<8x8xf32>
      %80 = tpu.matmul %78, %79, %cst_43 {dimension_numbers = #tpu.dot_dimension_numbers<[1], [1], [0], [0], [0, 0, 1, 0], [], []>} : vector<8x8xf32>, vector<8x8xf32>, vector<8x8xf32> -> vector<8x8xf32>
      %cst_44 = arith.constant -9.000000e+15 : f32
      %81 = vector.broadcast %cst_44 : f32 to vector<8x8xf32>
      %82 = arith.select %38, %80, %81 : vector<8x8xi1>, vector<8x8xf32>
      %c1 = arith.constant 1 : index
      %c0_45 = arith.constant 0 : index
      %c0_46 = arith.constant 0 : index
      %83 = vector.load %arg8[%c1, %c0_45, %c0_46] : memref<4x8x1xf32, #tpu.memory_space<vmem>>, vector<1x8x1xf32>
      %84 = vector.shape_cast %83 : vector<1x8x1xf32> to vector<8x1xf32>
      %cst_47 = arith.constant dense<0xFF800000> : vector<8xf32>
      %85 = vector.multi_reduction <maximumf>, %82, %cst_47 [1] : vector<8x8xf32> to vector<8xf32>
      %86 = vector.shape_cast %85 : vector<8xf32> to vector<8x1xf32>
      %87 = arith.maximumf %84, %86 : vector<8x1xf32>
      %88 = arith.subf %84, %87 : vector<8x1xf32>
      %89 = math.exp %88 : vector<8x1xf32>
      %90 = vector.broadcast %87 : vector<8x1xf32> to vector<8x8xf32>
      %91 = arith.subf %82, %90 : vector<8x8xf32>
      %92 = math.exp %91 : vector<8x8xf32>
      %c1_48 = arith.constant 1 : index
      %c0_49 = arith.constant 0 : index
      %c0_50 = arith.constant 0 : index
      %93 = vector.load %arg9[%c1_48, %c0_49, %c0_50] : memref<4x8x1xf32, #tpu.memory_space<vmem>>, vector<1x8x1xf32>
      %94 = vector.shape_cast %93 : vector<1x8x1xf32> to vector<8x1xf32>
      %95 = arith.mulf %89, %94 : vector<8x1xf32>
      %cst_51 = arith.constant dense<0.000000e+00> : vector<8xf32>
      %96 = vector.multi_reduction <add>, %92, %cst_51 [1] : vector<8x8xf32> to vector<8xf32>
      %97 = vector.shape_cast %96 : vector<8xf32> to vector<8x1xf32>
      %98 = arith.addf %95, %97 : vector<8x1xf32>
      %c1_52 = arith.constant 1 : index
      %c0_53 = arith.constant 0 : index
      %c0_54 = arith.constant 0 : index
      %99 = vector.load %arg9[%c1_52, %c0_53, %c0_54] : memref<4x8x1xf32, #tpu.memory_space<vmem>>, vector<1x8x1xf32>
      %100 = vector.shape_cast %99 : vector<1x8x1xf32> to vector<8x1xf32>
      %101 = vector.shape_cast %98 : vector<8x1xf32> to vector<1x8x1xf32>
      tpu.vector_store %arg9[%c1_52, %c0_53, %c0_54], %101 {strides = array<i32>} : memref<4x8x1xf32, #tpu.memory_space<vmem>>, vector<1x8x1xf32>,
      %cst_55 = arith.constant 0.000000e+00 : f32
      %102 = vector.broadcast %cst_55 : f32 to vector<8x8xf32>
      %103 = arith.select %38, %92, %102 : vector<8x8xi1>, vector<8x8xf32>
      %c1_56 = arith.constant 1 : index
      %c0_57 = arith.constant 0 : index
      %c0_58 = arith.constant 0 : index
      %104 = vector.load %arg10[%c1_56, %c0_57, %c0_58] : memref<4x8x8xf32, #tpu.memory_space<vmem>>, vector<1x8x8xf32>
      %105 = vector.shape_cast %104 : vector<1x8x8xf32> to vector<8x8xf32>
      %106 = vector.broadcast %89 : vector<8x1xf32> to vector<8x8xf32>
      %107 = arith.mulf %106, %105 : vector<8x8xf32>
      %108 = vector.extract_strided_slice %20 {offsets = [0, 8], sizes = [8, 8], strides = [1, 1]} : vector<8x32xf32> to vector<8x8xf32>
      %cst_59 = arith.constant dense<0.000000e+00> : vector<8x8xf32>
      %109 = tpu.matmul %103, %108, %cst_59 {dimension_numbers = #tpu.dot_dimension_numbers<[1], [0], [0], [1], [0, 0, 1, 1], [], []>} : vector<8x8xf32>, vector<8x8xf32>, vector<8x8xf32> -> vector<8x8xf32>
      %110 = arith.addf %107, %109 : vector<8x8xf32>
      %c1_60 = arith.constant 1 : index
      %c0_61 = arith.constant 0 : index
      %c0_62 = arith.constant 0 : index
      %111 = vector.load %arg10[%c1_60, %c0_61, %c0_62] : memref<4x8x8xf32, #tpu.memory_space<vmem>>, vector<1x8x8xf32>
      %112 = vector.shape_cast %111 : vector<1x8x8xf32> to vector<8x8xf32>
      %113 = vector.shape_cast %110 : vector<8x8xf32> to vector<1x8x8xf32>
      tpu.vector_store %arg10[%c1_60, %c0_61, %c0_62], %113 {strides = array<i32>} : memref<4x8x8xf32, #tpu.memory_space<vmem>>, vector<1x8x8xf32>,
      %c1_63 = arith.constant 1 : index
      %c0_64 = arith.constant 0 : index
      %c0_65 = arith.constant 0 : index
      %114 = vector.load %arg8[%c1_63, %c0_64, %c0_65] : memref<4x8x1xf32, #tpu.memory_space<vmem>>, vector<1x8x1xf32>
      %115 = vector.shape_cast %114 : vector<1x8x1xf32> to vector<8x1xf32>
      %116 = vector.shape_cast %87 : vector<8x1xf32> to vector<1x8x1xf32>
      tpu.vector_store %arg8[%c1_63, %c0_64, %c0_65], %116 {strides = array<i32>} : memref<4x8x1xf32, #tpu.memory_space<vmem>>, vector<1x8x1xf32>,
      %117 = vector.extract_strided_slice %16 {offsets = [0, 16], sizes = [8, 8], strides = [1, 1]} : vector<8x32xf32> to vector<8x8xf32>
      %118 = vector.extract_strided_slice %18 {offsets = [0, 16], sizes = [8, 8], strides = [1, 1]} : vector<8x32xf32> to vector<8x8xf32>
      %cst_66 = arith.constant dense<0.000000e+00> : vector<8x8xf32>
      %119 = tpu.matmul %117, %118, %cst_66 {dimension_numbers = #tpu.dot_dimension_numbers<[1], [1], [0], [0], [0, 0, 1, 0], [], []>} : vector<8x8xf32>, vector<8x8xf32>, vector<8x8xf32> -> vector<8x8xf32>
      %cst_67 = arith.constant -9.000000e+15 : f32
      %120 = vector.broadcast %cst_67 : f32 to vector<8x8xf32>
      %121 = arith.select %38, %119, %120 : vector<8x8xi1>, vector<8x8xf32>
      %c2 = arith.constant 2 : index
      %c0_68 = arith.constant 0 : index
      %c0_69 = arith.constant 0 : index
      %122 = vector.load %arg8[%c2, %c0_68, %c0_69] : memref<4x8x1xf32, #tpu.memory_space<vmem>>, vector<1x8x1xf32>
      %123 = vector.shape_cast %122 : vector<1x8x1xf32> to vector<8x1xf32>
      %cst_70 = arith.constant dense<0xFF800000> : vector<8xf32>
      %124 = vector.multi_reduction <maximumf>, %121, %cst_70 [1] : vector<8x8xf32> to vector<8xf32>
      %125 = vector.shape_cast %124 : vector<8xf32> to vector<8x1xf32>
      %126 = arith.maximumf %123, %125 : vector<8x1xf32>
      %127 = arith.subf %123, %126 : vector<8x1xf32>
      %128 = math.exp %127 : vector<8x1xf32>
      %129 = vector.broadcast %126 : vector<8x1xf32> to vector<8x8xf32>
      %130 = arith.subf %121, %129 : vector<8x8xf32>
      %131 = math.exp %130 : vector<8x8xf32>
      %c2_71 = arith.constant 2 : index
      %c0_72 = arith.constant 0 : index
      %c0_73 = arith.constant 0 : index
      %132 = vector.load %arg9[%c2_71, %c0_72, %c0_73] : memref<4x8x1xf32, #tpu.memory_space<vmem>>, vector<1x8x1xf32>
      %133 = vector.shape_cast %132 : vector<1x8x1xf32> to vector<8x1xf32>
      %134 = arith.mulf %128, %133 : vector<8x1xf32>
      %cst_74 = arith.constant dense<0.000000e+00> : vector<8xf32>
      %135 = vector.multi_reduction <add>, %131, %cst_74 [1] : vector<8x8xf32> to vector<8xf32>
      %136 = vector.shape_cast %135 : vector<8xf32> to vector<8x1xf32>
      %137 = arith.addf %134, %136 : vector<8x1xf32>
      %c2_75 = arith.constant 2 : index
      %c0_76 = arith.constant 0 : index
      %c0_77 = arith.constant 0 : index
      %138 = vector.load %arg9[%c2_75, %c0_76, %c0_77] : memref<4x8x1xf32, #tpu.memory_space<vmem>>, vector<1x8x1xf32>
      %139 = vector.shape_cast %138 : vector<1x8x1xf32> to vector<8x1xf32>
      %140 = vector.shape_cast %137 : vector<8x1xf32> to vector<1x8x1xf32>
      tpu.vector_store %arg9[%c2_75, %c0_76, %c0_77], %140 {strides = array<i32>} : memref<4x8x1xf32, #tpu.memory_space<vmem>>, vector<1x8x1xf32>,
      %cst_78 = arith.constant 0.000000e+00 : f32
      %141 = vector.broadcast %cst_78 : f32 to vector<8x8xf32>
      %142 = arith.select %38, %131, %141 : vector<8x8xi1>, vector<8x8xf32>
      %c2_79 = arith.constant 2 : index
      %c0_80 = arith.constant 0 : index
      %c0_81 = arith.constant 0 : index
      %143 = vector.load %arg10[%c2_79, %c0_80, %c0_81] : memref<4x8x8xf32, #tpu.memory_space<vmem>>, vector<1x8x8xf32>
      %144 = vector.shape_cast %143 : vector<1x8x8xf32> to vector<8x8xf32>
      %145 = vector.broadcast %128 : vector<8x1xf32> to vector<8x8xf32>
      %146 = arith.mulf %145, %144 : vector<8x8xf32>
      %147 = vector.extract_strided_slice %20 {offsets = [0, 16], sizes = [8, 8], strides = [1, 1]} : vector<8x32xf32> to vector<8x8xf32>
      %cst_82 = arith.constant dense<0.000000e+00> : vector<8x8xf32>
      %148 = tpu.matmul %142, %147, %cst_82 {dimension_numbers = #tpu.dot_dimension_numbers<[1], [0], [0], [1], [0, 0, 1, 1], [], []>} : vector<8x8xf32>, vector<8x8xf32>, vector<8x8xf32> -> vector<8x8xf32>
      %149 = arith.addf %146, %148 : vector<8x8xf32>
      %c2_83 = arith.constant 2 : index
      %c0_84 = arith.constant 0 : index
      %c0_85 = arith.constant 0 : index
      %150 = vector.load %arg10[%c2_83, %c0_84, %c0_85] : memref<4x8x8xf32, #tpu.memory_space<vmem>>, vector<1x8x8xf32>
      %151 = vector.shape_cast %150 : vector<1x8x8xf32> to vector<8x8xf32>
      %152 = vector.shape_cast %149 : vector<8x8xf32> to vector<1x8x8xf32>
      tpu.vector_store %arg10[%c2_83, %c0_84, %c0_85], %152 {strides = array<i32>} : memref<4x8x8xf32, #tpu.memory_space<vmem>>, vector<1x8x8xf32>,
      %c2_86 = arith.constant 2 : index
      %c0_87 = arith.constant 0 : index
      %c0_88 = arith.constant 0 : index
      %153 = vector.load %arg8[%c2_86, %c0_87, %c0_88] : memref<4x8x1xf32, #tpu.memory_space<vmem>>, vector<1x8x1xf32>
      %154 = vector.shape_cast %153 : vector<1x8x1xf32> to vector<8x1xf32>
      %155 = vector.shape_cast %126 : vector<8x1xf32> to vector<1x8x1xf32>
      tpu.vector_store %arg8[%c2_86, %c0_87, %c0_88], %155 {strides = array<i32>} : memref<4x8x1xf32, #tpu.memory_space<vmem>>, vector<1x8x1xf32>,
      %156 = vector.extract_strided_slice %16 {offsets = [0, 24], sizes = [8, 8], strides = [1, 1]} : vector<8x32xf32> to vector<8x8xf32>
      %157 = vector.extract_strided_slice %18 {offsets = [0, 24], sizes = [8, 8], strides = [1, 1]} : vector<8x32xf32> to vector<8x8xf32>
      %cst_89 = arith.constant dense<0.000000e+00> : vector<8x8xf32>
      %158 = tpu.matmul %156, %157, %cst_89 {dimension_numbers = #tpu.dot_dimension_numbers<[1], [1], [0], [0], [0, 0, 1, 0], [], []>} : vector<8x8xf32>, vector<8x8xf32>, vector<8x8xf32> -> vector<8x8xf32>
      %cst_90 = arith.constant -9.000000e+15 : f32
      %159 = vector.broadcast %cst_90 : f32 to vector<8x8xf32>
      %160 = arith.select %38, %158, %159 : vector<8x8xi1>, vector<8x8xf32>
      %c3 = arith.constant 3 : index
      %c0_91 = arith.constant 0 : index
      %c0_92 = arith.constant 0 : index
      %161 = vector.load %arg8[%c3, %c0_91, %c0_92] : memref<4x8x1xf32, #tpu.memory_space<vmem>>, vector<1x8x1xf32>
      %162 = vector.shape_cast %161 : vector<1x8x1xf32> to vector<8x1xf32>
      %cst_93 = arith.constant dense<0xFF800000> : vector<8xf32>
      %163 = vector.multi_reduction <maximumf>, %160, %cst_93 [1] : vector<8x8xf32> to vector<8xf32>
      %164 = vector.shape_cast %163 : vector<8xf32> to vector<8x1xf32>
      %165 = arith.maximumf %162, %164 : vector<8x1xf32>
      %166 = arith.subf %162, %165 : vector<8x1xf32>
      %167 = math.exp %166 : vector<8x1xf32>
      %168 = vector.broadcast %165 : vector<8x1xf32> to vector<8x8xf32>
      %169 = arith.subf %160, %168 : vector<8x8xf32>
      %170 = math.exp %169 : vector<8x8xf32>
      %c3_94 = arith.constant 3 : index
      %c0_95 = arith.constant 0 : index
      %c0_96 = arith.constant 0 : index
      %171 = vector.load %arg9[%c3_94, %c0_95, %c0_96] : memref<4x8x1xf32, #tpu.memory_space<vmem>>, vector<1x8x1xf32>
      %172 = vector.shape_cast %171 : vector<1x8x1xf32> to vector<8x1xf32>
      %173 = arith.mulf %167, %172 : vector<8x1xf32>
      %cst_97 = arith.constant dense<0.000000e+00> : vector<8xf32>
      %174 = vector.multi_reduction <add>, %170, %cst_97 [1] : vector<8x8xf32> to vector<8xf32>
      %175 = vector.shape_cast %174 : vector<8xf32> to vector<8x1xf32>
      %176 = arith.addf %173, %175 : vector<8x1xf32>
      %c3_98 = arith.constant 3 : index
      %c0_99 = arith.constant 0 : index
      %c0_100 = arith.constant 0 : index
      %177 = vector.load %arg9[%c3_98, %c0_99, %c0_100] : memref<4x8x1xf32, #tpu.memory_space<vmem>>, vector<1x8x1xf32>
      %178 = vector.shape_cast %177 : vector<1x8x1xf32> to vector<8x1xf32>
      %179 = vector.shape_cast %176 : vector<8x1xf32> to vector<1x8x1xf32>
      tpu.vector_store %arg9[%c3_98, %c0_99, %c0_100], %179 {strides = array<i32>} : memref<4x8x1xf32, #tpu.memory_space<vmem>>, vector<1x8x1xf32>,
      %cst_101 = arith.constant 0.000000e+00 : f32
      %180 = vector.broadcast %cst_101 : f32 to vector<8x8xf32>
      %181 = arith.select %38, %170, %180 : vector<8x8xi1>, vector<8x8xf32>
      %c3_102 = arith.constant 3 : index
      %c0_103 = arith.constant 0 : index
      %c0_104 = arith.constant 0 : index
      %182 = vector.load %arg10[%c3_102, %c0_103, %c0_104] : memref<4x8x8xf32, #tpu.memory_space<vmem>>, vector<1x8x8xf32>
      %183 = vector.shape_cast %182 : vector<1x8x8xf32> to vector<8x8xf32>
      %184 = vector.broadcast %167 : vector<8x1xf32> to vector<8x8xf32>
      %185 = arith.mulf %184, %183 : vector<8x8xf32>
      %186 = vector.extract_strided_slice %20 {offsets = [0, 24], sizes = [8, 8], strides = [1, 1]} : vector<8x32xf32> to vector<8x8xf32>
      %cst_105 = arith.constant dense<0.000000e+00> : vector<8x8xf32>
      %187 = tpu.matmul %181, %186, %cst_105 {dimension_numbers = #tpu.dot_dimension_numbers<[1], [0], [0], [1], [0, 0, 1, 1], [], []>} : vector<8x8xf32>, vector<8x8xf32>, vector<8x8xf32> -> vector<8x8xf32>
      %188 = arith.addf %185, %187 : vector<8x8xf32>
      %c3_106 = arith.constant 3 : index
      %c0_107 = arith.constant 0 : index
      %c0_108 = arith.constant 0 : index
      %189 = vector.load %arg10[%c3_106, %c0_107, %c0_108] : memref<4x8x8xf32, #tpu.memory_space<vmem>>, vector<1x8x8xf32>
      %190 = vector.shape_cast %189 : vector<1x8x8xf32> to vector<8x8xf32>
      %191 = vector.shape_cast %188 : vector<8x8xf32> to vector<1x8x8xf32>
      tpu.vector_store %arg10[%c3_106, %c0_107, %c0_108], %191 {strides = array<i32>} : memref<4x8x8xf32, #tpu.memory_space<vmem>>, vector<1x8x8xf32>,
      %c3_109 = arith.constant 3 : index
      %c0_110 = arith.constant 0 : index
      %c0_111 = arith.constant 0 : index
      %192 = vector.load %arg8[%c3_109, %c0_110, %c0_111] : memref<4x8x1xf32, #tpu.memory_space<vmem>>, vector<1x8x1xf32>
      %193 = vector.shape_cast %192 : vector<1x8x1xf32> to vector<8x1xf32>
      %194 = vector.shape_cast %165 : vector<8x1xf32> to vector<1x8x1xf32>
      tpu.vector_store %arg8[%c3_109, %c0_110, %c0_111], %194 {strides = array<i32>} : memref<4x8x1xf32, #tpu.memory_space<vmem>>, vector<1x8x1xf32>,
    } else {
    }
    %c2_i32 = arith.constant 2 : i32
    %10 = arith.cmpi eq, %arg2, %c2_i32 : i32
    %11 = arith.extui %10 : i1 to i32
    %c0_i32_4 = arith.constant 0 : i32
    %12 = arith.cmpi ne, %11, %c0_i32_4 : i32
    scf.if %12 {
      %c0 = arith.constant 0 : index
      %c0_5 = arith.constant 0 : index
      %c0_6 = arith.constant 0 : index
      %13 = vector.load %arg10[%c0, %c0_5, %c0_6] : memref<4x8x8xf32, #tpu.memory_space<vmem>>, vector<1x8x8xf32>
      %14 = vector.shape_cast %13 : vector<1x8x8xf32> to vector<8x8xf32>
      %c0_7 = arith.constant 0 : index
      %c0_8 = arith.constant 0 : index
      %c0_9 = arith.constant 0 : index
      %15 = vector.load %arg9[%c0_7, %c0_8, %c0_9] : memref<4x8x1xf32, #tpu.memory_space<vmem>>, vector<1x8x1xf32>
      %16 = vector.shape_cast %15 : vector<1x8x1xf32> to vector<8x1xf32>
      %17 = tpu.reciprocal %16 {approx = true} : vector<8x1xf32> -> vector<8x1xf32>
      %18 = vector.broadcast %17 : vector<8x1xf32> to vector<8x8xf32>
      %19 = arith.mulf %14, %18 : vector<8x8xf32>
      %c1 = arith.constant 1 : index
      %c0_10 = arith.constant 0 : index
      %c0_11 = arith.constant 0 : index
      %20 = vector.load %arg10[%c1, %c0_10, %c0_11] : memref<4x8x8xf32, #tpu.memory_space<vmem>>, vector<1x8x8xf32>
      %21 = vector.shape_cast %20 : vector<1x8x8xf32> to vector<8x8xf32>
      %c1_12 = arith.constant 1 : index
      %c0_13 = arith.constant 0 : index
      %c0_14 = arith.constant 0 : index
      %22 = vector.load %arg9[%c1_12, %c0_13, %c0_14] : memref<4x8x1xf32, #tpu.memory_space<vmem>>, vector<1x8x1xf32>
      %23 = vector.shape_cast %22 : vector<1x8x1xf32> to vector<8x1xf32>
      %24 = tpu.reciprocal %23 {approx = true} : vector<8x1xf32> -> vector<8x1xf32>
      %25 = vector.broadcast %24 : vector<8x1xf32> to vector<8x8xf32>
      %26 = arith.mulf %21, %25 : vector<8x8xf32>
      %c2 = arith.constant 2 : index
      %c0_15 = arith.constant 0 : index
      %c0_16 = arith.constant 0 : index
      %27 = vector.load %arg10[%c2, %c0_15, %c0_16] : memref<4x8x8xf32, #tpu.memory_space<vmem>>, vector<1x8x8xf32>
      %28 = vector.shape_cast %27 : vector<1x8x8xf32> to vector<8x8xf32>
      %c2_17 = arith.constant 2 : index
      %c0_18 = arith.constant 0 : index
      %c0_19 = arith.constant 0 : index
      %29 = vector.load %arg9[%c2_17, %c0_18, %c0_19] : memref<4x8x1xf32, #tpu.memory_space<vmem>>, vector<1x8x1xf32>
      %30 = vector.shape_cast %29 : vector<1x8x1xf32> to vector<8x1xf32>
      %31 = tpu.reciprocal %30 {approx = true} : vector<8x1xf32> -> vector<8x1xf32>
      %32 = vector.broadcast %31 : vector<8x1xf32> to vector<8x8xf32>
      %33 = arith.mulf %28, %32 : vector<8x8xf32>
      %c3 = arith.constant 3 : index
      %c0_20 = arith.constant 0 : index
      %c0_21 = arith.constant 0 : index
      %34 = vector.load %arg10[%c3, %c0_20, %c0_21] : memref<4x8x8xf32, #tpu.memory_space<vmem>>, vector<1x8x8xf32>
      %35 = vector.shape_cast %34 : vector<1x8x8xf32> to vector<8x8xf32>
      %c3_22 = arith.constant 3 : index
      %c0_23 = arith.constant 0 : index
      %c0_24 = arith.constant 0 : index
      %36 = vector.load %arg9[%c3_22, %c0_23, %c0_24] : memref<4x8x1xf32, #tpu.memory_space<vmem>>, vector<1x8x1xf32>
      %37 = vector.shape_cast %36 : vector<1x8x1xf32> to vector<8x1xf32>
      %38 = tpu.reciprocal %37 {approx = true} : vector<8x1xf32> -> vector<8x1xf32>
      %39 = vector.broadcast %38 : vector<8x1xf32> to vector<8x8xf32>
      %40 = arith.mulf %35, %39 : vector<8x8xf32>
      %41 = tpu.concatenate %19, %26, %33, %40 in 1 : vector<8x8xf32>, vector<8x8xf32>, vector<8x8xf32>, vector<8x8xf32> -> vector<8x32xf32>
      %c0_25 = arith.constant 0 : index
      %c0_26 = arith.constant 0 : index
      %c0_27 = arith.constant 0 : index
      %42 = vector.load %arg7[%c0_25, %c0_26, %c0_27] : memref<1x8x32xf32, #tpu.memory_space<vmem>>, vector<1x8x32xf32>
      %43 = vector.shape_cast %42 : vector<1x8x32xf32> to vector<8x32xf32>
      %44 = vector.shape_cast %41 : vector<8x32xf32> to vector<1x8x32xf32>
      tpu.vector_store %arg7[%c0_25, %c0_26, %c0_27], %44 {strides = array<i32>} : memref<1x8x32xf32, #tpu.memory_space<vmem>>, vector<1x8x32xf32>,
    } else {
    }
    return
  }
  func.func @transform_0(%arg0: i32, %arg1: i32, %arg2: i32) -> (i32, i32, i32) {
    %c0_i32 = arith.constant 0 : i32
    %c0_i32_0 = arith.constant 0 : i32
    return %arg0, %arg1, %c0_i32 : i32, i32, i32
  }
  func.func @transform_1(%arg0: i32, %arg1: i32, %arg2: i32) -> (i32, i32, i32) {
    %c1_i32 = arith.constant 1 : i32
    %0 = arith.subi %arg1, %c1_i32 : i32
    %1 = arith.addi %0, %arg2 : i32
    %c0_i32 = arith.constant 0 : i32
    %c0_i32_0 = arith.constant 0 : i32
    %2 = arith.maxsi %c0_i32, %1 : i32
    %3 = arith.minsi %c0_i32_0, %2 : i32
    %c0_i32_1 = arith.constant 0 : i32
    %c0_i32_2 = arith.constant 0 : i32
    return %arg0, %3, %c0_i32_1 : i32, i32, i32
  }
  func.func @transform_2(%arg0: i32, %arg1: i32, %arg2: i32) -> (i32, i32, i32) {
    %c1_i32 = arith.constant 1 : i32
    %0 = arith.subi %arg1, %c1_i32 : i32
    %1 = arith.addi %0, %arg2 : i32
    %c0_i32 = arith.constant 0 : i32
    %c0_i32_0 = arith.constant 0 : i32
    %2 = arith.maxsi %c0_i32, %1 : i32
    %3 = arith.minsi %c0_i32_0, %2 : i32
    %c0_i32_1 = arith.constant 0 : i32
    %c0_i32_2 = arith.constant 0 : i32
    return %arg0, %3, %c0_i32_1 : i32, i32, i32
  }
  func.func @transform_3(%arg0: i32, %arg1: i32, %arg2: i32) -> (i32, i32, i32) {
    %c1_i32 = arith.constant 1 : i32
    %0 = arith.subi %arg1, %c1_i32 : i32
    %1 = arith.addi %0, %arg2 : i32
    %c0_i32 = arith.constant 0 : i32
    %c0_i32_0 = arith.constant 0 : i32
    %2 = arith.maxsi %c0_i32, %1 : i32
    %3 = arith.minsi %c0_i32_0, %2 : i32
    %c0_i32_1 = arith.constant 0 : i32
    %c0_i32_2 = arith.constant 0 : i32
    return %arg0, %c0_i32_1, %3 : i32, i32, i32
  }
  func.func @transform_4(%arg0: i32, %arg1: i32, %arg2: i32) -> (i32, i32, i32) {
    %c0_i32 = arith.constant 0 : i32
    %c0_i32_0 = arith.constant 0 : i32
    return %arg0, %arg1, %c0_i32 : i32, i32, i32
  }
}

module attributes {stable_mosaic.version = 11 : i64} {
  func.func @_ffn_res_ln_kernel(%arg0: i32, %arg1: i32, %arg2: memref<16x32xf32, #tpu.memory_space<vmem>>, %arg3: memref<32x64xf32, #tpu.memory_space<vmem>>, %arg4: memref<1x64xf32, #tpu.memory_space<vmem>>, %arg5: memref<64x32xf32, #tpu.memory_space<vmem>>, %arg6: memref<1x32xf32, #tpu.memory_space<vmem>>, %arg7: memref<1x32xf32, #tpu.memory_space<vmem>>, %arg8: memref<1x32xf32, #tpu.memory_space<vmem>>, %arg9: memref<16x32xf32, #tpu.memory_space<vmem>>, %arg10: memref<16x32xf32, #tpu.memory_space<vmem>>) attributes {dimension_semantics = [#tpu.dimension_semantics<parallel>, #tpu.dimension_semantics<arbitrary>], iteration_bounds = array<i64: 1, 1>, scalar_prefetch = 0 : i64, scratch_operands = 1 : i64, tpu.core_type = #tpu.core_type<tc>, window_params = [{transform_indices = @transform_0, window_bounds = array<i64: 16, 32>}, {transform_indices = @transform_1, window_bounds = array<i64: 32, 64>}, {transform_indices = @transform_2, window_bounds = array<i64: 1, 64>}, {transform_indices = @transform_3, window_bounds = array<i64: 64, 32>}, {pipeline_mode = #tpu.pipeline_mode<synchronous>, transform_indices = @transform_4, window_bounds = array<i64: 1, 32>}, {pipeline_mode = #tpu.pipeline_mode<synchronous>, transform_indices = @transform_5, window_bounds = array<i64: 1, 32>}, {pipeline_mode = #tpu.pipeline_mode<synchronous>, transform_indices = @transform_6, window_bounds = array<i64: 1, 32>}, {transform_indices = @transform_7, window_bounds = array<i64: 16, 32>}]} {
    %c0_i32 = arith.constant 0 : i32
    %0 = arith.cmpi eq, %arg1, %c0_i32 : i32
    %1 = arith.extui %0 : i1 to i32
    %c0_i32_0 = arith.constant 0 : i32
    %2 = arith.cmpi ne, %1, %c0_i32_0 : i32
    scf.if %2 {
      %cst_30 = arith.constant 0.000000e+00 : f32
      %57 = vector.broadcast %cst_30 : f32 to vector<16x32xf32>
      %c0_31 = arith.constant 0 : index
      %c0_32 = arith.constant 0 : index
      %58 = vector.load %arg10[%c0_31, %c0_32] : memref<16x32xf32, #tpu.memory_space<vmem>>, vector<16x32xf32>
      tpu.vector_store %arg10[%c0_31, %c0_32], %57 {strides = array<i32>} : memref<16x32xf32, #tpu.memory_space<vmem>>, vector<16x32xf32>,
    } else {
    }
    %c0 = arith.constant 0 : index
    %c0_1 = arith.constant 0 : index
    %3 = vector.load %arg2[%c0, %c0_1] : memref<16x32xf32, #tpu.memory_space<vmem>>, vector<16x32xf32>
    %c0_2 = arith.constant 0 : index
    %c0_3 = arith.constant 0 : index
    %4 = vector.load %arg3[%c0_2, %c0_3] : memref<32x64xf32, #tpu.memory_space<vmem>>, vector<32x64xf32>
    %cst = arith.constant dense<0.000000e+00> : vector<16x64xf32>
    %5 = tpu.matmul %3, %4, %cst {dimension_numbers = #tpu.dot_dimension_numbers<[1], [0], [0], [1], [0, 0, 1, 1], [], []>} : vector<16x32xf32>, vector<32x64xf32>, vector<16x64xf32> -> vector<16x64xf32>
    %c0_4 = arith.constant 0 : index
    %c0_5 = arith.constant 0 : index
    %6 = vector.load %arg4[%c0_4, %c0_5] : memref<1x64xf32, #tpu.memory_space<vmem>>, vector<1x64xf32>
    %7 = vector.broadcast %6 : vector<1x64xf32> to vector<16x64xf32>
    %8 = arith.addf %5, %7 : vector<16x64xf32>
    %cst_6 = arith.constant 5.000000e-01 : f32
    %9 = vector.broadcast %cst_6 : f32 to vector<16x64xf32>
    %10 = arith.mulf %9, %8 : vector<16x64xf32>
    %cst_7 = arith.constant 0.707106769 : f32
    %11 = vector.broadcast %cst_7 : f32 to vector<16x64xf32>
    %12 = arith.mulf %8, %11 : vector<16x64xf32>
    %13 = math.absf %12 : vector<16x64xf32>
    %cst_8 = arith.constant 0.327591091 : f32
    %14 = vector.broadcast %cst_8 : f32 to vector<16x64xf32>
    %15 = arith.mulf %14, %13 : vector<16x64xf32>
    %cst_9 = arith.constant 1.000000e+00 : f32
    %16 = vector.broadcast %cst_9 : f32 to vector<16x64xf32>
    %17 = arith.addf %16, %15 : vector<16x64xf32>
    %cst_10 = arith.constant 1.000000e+00 : f32
    %18 = vector.broadcast %cst_10 : f32 to vector<16x64xf32>
    %19 = arith.divf %18, %17 : vector<16x64xf32>
    %cst_11 = arith.constant 1.06140542 : f32
    %20 = vector.broadcast %cst_11 : f32 to vector<16x64xf32>
    %21 = arith.mulf %20, %19 : vector<16x64xf32>
    %cst_12 = arith.constant -1.45315206 : f32
    %22 = vector.broadcast %cst_12 : f32 to vector<16x64xf32>
    %23 = arith.addf %21, %22 : vector<16x64xf32>
    %24 = arith.mulf %23, %19 : vector<16x64xf32>
    %cst_13 = arith.constant 1.42141378 : f32
    %25 = vector.broadcast %cst_13 : f32 to vector<16x64xf32>
    %26 = arith.addf %24, %25 : vector<16x64xf32>
    %27 = arith.mulf %26, %19 : vector<16x64xf32>
    %cst_14 = arith.constant -0.284496725 : f32
    %28 = vector.broadcast %cst_14 : f32 to vector<16x64xf32>
    %29 = arith.addf %27, %28 : vector<16x64xf32>
    %30 = arith.mulf %29, %19 : vector<16x64xf32>
    %cst_15 = arith.constant 0.254829586 : f32
    %31 = vector.broadcast %cst_15 : f32 to vector<16x64xf32>
    %32 = arith.addf %30, %31 : vector<16x64xf32>
    %33 = arith.mulf %32, %19 : vector<16x64xf32>
    %cst_16 = arith.constant 0.000000e+00 : f32
    %34 = vector.broadcast %cst_16 : f32 to vector<16x64xf32>
    %35 = arith.subf %34, %13 : vector<16x64xf32>
    %36 = arith.mulf %35, %13 : vector<16x64xf32>
    %37 = math.exp %36 : vector<16x64xf32>
    %38 = arith.mulf %33, %37 : vector<16x64xf32>
    %cst_17 = arith.constant 1.000000e+00 : f32
    %39 = vector.broadcast %cst_17 : f32 to vector<16x64xf32>
    %40 = arith.subf %39, %38 : vector<16x64xf32>
    %cst_18 = arith.constant 0.000000e+00 : f32
    %41 = vector.broadcast %cst_18 : f32 to vector<16x64xf32>
    %42 = arith.cmpf oge, %12, %41 : vector<16x64xf32>
    %cst_19 = arith.constant 0.000000e+00 : f32
    %43 = vector.broadcast %cst_19 : f32 to vector<16x64xf32>
    %44 = arith.subf %43, %40 : vector<16x64xf32>
    %45 = arith.select %42, %40, %44 : vector<16x64xi1>, vector<16x64xf32>
    %cst_20 = arith.constant 1.000000e+00 : f32
    %46 = vector.broadcast %cst_20 : f32 to vector<16x64xf32>
    %47 = arith.addf %46, %45 : vector<16x64xf32>
    %48 = arith.mulf %10, %47 : vector<16x64xf32>
    %c0_21 = arith.constant 0 : index
    %c0_22 = arith.constant 0 : index
    %49 = vector.load %arg10[%c0_21, %c0_22] : memref<16x32xf32, #tpu.memory_space<vmem>>, vector<16x32xf32>
    %c0_23 = arith.constant 0 : index
    %c0_24 = arith.constant 0 : index
    %50 = vector.load %arg5[%c0_23, %c0_24] : memref<64x32xf32, #tpu.memory_space<vmem>>, vector<64x32xf32>
    %cst_25 = arith.constant dense<0.000000e+00> : vector<16x32xf32>
    %51 = tpu.matmul %48, %50, %cst_25 {dimension_numbers = #tpu.dot_dimension_numbers<[1], [0], [0], [1], [0, 0, 1, 1], [], []>} : vector<16x64xf32>, vector<64x32xf32>, vector<16x32xf32> -> vector<16x32xf32>
    %52 = arith.addf %49, %51 : vector<16x32xf32>
    %c0_26 = arith.constant 0 : index
    %c0_27 = arith.constant 0 : index
    %53 = vector.load %arg10[%c0_26, %c0_27] : memref<16x32xf32, #tpu.memory_space<vmem>>, vector<16x32xf32>
    tpu.vector_store %arg10[%c0_26, %c0_27], %52 {strides = array<i32>} : memref<16x32xf32, #tpu.memory_space<vmem>>, vector<16x32xf32>,
    %c0_i32_28 = arith.constant 0 : i32
    %54 = arith.cmpi eq, %arg1, %c0_i32_28 : i32
    %55 = arith.extui %54 : i1 to i32
    %c0_i32_29 = arith.constant 0 : i32
    %56 = arith.cmpi ne, %55, %c0_i32_29 : i32
    scf.if %56 {
      %c0_30 = arith.constant 0 : index
      %c0_31 = arith.constant 0 : index
      %57 = vector.load %arg10[%c0_30, %c0_31] : memref<16x32xf32, #tpu.memory_space<vmem>>, vector<16x32xf32>
      %c0_32 = arith.constant 0 : index
      %c0_33 = arith.constant 0 : index
      %58 = vector.load %arg6[%c0_32, %c0_33] : memref<1x32xf32, #tpu.memory_space<vmem>>, vector<1x32xf32>
      %59 = vector.broadcast %58 : vector<1x32xf32> to vector<16x32xf32>
      %60 = arith.addf %57, %59 : vector<16x32xf32>
      %c0_34 = arith.constant 0 : index
      %c0_35 = arith.constant 0 : index
      %61 = vector.load %arg2[%c0_34, %c0_35] : memref<16x32xf32, #tpu.memory_space<vmem>>, vector<16x32xf32>
      %62 = arith.addf %60, %61 : vector<16x32xf32>
      %cst_36 = arith.constant dense<0.000000e+00> : vector<16xf32>
      %63 = vector.multi_reduction <add>, %62, %cst_36 [1] : vector<16x32xf32> to vector<16xf32>
      %64 = vector.shape_cast %63 : vector<16xf32> to vector<16x1xf32>
      %cst_37 = arith.constant 3.200000e+01 : f32
      %65 = vector.broadcast %cst_37 : f32 to vector<16x1xf32>
      %66 = arith.divf %64, %65 : vector<16x1xf32>
      %67 = vector.broadcast %66 : vector<16x1xf32> to vector<16x32xf32>
      %68 = arith.subf %62, %67 : vector<16x32xf32>
      %69 = arith.mulf %68, %68 : vector<16x32xf32>
      %cst_38 = arith.constant dense<0.000000e+00> : vector<16xf32>
      %70 = vector.multi_reduction <add>, %69, %cst_38 [1] : vector<16x32xf32> to vector<16xf32>
      %71 = vector.shape_cast %70 : vector<16xf32> to vector<16x1xf32>
      %cst_39 = arith.constant 3.200000e+01 : f32
      %72 = vector.broadcast %cst_39 : f32 to vector<16x1xf32>
      %73 = arith.divf %71, %72 : vector<16x1xf32>
      %cst_40 = arith.constant 9.99999974E-6 : f32
      %74 = vector.broadcast %cst_40 : f32 to vector<16x1xf32>
      %75 = arith.addf %73, %74 : vector<16x1xf32>
      %76 = math.rsqrt %75 : vector<16x1xf32>
      %77 = vector.broadcast %76 : vector<16x1xf32> to vector<16x32xf32>
      %78 = arith.mulf %68, %77 : vector<16x32xf32>
      %c0_41 = arith.constant 0 : index
      %c0_42 = arith.constant 0 : index
      %79 = vector.load %arg7[%c0_41, %c0_42] : memref<1x32xf32, #tpu.memory_space<vmem>>, vector<1x32xf32>
      %80 = vector.broadcast %79 : vector<1x32xf32> to vector<16x32xf32>
      %81 = arith.mulf %78, %80 : vector<16x32xf32>
      %c0_43 = arith.constant 0 : index
      %c0_44 = arith.constant 0 : index
      %82 = vector.load %arg8[%c0_43, %c0_44] : memref<1x32xf32, #tpu.memory_space<vmem>>, vector<1x32xf32>
      %83 = vector.broadcast %82 : vector<1x32xf32> to vector<16x32xf32>
      %84 = arith.addf %81, %83 : vector<16x32xf32>
      %c0_45 = arith.constant 0 : index
      %c0_46 = arith.constant 0 : index
      %85 = vector.load %arg9[%c0_45, %c0_46] : memref<16x32xf32, #tpu.memory_space<vmem>>, vector<16x32xf32>
      tpu.vector_store %arg9[%c0_45, %c0_46], %84 {strides = array<i32>} : memref<16x32xf32, #tpu.memory_space<vmem>>, vector<16x32xf32>,
    } else {
    }
    return
  }
  func.func @transform_0(%arg0: i32, %arg1: i32) -> (i32, i32) {
    %c0_i32 = arith.constant 0 : i32
    %c0_i32_0 = arith.constant 0 : i32
    return %arg0, %c0_i32 : i32, i32
  }
  func.func @transform_1(%arg0: i32, %arg1: i32) -> (i32, i32) {
    %c0_i32 = arith.constant 0 : i32
    %c0_i32_0 = arith.constant 0 : i32
    return %c0_i32, %arg1 : i32, i32
  }
  func.func @transform_2(%arg0: i32, %arg1: i32) -> (i32, i32) {
    %c0_i32 = arith.constant 0 : i32
    %c0_i32_0 = arith.constant 0 : i32
    return %c0_i32, %arg1 : i32, i32
  }
  func.func @transform_3(%arg0: i32, %arg1: i32) -> (i32, i32) {
    %c0_i32 = arith.constant 0 : i32
    %c0_i32_0 = arith.constant 0 : i32
    return %arg1, %c0_i32 : i32, i32
  }
  func.func @transform_4(%arg0: i32, %arg1: i32) -> (i32, i32) {
    %c0_i32 = arith.constant 0 : i32
    %c0_i32_0 = arith.constant 0 : i32
    %c0_i32_1 = arith.constant 0 : i32
    return %c0_i32, %c0_i32_0 : i32, i32
  }
  func.func @transform_5(%arg0: i32, %arg1: i32) -> (i32, i32) {
    %c0_i32 = arith.constant 0 : i32
    %c0_i32_0 = arith.constant 0 : i32
    %c0_i32_1 = arith.constant 0 : i32
    return %c0_i32, %c0_i32_0 : i32, i32
  }
  func.func @transform_6(%arg0: i32, %arg1: i32) -> (i32, i32) {
    %c0_i32 = arith.constant 0 : i32
    %c0_i32_0 = arith.constant 0 : i32
    %c0_i32_1 = arith.constant 0 : i32
    return %c0_i32, %c0_i32_0 : i32, i32
  }
  func.func @transform_7(%arg0: i32, %arg1: i32) -> (i32, i32) {
    %c0_i32 = arith.constant 0 : i32
    %c0_i32_0 = arith.constant 0 : i32
    return %arg0, %c0_i32 : i32, i32
  }
}

</mosaic_0001>

<llo_original>
// kernel: encoder_layer_forward.4
$region0: #{encoder_layer_forward.4}
  #allocation0 [shape = 'u32[]', space=smem, size = 0x4, offset = 0x4, fixed_abs, tag = 'smem constant byte address 0x4 - core index']
  #allocation1 [shape = 'u32[144,128]{1,0:T(1,128)}', space=vmem, size = 0x12000, scoped, tag = 'internal scratch']
  #allocation2 [shape = 'f32[16,96]{1,0:T(8,128)}', space=vmem, size = 0x2000, scoped, tag = 'scratch operand']
  %s0 = inlined_call_operand.vmem [shape: f32[16,32], index: 0, kind: input, shape index: {}]
  %s1 = inlined_call_operand.vmem [shape: f32[32,96], index: 1, kind: input, shape index: {}]
  %s2 = inlined_call_operand.vmem [shape: f32[1,96], index: 2, kind: input, shape index: {}]
  %s3 = inlined_call_operand.vmem [shape: f32[16,96], index: 3, kind: output, shape index: {}]
  %s4 = sld [smem:[#allocation0]]
  $region30: #{encoder_layer_forward.4} parent=0
    _
  %s6 = ssub.s32 1, %s4
  %s7 = scalar_select 0, %s6, %s4
  // Predicated region
  $region2: #{encoder_layer_forward.4} parent=0 // pred_check
    _
  $region3: #{encoder_layer_forward.4} parent=0 // pred_check_branch
    %9 = sbr.rel (0) target = $region5
  $region4: #{encoder_layer_forward.4} parent=0 // pred_region
    _
  $region5: #{encoder_layer_forward.4} parent=0 // pred_fallthru
    _
  // Predicated region
  $region6: #{encoder_layer_forward.4} parent=0 // pred_check
    _
  $region7: #{encoder_layer_forward.4} parent=0 // pred_check_branch
    %11 = sbr.rel (0) target = $region9
  $region8: #{encoder_layer_forward.4} parent=0 // pred_region
    _
  $region9: #{encoder_layer_forward.4} parent=0 // pred_fallthru
    _
  // Predicated region
  $region10: #{encoder_layer_forward.4} parent=0 // pred_check
    _
  $region11: #{encoder_layer_forward.4} parent=0 // pred_check_branch
    %13 = sbr.rel (0) target = $region13
  $region12: #{encoder_layer_forward.4} parent=0 // pred_region
    _
  $region13: #{encoder_layer_forward.4} parent=0 // pred_fallthru
    _
  %p14 = scmp.eq.s32.totalorder 0, 0
  // Predicated region
  $region14: #{encoder_layer_forward.4} parent=0 // pred_check
    %p15 = pneg %p14
  $region15: #{encoder_layer_forward.4} parent=0 // pred_check_branch
    %17 = sbr.rel (%p15) target = $region17
  $region16: #{encoder_layer_forward.4} parent=0 // pred_region
    %vm18 = vcmask 785408
    %19 = vst.msk [vmem:[#allocation2] sm:$0xff] %vm18, 0.0
    %20 = vst.msk [vmem:[#allocation2 + $0x8] sm:$0xff] %vm18, 0.0
  $region17: #{encoder_layer_forward.4} parent=0 // pred_fallthru
    _
  %v21 = vld [vmem:[#allocation2] sm:$0xff]
  %v22 = vld [vmem:[#allocation2 + $0x8] sm:$0xff]
  %v23 = vld [vmem:[%s0] sm:$0xff]
  %v24 = vld [vmem:[%s0 + $0x8] sm:$0xff]
  %v25 = vld [vmem:[%s1] sm:$0xff]
  %v26 = vld [vmem:[%s1 + $0x8] sm:$0xff]
  %v27 = vld [vmem:[%s1 + $0x10] sm:$0xff]
  %v28 = vld [vmem:[%s1 + $0x18] sm:$0xff]
  %vm29 = vcmask 261120
  %v31 = vsel %vm29, %v23, 0
  %v34 = vsel %vm29, %v24, 0
  %36 = vmatprep.subr.mxu0 0.0
  %37 = vmatpush1.msra.mxu0 %v25
  %38 = vmatprep.subr.mxu0 0.0
  %39 = vmatpush1.msra.mxu0 %v26
  %40 = vmatprep.subr.mxu0 0.0
  %41 = vmatpush1.msra.mxu0 %v27
  %42 = vmatprep.subr.mxu0 0.0
  %43 = vmatpush1.msra.mxu0 %v28
  %44 = vmatprep.subr.mxu0 0.0
  %45 = vmatpush1.msra.mxu0 0.0
  %46 = vmatprep.subr.mxu0 0.0
  %47 = vmatpush1.msra.mxu0 0.0
  %48 = vmatprep.subr.mxu0 0.0
  %49 = vmatpush1.msra.mxu0 0.0
  %50 = vmatprep.subr.mxu0 0.0
  %51 = vmatpush1.msra.mxu0 0.0
  %52 = vmatprep.subr.mxu0 0.0
  %53 = vmatpush1.msra.mxu0 0.0
  %54 = vmatprep.subr.mxu0 0.0
  %55 = vmatpush1.msra.mxu0 0.0
  %56 = vmatprep.subr.mxu0 0.0
  %57 = vmatpush1.msra.mxu0 0.0
  %58 = vmatprep.subr.mxu0 0.0
  %59 = vmatpush1.msra.mxu0 0.0
  %60 = vmatprep.subr.mxu0 0.0
  %61 = vmatpush1.msra.mxu0 0.0
  %62 = vmatprep.subr.mxu0 0.0
  %63 = vmatpush1.msra.mxu0 0.0
  %64 = vmatprep.subr.mxu0 0.0
  %65 = vmatpush1.msra.mxu0 0.0
  %66 = vmatprep.subr.mxu0 0.0
  %67 = vmatpush1.msra.mxu0 0.0
  %68 = vmatprep.subr.mxu0 0.0
  %69 = vmatpush1.msra.mxu0 0.0
  %70 = vmatprep.subr.mxu0 0.0
  %71 = vmatpush1.msra.mxu0 0.0
  %72 = vmatprep.subr.mxu0 0.0
  %73 = vmatpush1.msra.mxu0 0.0
  %74 = vmatprep.subr.mxu0 0.0
  %75 = vmatpush1.msra.mxu0 0.0
  %76 = vmatprep.subr.mxu0 0.0
  %77 = vmatpush1.msra.mxu0 0.0
  %78 = vmatprep.subr.mxu0 0.0
  %79 = vmatpush1.msra.mxu0 0.0
  %80 = vmatprep.subr.mxu0 0.0
  %81 = vmatpush1.msra.mxu0 0.0
  %82 = vmatprep.subr.mxu0 0.0
  %83 = vmatpush1.msra.mxu0 0.0
  %84 = vmatprep.subr.mxu0 0.0
  %85 = vmatpush1.msra.mxu0 0.0
  %86 = vmatprep.subr.mxu0 0.0
  %87 = vmatpush1.msra.mxu0 0.0
  %88 = vmatprep.subr.mxu0 0.0
  %89 = vmatpush1.msra.mxu0 0.0
  %90 = vmatprep.subr.mxu0 0.0
  %91 = vmatpush1.msra.mxu0 0.0
  %92 = vmatprep.subr.mxu0 0.0
  %93 = vmatpush1.msra.mxu0 0.0
  %94 = vmatprep.subr.mxu0 0.0
  %95 = vmatpush1.msra.mxu0 0.0
  %96 = vmatprep.subr.mxu0 0.0
  %97 = vmatpush1.msra.mxu0 0.0
  %98 = vmatprep.subr.mxu0 0.0
  %99 = vmatpush1.msra.mxu0 0.0
  %100 = vmatprep.mubr.f32.mxu0 0.0
  %101 = vmatmul.mubr.f32.gmra.mrb[0].mxu0 %v31
  %v102 = vpop.f32.mrb[0].mxu0
  %v103 = vadd.f32 0.0, %v102
  %v104 = vpop.f32.mrb[0].mxu0
  %105 = vmatprep.mubr.f32.mxu0 0.0
  %106 = vmatmul.mubr.f32.gmra.mrb[0].mxu0 %v34
  %v107 = vpop.f32.mrb[0].mxu0
  %v108 = vadd.f32 0.0, %v107
  %v109 = vpop.f32.mrb[0].mxu0
  %110 = vdwg.mxu0
  %v111 = vadd.f32 %v21, %v103
  %v112 = vadd.f32 %v22, %v108
  %vm113 = vcmask 785408
  %114 = vst.msk [vmem:[#allocation2] sm:$0xff] %vm113, %v111
  %115 = vst.msk [vmem:[#allocation2 + $0x8] sm:$0xff] %vm113, %v112
  // Predicated region
  $region18: #{encoder_layer_forward.4} parent=0 // pred_check
    %p116 = pneg %p14
  $region19: #{encoder_layer_forward.4} parent=0 // pred_check_branch
    %118 = sbr.rel (%p116) target = $region21
  $region20: #{encoder_layer_forward.4} parent=0 // pred_region
    %v119 = vld [vmem:[#allocation2] sm:$0xff]
    %v120 = vld [vmem:[#allocation2 + $0x8] sm:$0xff]
    %v121 = vld [vmem:[%s2] sm:$0x1]
    %v123 = vlaneseq
    %v124 = vshrl.u32 %v123, 7
    %v125 = vsub.s32 0, %v124
    %v126 = vrot.slane %v121, %v125
    %v128 = vadd.f32 %v119, %v126
    %v129 = vadd.f32 %v120, %v126
    %130 = vst.msk [vmem:[%s3] sm:$0xff] %vm113, %v128
    %131 = vst.msk [vmem:[%s3 + $0x8] sm:$0xff] %vm113, %v129
  $region21: #{encoder_layer_forward.4} parent=0 // pred_fallthru
    _
  // Predicated region
  $region22: #{encoder_layer_forward.4} parent=0 // pred_check
    _
  $region23: #{encoder_layer_forward.4} parent=0 // pred_check_branch
    %133 = sbr.rel (0) target = $region25
  $region24: #{encoder_layer_forward.4} parent=0 // pred_region
    _
  $region25: #{encoder_layer_forward.4} parent=0 // pred_fallthru
    _
  // Predicated region
  $region26: #{encoder_layer_forward.4} parent=0 // pred_check
    _
  $region27: #{encoder_layer_forward.4} parent=0 // pred_check_branch
    %135 = sbr.rel (0) target = $region29
  $region28: #{encoder_layer_forward.4} parent=0 // pred_region
    _
  $region29: #{encoder_layer_forward.4} parent=0 // pred_fallthru
    _

// kernel: encoder_layer_forward.6
$region0: #{encoder_layer_forward.6}
  #allocation0 [shape = 'u32[]', space=smem, size = 0x4, offset = 0x4, fixed_abs, tag = 'smem constant byte address 0x4 - core index']
  #allocation1 [shape = 'u32[144,128]{1,0:T(1,128)}', space=vmem, size = 0x12000, scoped, tag = 'internal scratch']
  #allocation2 [shape = 'f32[16,32]{1,0:T(8,128)}', space=vmem, size = 0x2000, scoped, tag = 'scratch operand']
  %s0 = inlined_call_operand.vmem [shape: f32[16,32], index: 0, kind: input, shape index: {}]
  %s1 = inlined_call_operand.vmem [shape: f32[16,32], index: 1, kind: input, shape index: {}]
  %s2 = inlined_call_operand.vmem [shape: f32[32,32], index: 2, kind: input, shape index: {}]
  %s3 = inlined_call_operand.vmem [shape: f32[1,32], index: 3, kind: input, shape index: {}]
  %s4 = inlined_call_operand.vmem [shape: f32[1,32], index: 4, kind: input, shape index: {}]
  %s5 = inlined_call_operand.vmem [shape: f32[1,32], index: 5, kind: input, shape index: {}]
  %s6 = inlined_call_operand.vmem [shape: f32[16,32], index: 6, kind: output, shape index: {}]
  %s7 = sld [smem:[#allocation0]]
  $region42: #{encoder_layer_forward.6} parent=0
    _
  %s9 = ssub.s32 1, %s7
  %s10 = scalar_select 0, %s9, %s7
  // Predicated region
  $region2: #{encoder_layer_forward.6} parent=0 // pred_check
    _
  $region3: #{encoder_layer_forward.6} parent=0 // pred_check_branch
    %12 = sbr.rel (0) target = $region5
  $region4: #{encoder_layer_forward.6} parent=0 // pred_region
    _
  $region5: #{encoder_layer_forward.6} parent=0 // pred_fallthru
    _
  // Predicated region
  $region6: #{encoder_layer_forward.6} parent=0 // pred_check
    _
  $region7: #{encoder_layer_forward.6} parent=0 // pred_check_branch
    %14 = sbr.rel (0) target = $region9
  $region8: #{encoder_layer_forward.6} parent=0 // pred_region
    _
  $region9: #{encoder_layer_forward.6} parent=0 // pred_fallthru
    _
  // Predicated region
  $region10: #{encoder_layer_forward.6} parent=0 // pred_check
    _
  $region11: #{encoder_layer_forward.6} parent=0 // pred_check_branch
    %16 = sbr.rel (0) target = $region13
  $region12: #{encoder_layer_forward.6} parent=0 // pred_region
    _
  $region13: #{encoder_layer_forward.6} parent=0 // pred_fallthru
    _
  // Predicated region
  $region14: #{encoder_layer_forward.6} parent=0 // pred_check
    _
  $region15: #{encoder_layer_forward.6} parent=0 // pred_check_branch
    %18 = sbr.rel (0) target = $region17
  $region16: #{encoder_layer_forward.6} parent=0 // pred_region
    _
  $region17: #{encoder_layer_forward.6} parent=0 // pred_fallthru
    _
  // Predicated region
  $region18: #{encoder_layer_forward.6} parent=0 // pred_check
    _
  $region19: #{encoder_layer_forward.6} parent=0 // pred_check_branch
    %20 = sbr.rel (0) target = $region21
  $region20: #{encoder_layer_forward.6} parent=0 // pred_region
    _
  $region21: #{encoder_layer_forward.6} parent=0 // pred_fallthru
    _
  // Predicated region
  $region22: #{encoder_layer_forward.6} parent=0 // pred_check
    _
  $region23: #{encoder_layer_forward.6} parent=0 // pred_check_branch
    %22 = sbr.rel (0) target = $region25
  $region24: #{encoder_layer_forward.6} parent=0 // pred_region
    _
  $region25: #{encoder_layer_forward.6} parent=0 // pred_fallthru
    _
  %p23 = scmp.eq.s32.totalorder 0, 0
  // Predicated region
  $region26: #{encoder_layer_forward.6} parent=0 // pred_check
    %p24 = pneg %p23
  $region27: #{encoder_layer_forward.6} parent=0 // pred_check_branch
    %26 = sbr.rel (%p24) target = $region29
  $region28: #{encoder_layer_forward.6} parent=0 // pred_region
    %vm27 = vcmask 261120
    %28 = vst.msk [vmem:[#allocation2] sm:$0xff] %vm27, 0.0
    %29 = vst.msk [vmem:[#allocation2 + $0x8] sm:$0xff] %vm27, 0.0
  $region29: #{encoder_layer_forward.6} parent=0 // pred_fallthru
    _
  %v30 = vld [vmem:[#allocation2] sm:$0xff]
  %v31 = vld [vmem:[#allocation2 + $0x8] sm:$0xff]
  %v32 = vld [vmem:[%s1] sm:$0xff]
  %v33 = vld [vmem:[%s1 + $0x8] sm:$0xff]
  %v34 = vld [vmem:[%s2] sm:$0xff]
  %v35 = vld [vmem:[%s2 + $0x8] sm:$0xff]
  %v36 = vld [vmem:[%s2 + $0x10] sm:$0xff]
  %v37 = vld [vmem:[%s2 + $0x18] sm:$0xff]
  %vm38 = vcmask 261120
  %v40 = vsel %vm38, %v32, 0
  %v43 = vsel %vm38, %v33, 0
  %45 = vmatprep.subr.mxu0 0.0
  %46 = vmatpush1.msra.mxu0 %v34
  %47 = vmatprep.subr.mxu0 0.0
  %48 = vmatpush1.msra.mxu0 %v35
  %49 = vmatprep.subr.mxu0 0.0
  %50 = vmatpush1.msra.mxu0 %v36
  %51 = vmatprep.subr.mxu0 0.0
  %52 = vmatpush1.msra.mxu0 %v37
  %53 = vmatprep.subr.mxu0 0.0
  %54 = vmatpush1.msra.mxu0 0.0
  %55 = vmatprep.subr.mxu0 0.0
  %56 = vmatpush1.msra.mxu0 0.0
  %57 = vmatprep.subr.mxu0 0.0
  %58 = vmatpush1.msra.mxu0 0.0
  %59 = vmatprep.subr.mxu0 0.0
  %60 = vmatpush1.msra.mxu0 0.0
  %61 = vmatprep.subr.mxu0 0.0
  %62 = vmatpush1.msra.mxu0 0.0
  %63 = vmatprep.subr.mxu0 0.0
  %64 = vmatpush1.msra.mxu0 0.0
  %65 = vmatprep.subr.mxu0 0.0
  %66 = vmatpush1.msra.mxu0 0.0
  %67 = vmatprep.subr.mxu0 0.0
  %68 = vmatpush1.msra.mxu0 0.0
  %69 = vmatprep.subr.mxu0 0.0
  %70 = vmatpush1.msra.mxu0 0.0
  %71 = vmatprep.subr.mxu0 0.0
  %72 = vmatpush1.msra.mxu0 0.0
  %73 = vmatprep.subr.mxu0 0.0
  %74 = vmatpush1.msra.mxu0 0.0
  %75 = vmatprep.subr.mxu0 0.0
  %76 = vmatpush1.msra.mxu0 0.0
  %77 = vmatprep.subr.mxu0 0.0
  %78 = vmatpush1.msra.mxu0 0.0
  %79 = vmatprep.subr.mxu0 0.0
  %80 = vmatpush1.msra.mxu0 0.0
  %81 = vmatprep.subr.mxu0 0.0
  %82 = vmatpush1.msra.mxu0 0.0
  %83 = vmatprep.subr.mxu0 0.0
  %84 = vmatpush1.msra.mxu0 0.0
  %85 = vmatprep.subr.mxu0 0.0
  %86 = vmatpush1.msra.mxu0 0.0
  %87 = vmatprep.subr.mxu0 0.0
  %88 = vmatpush1.msra.mxu0 0.0
  %89 = vmatprep.subr.mxu0 0.0
  %90 = vmatpush1.msra.mxu0 0.0
  %91 = vmatprep.subr.mxu0 0.0
  %92 = vmatpush1.msra.mxu0 0.0
  %93 = vmatprep.subr.mxu0 0.0
  %94 = vmatpush1.msra.mxu0 0.0
  %95 = vmatprep.subr.mxu0 0.0
  %96 = vmatpush1.msra.mxu0 0.0
  %97 = vmatprep.subr.mxu0 0.0
  %98 = vmatpush1.msra.mxu0 0.0
  %99 = vmatprep.subr.mxu0 0.0
  %100 = vmatpush1.msra.mxu0 0.0
  %101 = vmatprep.subr.mxu0 0.0
  %102 = vmatpush1.msra.mxu0 0.0
  %103 = vmatprep.subr.mxu0 0.0
  %104 = vmatpush1.msra.mxu0 0.0
  %105 = vmatprep.subr.mxu0 0.0
  %106 = vmatpush1.msra.mxu0 0.0
  %107 = vmatprep.subr.mxu0 0.0
  %108 = vmatpush1.msra.mxu0 0.0
  %109 = vmatprep.mubr.f32.mxu0 0.0
  %110 = vmatmul.mubr.f32.gmra.mrb[0].mxu0 %v40
  %v111 = vpop.f32.mrb[0].mxu0
  %v112 = vadd.f32 0.0, %v111
  %v113 = vpop.f32.mrb[0].mxu0
  %114 = vmatprep.mubr.f32.mxu0 0.0
  %115 = vmatmul.mubr.f32.gmra.mrb[0].mxu0 %v43
  %v116 = vpop.f32.mrb[0].mxu0
  %v117 = vadd.f32 0.0, %v116
  %v118 = vpop.f32.mrb[0].mxu0
  %119 = vdwg.mxu0
  %v120 = vadd.f32 %v30, %v112
  %v121 = vadd.f32 %v31, %v117
  %122 = vst.msk [vmem:[#allocation2] sm:$0xff] %vm38, %v120
  %123 = vst.msk [vmem:[#allocation2 + $0x8] sm:$0xff] %vm38, %v121
  // Predicated region
  $region30: #{encoder_layer_forward.6} parent=0 // pred_check
    %p124 = pneg %p23
  $region31: #{encoder_layer_forward.6} parent=0 // pred_check_branch
    %126 = sbr.rel (%p124) target = $region33
  $region32: #{encoder_layer_forward.6} parent=0 // pred_region
    %v127 = vld [vmem:[#allocation2] sm:$0xff]
    %v128 = vld [vmem:[#allocation2 + $0x8] sm:$0xff]
    %v129 = vld [vmem:[%s3] sm:$0x1]
    %v131 = vlaneseq
    %v132 = vshrl.u32 %v131, 7
    %v133 = vsub.s32 0, %v132
    %v134 = vrot.slane %v129, %v133
    %v136 = vadd.f32 %v127, %v134
    %v137 = vadd.f32 %v128, %v134
    %v138 = vld [vmem:[%s0] sm:$0xff]
    %v139 = vld [vmem:[%s0 + $0x8] sm:$0xff]
    %v140 = vadd.f32 %v136, %v138
    %v141 = vadd.f32 %v137, %v139
    %v142 = vsel %vm38, %v140, 0.0
    %143 = vadd.xlane.f32.xlu0 %v142
    %v144 = vpop.xlane.xlu0 %143
    %v145 = vsel %vm38, %v141, 0.0
    %146 = vadd.xlane.f32.xlu0 %v145
    %v147 = vpop.xlane.xlu0 %146
    %v148 = vrcp.pop 32.0
    %v149 = vmul.f32 %v144, %v148
    %v150 = vmul.f32 %v147, %v148
    %v151 = vsub.f32 %v140, %v149
    %v152 = vsub.f32 %v141, %v150
    %v153 = vmul.f32 %v151, %v151
    %v154 = vmul.f32 %v152, %v152
    %v155 = vsel %vm38, %v153, 0.0
    %156 = vadd.xlane.f32.xlu0 %v155
    %v157 = vpop.xlane.xlu0 %156
    %v158 = vsel %vm38, %v154, 0.0
    %159 = vadd.xlane.f32.xlu0 %v158
    %v160 = vpop.xlane.xlu0 %159
    %v161 = vmul.f32 %v157, %v148
    %v162 = vmul.f32 %v160, %v148
    %v163 = vadd.f32 %v161, 1e-05
    %v164 = vadd.f32 %v162, 1e-05
    %v165 = vrsqrt.pop %v163
    %v166 = vrsqrt.pop %v164
    %v167 = vmul.f32 %v151, %v165
    %v168 = vmul.f32 %v152, %v166
    %v169 = vld [vmem:[%s4] sm:$0x1]
    %v171 = vlaneseq
    %v172 = vshrl.u32 %v171, 7
    %v173 = vsub.s32 0, %v172
    %v174 = vrot.slane %v169, %v173
    %v176 = vmul.f32 %v167, %v174
    %v177 = vmul.f32 %v168, %v174
    %v178 = vld [vmem:[%s5] sm:$0x1]
    %v180 = vlaneseq
    %v181 = vshrl.u32 %v180, 7
    %v182 = vsub.s32 0, %v181
    %v183 = vrot.slane %v178, %v182
    %v185 = vadd.f32 %v176, %v183
    %v186 = vadd.f32 %v177, %v183
    %187 = vst.msk [vmem:[%s6] sm:$0xff] %vm38, %v185
    %188 = vst.msk [vmem:[%s6 + $0x8] sm:$0xff] %vm38, %v186
  $region33: #{encoder_layer_forward.6} parent=0 // pred_fallthru
    _
  // Predicated region
  $region34: #{encoder_layer_forward.6} parent=0 // pred_check
    _
  $region35: #{encoder_layer_forward.6} parent=0 // pred_check_branch
    %190 = sbr.rel (0) target = $region37
  $region36: #{encoder_layer_forward.6} parent=0 // pred_region
    _
  $region37: #{encoder_layer_forward.6} parent=0 // pred_fallthru
    _
  // Predicated region
  $region38: #{encoder_layer_forward.6} parent=0 // pred_check
    _
  $region39: #{encoder_layer_forward.6} parent=0 // pred_check_branch
    %192 = sbr.rel (0) target = $region41
  $region40: #{encoder_layer_forward.6} parent=0 // pred_region
    _
  $region41: #{encoder_layer_forward.6} parent=0 // pred_fallthru
    _

// kernel: encoder_layer_forward.5
$region0: #{encoder_layer_forward.5}
  #allocation0 [shape = 'u32[]', space=smem, size = 0x4, offset = 0x4, fixed_abs, tag = 'smem constant byte address 0x4 - core index']
  #allocation1 [shape = 'u32[144,128]{1,0:T(1,128)}', space=vmem, size = 0x12000, scoped, tag = 'internal scratch']
  #allocation2 [shape = 'f32[4,8,1]{2,1,0:T(8,128)}', space=vmem, size = 0x4000, scoped, tag = 'scratch operand']
  #allocation3 [shape = 'f32[4,8,1]{2,1,0:T(8,128)}', space=vmem, size = 0x4000, scoped, tag = 'scratch operand']
  #allocation4 [shape = 'f32[4,8,8]{2,1,0:T(8,128)}', space=vmem, size = 0x4000, scoped, tag = 'scratch operand']
  %s0 = inlined_call_operand.vmem [shape: f32[2,8,32], index: 0, kind: input, shape index: {}]
  %s1 = inlined_call_operand.vmem [shape: f32[2,8,32], index: 1, kind: input, shape index: {}]
  %s2 = inlined_call_operand.vmem [shape: f32[2,8,32], index: 2, kind: input, shape index: {}]
  %s3 = inlined_call_operand.vmem [shape: f32[2,1,8], index: 3, kind: input, shape index: {}]
  %s4 = inlined_call_operand.vmem [shape: f32[2,8,32], index: 4, kind: output, shape index: {}]
  %s5 = sld [smem:[#allocation0]]
  $region61: #{encoder_layer_forward.5} parent=0
    _
  %s7 = ssub.s32 1, %s5
  %s8 = scalar_select 0, %s7, %s5
  loop: start=0, step=1, limit=8
  $region2: #{encoder_layer_forward.5} parent=0 // loop_pre_header
    _
  $region3: #{encoder_layer_forward.5} parent=0 // loop_header
    %s10 = sphi 0, %s14
    %p11 = scmp.ge.s32.totalorder %s10, 8
    %s17 = sphi 0, %s36
    %s18 = sphi 0, %s32
    %s19 = sphi 0, %s28
    %s20 = sphi 0, %s17
    %s21 = sphi 0, %s18
    %s22 = sphi 0, %s19
    %s23 = sphi 0, %s20
    %s24 = sphi 0, %s21
    %s25 = sphi 0, %s22
    %s41 = sphi 0, %s43
    %s44 = sphi 0, %s41
    %s45 = sphi 0, %s44
    %s61 = sphi 0, %s45
    %s81 = sphi 0, %s83
    %s84 = sphi 0, %s81
    %s85 = sphi 0, %s84
    %s101 = sphi 0, %s85
    %s121 = sphi 0, %s123
    %s124 = sphi 0, %s121
    %s125 = sphi 0, %s124
    %s141 = sphi 0, %s125
    %s161 = sphi 0, %s163
    %s164 = sphi 0, %s161
    %s165 = sphi 0, %s164
    %s181 = sphi 0, %s165
    %s189 = sphi 0, %s191
    %s192 = sphi 0, %s189
    %s193 = sphi 0, %s192
    %s209 = sphi 0, %s193
  $region4: #{encoder_layer_forward.5} parent=0 // loop_header_branch
    %13 = sbr.rel (%p11) target = $region8
  $region5: #{encoder_layer_forward.5} parent=0 // loop_body
    %s15 = ssub.s32 %s10, 1
    %s16 = ssub.s32 %s10, 2
    %s26 = sadd.s32 1, %s19
    %p27 = scmp.ge.s32.totalorder %s26, 3
    %s28 = scalar_select %p27, 0, %s26
    %s29 = sadd.s32 1, %s18
    %s30 = scalar_select %p27, %s29, %s18
    %p31 = scmp.ge.s32.totalorder %s30, 1
    %s32 = scalar_select %p31, 0, %s30
    %s33 = sadd.s32 1, %s17
    %s34 = scalar_select %p31, %s33, %s17
    %p35 = scmp.ge.s32.totalorder %s34, 2
    %s36 = scalar_select %p35, 0, %s34
    %s37 = ssub.s32 %s17, %s36
    %s38 = ssub.s32 %s18, %s32
    %s39 = sor.u32 %s37, %s38
    %p40 = scmp.eq.s32.totalorder %s39, 0
    %s42 = sadd.s32 %s41, 1
    %s43 = scalar_select %p40, %s41, %s42
    %p46 = pneg %p40
    %p47 = scmp.eq.s32.totalorder %s10, 5
    %p48 = por %p46, %p47
    %p49 = scmp.ne.s32.totalorder %s41, %s44
    %p50 = scmp.eq.s32.totalorder %s10, 0
    %p51 = por %p49, %p50
    %p52 = scmp.ne.s32.totalorder %s41, %s44
    %p53 = scmp.eq.s32.totalorder %s15, 5
    %p54 = por %p52, %p53
    %p55 = scmp.ne.s32.totalorder %s44, %s45
    %p56 = scmp.eq.s32.totalorder %s15, 0
    %p57 = por %p55, %p56
    %p58 = scmp.ne.s32.totalorder %s44, %s45
    %p59 = scmp.eq.s32.totalorder %s16, 5
    %p60 = por %p58, %p59
    %p62 = scmp.ne.s32.totalorder %s45, %s61
    %p63 = scmp.eq.s32.totalorder %s16, 0
    %p64 = por %p62, %p63
    %s65 = ssub.s32 %s18, 1
    %s66 = sadd.s32 %s65, %s19
    %p67 = scmp.gt.s32.totalorder %s66, 0
    %s68 = scalar_select %p67, %s66, 0
    %p69 = scmp.lt.s32.totalorder %s68, 0
    %s70 = scalar_select %p69, %s68, 0
    %s71 = ssub.s32 %s32, 1
    %s72 = sadd.s32 %s71, %s28
    %p73 = scmp.gt.s32.totalorder %s72, 0
    %s74 = scalar_select %p73, %s72, 0
    %p75 = scmp.lt.s32.totalorder %s74, 0
    %s76 = scalar_select %p75, %s74, 0
    %s77 = ssub.s32 %s17, %s36
    %s78 = ssub.s32 %s70, %s76
    %s79 = sor.u32 %s77, %s78
    %p80 = scmp.eq.s32.totalorder %s79, 0
    %s82 = sadd.s32 %s81, 1
    %s83 = scalar_select %p80, %s81, %s82
    %p86 = pneg %p80
    %p87 = scmp.eq.s32.totalorder %s10, 5
    %p88 = por %p86, %p87
    %p89 = scmp.ne.s32.totalorder %s81, %s84
    %p90 = scmp.eq.s32.totalorder %s10, 0
    %p91 = por %p89, %p90
    %p92 = scmp.ne.s32.totalorder %s81, %s84
    %p93 = scmp.eq.s32.totalorder %s15, 5
    %p94 = por %p92, %p93
    %p95 = scmp.ne.s32.totalorder %s84, %s85
    %p96 = scmp.eq.s32.totalorder %s15, 0
    %p97 = por %p95, %p96
    %p98 = scmp.ne.s32.totalorder %s84, %s85
    %p99 = scmp.eq.s32.totalorder %s16, 5
    %p100 = por %p98, %p99
    %p102 = scmp.ne.s32.totalorder %s85, %s101
    %p103 = scmp.eq.s32.totalorder %s16, 0
    %p104 = por %p102, %p103
    %s105 = ssub.s32 %s18, 1
    %s106 = sadd.s32 %s105, %s19
    %p107 = scmp.gt.s32.totalorder %s106, 0
    %s108 = scalar_select %p107, %s106, 0
    %p109 = scmp.lt.s32.totalorder %s108, 0
    %s110 = scalar_select %p109, %s108, 0
    %s111 = ssub.s32 %s32, 1
    %s112 = sadd.s32 %s111, %s28
    %p113 = scmp.gt.s32.totalorder %s112, 0
    %s114 = scalar_select %p113, %s112, 0
    %p115 = scmp.lt.s32.totalorder %s114, 0
    %s116 = scalar_select %p115, %s114, 0
    %s117 = ssub.s32 %s17, %s36
    %s118 = ssub.s32 %s110, %s116
    %s119 = sor.u32 %s117, %s118
    %p120 = scmp.eq.s32.totalorder %s119, 0
    %s122 = sadd.s32 %s121, 1
    %s123 = scalar_select %p120, %s121, %s122
    %p126 = pneg %p120
    %p127 = scmp.eq.s32.totalorder %s10, 5
    %p128 = por %p126, %p127
    %p129 = scmp.ne.s32.totalorder %s121, %s124
    %p130 = scmp.eq.s32.totalorder %s10, 0
    %p131 = por %p129, %p130
    %p132 = scmp.ne.s32.totalorder %s121, %s124
    %p133 = scmp.eq.s32.totalorder %s15, 5
    %p134 = por %p132, %p133
    %p135 = scmp.ne.s32.totalorder %s124, %s125
    %p136 = scmp.eq.s32.totalorder %s15, 0
    %p137 = por %p135, %p136
    %p138 = scmp.ne.s32.totalorder %s124, %s125
    %p139 = scmp.eq.s32.totalorder %s16, 5
    %p140 = por %p138, %p139
    %p142 = scmp.ne.s32.totalorder %s125, %s141
    %p143 = scmp.eq.s32.totalorder %s16, 0
    %p144 = por %p142, %p143
    %s145 = ssub.s32 %s18, 1
    %s146 = sadd.s32 %s145, %s19
    %p147 = scmp.gt.s32.totalorder %s146, 0
    %s148 = scalar_select %p147, %s146, 0
    %p149 = scmp.lt.s32.totalorder %s148, 0
    %s150 = scalar_select %p149, %s148, 0
    %s151 = ssub.s32 %s32, 1
    %s152 = sadd.s32 %s151, %s28
    %p153 = scmp.gt.s32.totalorder %s152, 0
    %s154 = scalar_select %p153, %s152, 0
    %p155 = scmp.lt.s32.totalorder %s154, 0
    %s156 = scalar_select %p155, %s154, 0
    %s157 = ssub.s32 %s17, %s36
    %s158 = ssub.s32 %s150, %s156
    %s159 = sor.u32 %s157, %s158
    %p160 = scmp.eq.s32.totalorder %s159, 0
    %s162 = sadd.s32 %s161, 1
    %s163 = scalar_select %p160, %s161, %s162
    %p166 = pneg %p160
    %p167 = scmp.eq.s32.totalorder %s10, 5
    %p168 = por %p166, %p167
    %p169 = scmp.ne.s32.totalorder %s161, %s164
    %p170 = scmp.eq.s32.totalorder %s10, 0
    %p171 = por %p169, %p170
    %p172 = scmp.ne.s32.totalorder %s161, %s164
    %p173 = scmp.eq.s32.totalorder %s15, 5
    %p174 = por %p172, %p173
    %p175 = scmp.ne.s32.totalorder %s164, %s165
    %p176 = scmp.eq.s32.totalorder %s15, 0
    %p177 = por %p175, %p176
    %p178 = scmp.ne.s32.totalorder %s164, %s165
    %p179 = scmp.eq.s32.totalorder %s16, 5
    %p180 = por %p178, %p179
    %p182 = scmp.ne.s32.totalorder %s165, %s181
    %p183 = scmp.eq.s32.totalorder %s16, 0
    %p184 = por %p182, %p183
    %s185 = ssub.s32 %s17, %s36
    %s186 = ssub.s32 %s18, %s32
    %s187 = sor.u32 %s185, %s186
    %p188 = scmp.eq.s32.totalorder %s187, 0
    %s190 = sadd.s32 %s189, 1
    %s191 = scalar_select %p188, %s189, %s190
    %p194 = pneg %p188
    %p195 = scmp.eq.s32.totalorder %s10, 5
    %p196 = por %p194, %p195
    %p197 = scmp.ne.s32.totalorder %s189, %s192
    %p198 = scmp.eq.s32.totalorder %s10, 0
    %p199 = por %p197, %p198
    %p200 = scmp.ne.s32.totalorder %s189, %s192
    %p201 = scmp.eq.s32.totalorder %s15, 5
    %p202 = por %p200, %p201
    %p203 = scmp.ne.s32.totalorder %s192, %s193
    %p204 = scmp.eq.s32.totalorder %s15, 0
    %p205 = por %p203, %p204
    %p206 = scmp.ne.s32.totalorder %s192, %s193
    %p207 = scmp.eq.s32.totalorder %s16, 5
    %p208 = por %p206, %p207
    %p210 = scmp.ne.s32.totalorder %s193, %s209
    %p211 = scmp.eq.s32.totalorder %s16, 0
    %p212 = por %p210, %p211
    %p213 = scmp.le.s32.totalorder 1, %s10
    %p214 = scmp.lt.s32.totalorder %s10, 7
    %p215 = pnand %p213, %p214
    %p216 = pneg %p215
    // Predicated region
    $region9: #{encoder_layer_forward.5} parent=5 // pred_check
      _
    $region10: #{encoder_layer_forward.5} parent=5 // pred_check_branch
      %218 = sbr.rel (%p215) target = $region12
    $region11: #{encoder_layer_forward.5} parent=5 // pred_region
      %s219 = ssub.s32 %s10, 1
    $region12: #{encoder_layer_forward.5} parent=5 // pred_fallthru
      _
    %p220 = scmp.lt.s32.totalorder %s10, 6
    // Predicated region
    $region13: #{encoder_layer_forward.5} parent=5 // pred_check
      %p221 = pneg %p220
    $region14: #{encoder_layer_forward.5} parent=5 // pred_check_branch
      %223 = sbr.rel (%p221) target = $region16
    $region15: #{encoder_layer_forward.5} parent=5 // pred_region
      // Predicated region
      $region17: #{encoder_layer_forward.5} parent=15 // pred_check
        %p224 = pneg %p51
      $region18: #{encoder_layer_forward.5} parent=15 // pred_check_branch
        %226 = sbr.rel (%p224) target = $region20
      $region19: #{encoder_layer_forward.5} parent=15 // pred_region
        %p227 = scmp.lt.s32.totalorder %s17, 1
        %s228 = scalar_select %p227, %s17, 1
        %p229 = scmp.lt.s32.totalorder %s18, 0
        %s230 = scalar_select %p229, %s18, 0
        %s231 = sadd.s32 %s230, %s228
        %s232 = smul.addr %s231, 8
        %s233 = scalar_lea.vmem %s0, %s232
      $region20: #{encoder_layer_forward.5} parent=15 // pred_fallthru
        _
      // Predicated region
      $region21: #{encoder_layer_forward.5} parent=15 // pred_check
        %p234 = pneg %p91
      $region22: #{encoder_layer_forward.5} parent=15 // pred_check_branch
        %236 = sbr.rel (%p234) target = $region24
      $region23: #{encoder_layer_forward.5} parent=15 // pred_region
        %s237 = ssub.s32 %s18, 1
        %s238 = sadd.s32 %s237, %s19
        %p239 = scmp.gt.s32.totalorder %s238, 0
        %s240 = scalar_select %p239, %s238, 0
        %p241 = scmp.lt.s32.totalorder %s240, 0
        %s242 = scalar_select %p241, %s240, 0
        %p243 = scmp.lt.s32.totalorder %s17, 1
        %s244 = scalar_select %p243, %s17, 1
        %p245 = scmp.lt.s32.totalorder %s242, 0
        %s246 = scalar_select %p245, %s242, 0
        %s247 = sadd.s32 %s246, %s244
        %s248 = smul.addr %s247, 8
        %s249 = scalar_lea.vmem %s1, %s248
        %s250 = ssub.s32 %s18, 1
        %s251 = sadd.s32 %s250, %s19
        %p252 = scmp.gt.s32.totalorder %s251, 0
        %s253 = scalar_select %p252, %s251, 0
        %p254 = scmp.lt.s32.totalorder %s253, 0
        %s255 = scalar_select %p254, %s253, 0
      $region24: #{encoder_layer_forward.5} parent=15 // pred_fallthru
        _
      // Predicated region
      $region25: #{encoder_layer_forward.5} parent=15 // pred_check
        %p256 = pneg %p131
      $region26: #{encoder_layer_forward.5} parent=15 // pred_check_branch
        %258 = sbr.rel (%p256) target = $region28
      $region27: #{encoder_layer_forward.5} parent=15 // pred_region
        %s259 = ssub.s32 %s18, 1
        %s260 = sadd.s32 %s259, %s19
        %p261 = scmp.gt.s32.totalorder %s260, 0
        %s262 = scalar_select %p261, %s260, 0
        %p263 = scmp.lt.s32.totalorder %s262, 0
        %s264 = scalar_select %p263, %s262, 0
        %p265 = scmp.lt.s32.totalorder %s17, 1
        %s266 = scalar_select %p265, %s17, 1
        %p267 = scmp.lt.s32.totalorder %s264, 0
        %s268 = scalar_select %p267, %s264, 0
        %s269 = sadd.s32 %s268, %s266
        %s270 = smul.addr %s269, 8
        %s271 = scalar_lea.vmem %s2, %s270
        %s272 = ssub.s32 %s18, 1
        %s273 = sadd.s32 %s272, %s19
        %p274 = scmp.gt.s32.totalorder %s273, 0
        %s275 = scalar_select %p274, %s273, 0
        %p276 = scmp.lt.s32.totalorder %s275, 0
        %s277 = scalar_select %p276, %s275, 0
      $region28: #{encoder_layer_forward.5} parent=15 // pred_fallthru
        _
      // Predicated region
      $region29: #{encoder_layer_forward.5} parent=15 // pred_check
        %p278 = pneg %p171
      $region30: #{encoder_layer_forward.5} parent=15 // pred_check_branch
        %280 = sbr.rel (%p278) target = $region32
      $region31: #{encoder_layer_forward.5} parent=15 // pred_region
        %s281 = ssub.s32 %s18, 1
        %s282 = sadd.s32 %s281, %s19
        %p283 = scmp.gt.s32.totalorder %s282, 0
        %s284 = scalar_select %p283, %s282, 0
        %p285 = scmp.lt.s32.totalorder %s284, 0
        %s286 = scalar_select %p285, %s284, 0
        %p287 = scmp.lt.s32.totalorder %s17, 1
        %s288 = scalar_select %p287, %s17, 1
        %p289 = scmp.lt.s32.totalorder %s286, 0
        %s290 = scalar_select %p289, %s286, 0
        %s291 = sadd.s32 %s290, %s288
        %s292 = scalar_lea.vmem %s3, %s291
        %s293 = ssub.s32 %s18, 1
        %s294 = sadd.s32 %s293, %s19
        %p295 = scmp.gt.s32.totalorder %s294, 0
        %s296 = scalar_select %p295, %s294, 0
        %p297 = scmp.lt.s32.totalorder %s296, 0
        %s298 = scalar_select %p297, %s296, 0
      $region32: #{encoder_layer_forward.5} parent=15 // pred_fallthru
        _
    $region16: #{encoder_layer_forward.5} parent=5 // pred_fallthru
      _
    %p299 = scmp.le.s32.totalorder 1, %s10
    %p300 = scmp.lt.s32.totalorder %s10, 7
    %p301 = pnand %p299, %p300
    %p302 = pneg %p301
    // Predicated region
    $region33: #{encoder_layer_forward.5} parent=5 // pred_check
      _
    $region34: #{encoder_layer_forward.5} parent=5 // pred_check_branch
      %304 = sbr.rel (%p301) target = $region36
    $region35: #{encoder_layer_forward.5} parent=5 // pred_region
      %s305 = ssub.s32 %s10, 1
      %p306 = scmp.lt.s32.totalorder %s20, 1
      %s307 = scalar_select %p306, %s20, 1
      %p308 = scmp.lt.s32.totalorder %s21, 0
      %s309 = scalar_select %p308, %s21, 0
      %s310 = sadd.s32 %s309, %s307
      %s311 = smul.addr %s310, 8
      %s312 = scalar_lea.vmem %s0, %s311
      %p313 = pneg %p57
      %p314 = pneg %p54
      %s315 = ssub.s32 %s21, 1
      %s316 = sadd.s32 %s315, %s22
      %p317 = scmp.gt.s32.totalorder %s316, 0
      %s318 = scalar_select %p317, %s316, 0
      %p319 = scmp.lt.s32.totalorder %s318, 0
      %s320 = scalar_select %p319, %s318, 0
      %p321 = scmp.lt.s32.totalorder %s20, 1
      %s322 = scalar_select %p321, %s20, 1
      %p323 = scmp.lt.s32.totalorder %s320, 0
      %s324 = scalar_select %p323, %s320, 0
      %s325 = sadd.s32 %s324, %s322
      %s326 = smul.addr %s325, 8
      %s327 = scalar_lea.vmem %s1, %s326
      %p328 = pneg %p97
      %p329 = pneg %p94
      %s330 = ssub.s32 %s21, 1
      %s331 = sadd.s32 %s330, %s22
      %p332 = scmp.gt.s32.totalorder %s331, 0
      %s333 = scalar_select %p332, %s331, 0
      %p334 = scmp.lt.s32.totalorder %s333, 0
      %s335 = scalar_select %p334, %s333, 0
      %p336 = scmp.lt.s32.totalorder %s20, 1
      %s337 = scalar_select %p336, %s20, 1
      %p338 = scmp.lt.s32.totalorder %s335, 0
      %s339 = scalar_select %p338, %s335, 0
      %s340 = sadd.s32 %s339, %s337
      %s341 = smul.addr %s340, 8
      %s342 = scalar_lea.vmem %s2, %s341
      %p343 = pneg %p137
      %p344 = pneg %p134
      %s345 = ssub.s32 %s21, 1
      %s346 = sadd.s32 %s345, %s22
      %p347 = scmp.gt.s32.totalorder %s346, 0
      %s348 = scalar_select %p347, %s346, 0
      %p349 = scmp.lt.s32.totalorder %s348, 0
      %s350 = scalar_select %p349, %s348, 0
      %p351 = scmp.lt.s32.totalorder %s20, 1
      %s352 = scalar_select %p351, %s20, 1
      %p353 = scmp.lt.s32.totalorder %s350, 0
      %s354 = scalar_select %p353, %s350, 0
      %s355 = sadd.s32 %s354, %s352
      %s356 = scalar_lea.vmem %s3, %s355
      %p357 = pneg %p177
      %p358 = pneg %p174
      %p359 = pneg %p205
      %p360 = pneg %p202
      %p361 = scmp.lt.s32.totalorder %s20, 1
      %s362 = scalar_select %p361, %s20, 1
      %p363 = scmp.lt.s32.totalorder %s21, 0
      %s364 = scalar_select %p363, %s21, 0
      %s365 = sadd.s32 %s364, %s362
      %s366 = smul.addr %s365, 8
      %s367 = scalar_lea.vmem %s4, %s366
      %p368 = scmp.lt.s32.totalorder %s20, 1
      %s369 = scalar_select %p368, %s20, 1
      %p370 = scmp.lt.s32.totalorder %s21, 0
      %s371 = scalar_select %p370, %s21, 0
      %s372 = sadd.s32 %s371, %s369
      %s373 = smul.addr %s372, 8
      %s374 = scalar_lea.vmem %s0, %s373
      %s375 = ssub.s32 %s21, 1
      %s376 = sadd.s32 %s375, %s22
      %p377 = scmp.gt.s32.totalorder %s376, 0
      %s378 = scalar_select %p377, %s376, 0
      %p379 = scmp.lt.s32.totalorder %s378, 0
      %s380 = scalar_select %p379, %s378, 0
      %p381 = scmp.lt.s32.totalorder %s20, 1
      %s382 = scalar_select %p381, %s20, 1
      %p383 = scmp.lt.s32.totalorder %s380, 0
      %s384 = scalar_select %p383, %s380, 0
      %s385 = sadd.s32 %s384, %s382
      %s386 = smul.addr %s385, 8
      %s387 = scalar_lea.vmem %s1, %s386
      %s388 = ssub.s32 %s21, 1
      %s389 = sadd.s32 %s388, %s22
      %p390 = scmp.gt.s32.totalorder %s389, 0
      %s391 = scalar_select %p390, %s389, 0
      %p392 = scmp.lt.s32.totalorder %s391, 0
      %s393 = scalar_select %p392, %s391, 0
      %s394 = ssub.s32 %s21, 1
      %s395 = sadd.s32 %s394, %s22
      %p396 = scmp.gt.s32.totalorder %s395, 0
      %s397 = scalar_select %p396, %s395, 0
      %p398 = scmp.lt.s32.totalorder %s397, 0
      %s399 = scalar_select %p398, %s397, 0
      %p400 = scmp.lt.s32.totalorder %s20, 1
      %s401 = scalar_select %p400, %s20, 1
      %p402 = scmp.lt.s32.totalorder %s399, 0
      %s403 = scalar_select %p402, %s399, 0
      %s404 = sadd.s32 %s403, %s401
      %s405 = smul.addr %s404, 8
      %s406 = scalar_lea.vmem %s2, %s405
      %s407 = ssub.s32 %s21, 1
      %s408 = sadd.s32 %s407, %s22
      %p409 = scmp.gt.s32.totalorder %s408, 0
      %s410 = scalar_select %p409, %s408, 0
      %p411 = scmp.lt.s32.totalorder %s410, 0
      %s412 = scalar_select %p411, %s410, 0
      %s413 = ssub.s32 %s21, 1
      %s414 = sadd.s32 %s413, %s22
      %p415 = scmp.gt.s32.totalorder %s414, 0
      %s416 = scalar_select %p415, %s414, 0
      %p417 = scmp.lt.s32.totalorder %s416, 0
      %s418 = scalar_select %p417, %s416, 0
      %p419 = scmp.lt.s32.totalorder %s20, 1
      %s420 = scalar_select %p419, %s20, 1
      %p421 = scmp.lt.s32.totalorder %s418, 0
      %s422 = scalar_select %p421, %s418, 0
      %s423 = sadd.s32 %s422, %s420
      %s424 = scalar_lea.vmem %s3, %s423
      %s425 = ssub.s32 %s21, 1
      %s426 = sadd.s32 %s425, %s22
      %p427 = scmp.gt.s32.totalorder %s426, 0
      %s428 = scalar_select %p427, %s426, 0
      %p429 = scmp.lt.s32.totalorder %s428, 0
      %s430 = scalar_select %p429, %s428, 0
      %p431 = scmp.lt.s32.totalorder %s20, 1
      %s432 = scalar_select %p431, %s20, 1
      %p433 = scmp.lt.s32.totalorder %s21, 0
      %s434 = scalar_select %p433, %s21, 0
      %s435 = sadd.s32 %s434, %s432
      %s436 = smul.addr %s435, 8
      %s437 = scalar_lea.vmem %s4, %s436
      %p438 = scmp.eq.s32.totalorder %s22, 0
      // Predicated region
      $region37: #{encoder_layer_forward.5} parent=35 // pred_check
        %p439 = pneg %p438
      $region38: #{encoder_layer_forward.5} parent=35 // pred_check_branch
        %441 = sbr.rel (%p439) target = $region40
      $region39: #{encoder_layer_forward.5} parent=35 // pred_region
        %vm442 = vcmask 7168
        %443 = vst.msk [vmem:[#allocation2] sm:$0xff] %vm442, -inf
        %444 = vst.msk [vmem:[#allocation2 + $0x8] sm:$0xff] %vm442, -inf
        %445 = vst.msk [vmem:[#allocation2 + $0x10] sm:$0xff] %vm442, -inf
        %446 = vst.msk [vmem:[#allocation2 + $0x18] sm:$0xff] %vm442, -inf
        %447 = vst.msk [vmem:[#allocation3] sm:$0xff] %vm442, 0.0
        %448 = vst.msk [vmem:[#allocation3 + $0x8] sm:$0xff] %vm442, 0.0
        %449 = vst.msk [vmem:[#allocation3 + $0x10] sm:$0xff] %vm442, 0.0
        %450 = vst.msk [vmem:[#allocation3 + $0x18] sm:$0xff] %vm442, 0.0
        %vm451 = vcmask 64512
        %452 = vst.msk [vmem:[#allocation4] sm:$0xff] %vm451, 0.0
        %453 = vst.msk [vmem:[#allocation4 + $0x8] sm:$0xff] %vm451, 0.0
        %454 = vst.msk [vmem:[#allocation4 + $0x10] sm:$0xff] %vm451, 0.0
        %455 = vst.msk [vmem:[#allocation4 + $0x18] sm:$0xff] %vm451, 0.0
      $region40: #{encoder_layer_forward.5} parent=35 // pred_fallthru
        _
      %s456 = ssub.s32 %s21, 1
      %s457 = sadd.s32 %s456, %s22
      %p458 = scmp.ge.s32.totalorder %s457, 0
      %p459 = scmp.lt.s32.totalorder %s457, 1
      %p460 = pnand %p458, %p459
      %p461 = pneg %p460
      // Predicated region
      $region41: #{encoder_layer_forward.5} parent=35 // pred_check
        _
      $region42: #{encoder_layer_forward.5} parent=35 // pred_check_branch
        %463 = sbr.rel (%p460) target = $region44
      $region43: #{encoder_layer_forward.5} parent=35 // pred_region
        %v464 = vld [vmem:[%s374] sm:$0xff]
        %v465 = vmul.f32 %v464, 0.35355338
        %v466 = vld [vmem:[%s387] sm:$0xff]
        %v467 = vld [vmem:[%s406] sm:$0xff]
        %s468 = smul.u32 %s21, 8
        %v469 = vlaneseq
        %v470 = vshrl.u32 %v469, 7
        %v471 = vstv %s468
        %v472 = vadd.s32 %v471, %v470
        %s473 = smul.u32 %s457, 8
        %v474 = vlaneseq
        %v475 = vand.u32 %v474, 127
        %v476 = vstv %s473
        %v477 = vadd.s32 %v476, %v475
        %v478 = vsub.s32 %v472, %v477
        %vm479 = vcmp.lt.s32.totalorder %v478, 0
        %v480 = vsub.s32 0, %v478
        %v481 = vsel %vm479, %v480, %v478
        %vm482 = vcmp.le.s32.totalorder %v481, 2
        %v483 = vld [vmem:[%s424] sm:$0x1]
        %vm484 = vcmp.gt.f32.partialorder %v483, 0.5
        %v485 = vsel %vm484, 1, 0
        %v486 = vlaneseq
        %v487 = vshrl.u32 %v486, 7
        %v488 = vsub.s32 0, %v487
        %v489 = vrot.slane %v485, %v488
        %vm490 = vcmp.eq.s32.totalorder %v489, 1
        %vm491 = vmand %vm482, %vm490
        %vm492 = vcmask 64512
        %v494 = vsel %vm492, %v465, 0
        %v497 = vsel %vm492, %v466, 0
        %499 = vmatprep.subr.mxu0 0.0
        %500 = vmatpush1.xpose.msra.mxu0 %v497
        %501 = vmatprep.subr.mxu0 0.0
        %502 = vmatpush1.xpose.msra.mxu0 0.0
        %503 = vmatprep.subr.mxu0 0.0
        %504 = vmatpush1.xpose.msra.mxu0 0.0
        %505 = vmatprep.subr.mxu0 0.0
        %506 = vmatpush1.xpose.msra.mxu0 0.0
        %507 = vmatprep.subr.mxu0 0.0
        %508 = vmatpush1.xpose.msra.mxu0 0.0
        %509 = vmatprep.subr.mxu0 0.0
        %510 = vmatpush1.xpose.msra.mxu0 0.0
        %511 = vmatprep.subr.mxu0 0.0
        %512 = vmatpush1.xpose.msra.mxu0 0.0
        %513 = vmatprep.subr.mxu0 0.0
        %514 = vmatpush1.xpose.msra.mxu0 0.0
        %515 = vmatprep.subr.mxu0 0.0
        %516 = vmatpush1.xpose.msra.mxu0 0.0
        %517 = vmatprep.subr.mxu0 0.0
        %518 = vmatpush1.xpose.msra.mxu0 0.0
        %519 = vmatprep.subr.mxu0 0.0
        %520 = vmatpush1.xpose.msra.mxu0 0.0
        %521 = vmatprep.subr.mxu0 0.0
        %522 = vmatpush1.xpose.msra.mxu0 0.0
        %523 = vmatprep.subr.mxu0 0.0
        %524 = vmatpush1.xpose.msra.mxu0 0.0
        %525 = vmatprep.subr.mxu0 0.0
        %526 = vmatpush1.xpose.msra.mxu0 0.0
        %527 = vmatprep.subr.mxu0 0.0
        %528 = vmatpush1.xpose.msra.mxu0 0.0
        %529 = vmatprep.subr.mxu0 0.0
        %530 = vmatpush1.xpose.msra.mxu0 0.0
        %531 = vmatprep.subr.mxu0 0.0
        %532 = vmatpush1.xpose.msra.mxu0 0.0
        %533 = vmatprep.subr.mxu0 0.0
        %534 = vmatpush1.xpose.msra.mxu0 0.0
        %535 = vmatprep.subr.mxu0 0.0
        %536 = vmatpush1.xpose.msra.mxu0 0.0
        %537 = vmatprep.subr.mxu0 0.0
        %538 = vmatpush1.xpose.msra.mxu0 0.0
        %539 = vmatprep.subr.mxu0 0.0
        %540 = vmatpush1.xpose.msra.mxu0 0.0
        %541 = vmatprep.subr.mxu0 0.0
        %542 = vmatpush1.xpose.msra.mxu0 0.0
        %543 = vmatprep.subr.mxu0 0.0
        %544 = vmatpush1.xpose.msra.mxu0 0.0
        %545 = vmatprep.subr.mxu0 0.0
        %546 = vmatpush1.xpose.msra.mxu0 0.0
        %547 = vmatprep.subr.mxu0 0.0
        %548 = vmatpush1.xpose.msra.mxu0 0.0
        %549 = vmatprep.subr.mxu0 0.0
        %550 = vmatpush1.xpose.msra.mxu0 0.0
        %551 = vmatprep.subr.mxu0 0.0
        %552 = vmatpush1.xpose.msra.mxu0 0.0
        %553 = vmatprep.subr.mxu0 0.0
        %554 = vmatpush1.xpose.msra.mxu0 0.0
        %555 = vmatprep.subr.mxu0 0.0
        %556 = vmatpush1.xpose.msra.mxu0 0.0
        %557 = vmatprep.subr.mxu0 0.0
        %558 = vmatpush1.xpose.msra.mxu0 0.0
        %559 = vmatprep.subr.mxu0 0.0
        %560 = vmatpush1.xpose.msra.mxu0 0.0
        %561 = vmatprep.subr.mxu0 0.0
        %562 = vmatpush1.xpose.msra.mxu0 0.0
        %563 = vmatprep.mubr.f32.mxu0 0.0
        %564 = vmatmul.mubr.f32.gmra.mrb[0].mxu0 %v494
        %v565 = vpop.f32.mrb[0].mxu0
        %v566 = vadd.f32 0.0, %v565
        %v567 = vpop.f32.mrb[0].mxu0
        %568 = vdwg.mxu0
        %v569 = vsel %vm491, %v566, -9e+15
        %v570 = vld [vmem:[#allocation2] sm:$0xff]
        %v571 = vsel %vm492, %v569, -inf
        %572 = vmax.xlane.f32.xlu0 %v571
        %v573 = vpop.xlane.xlu0 %572
        %v574 = vmax.f32 %v570, %v573
        %v575 = vsub.f32 %v570, %v574
        %v576 = vmul.f32 %v575, 1.442695
        %v577 = vpow.pop %v576
        %579 = vset.pattern.permute.xlu0 0
        %580 = vperm.xlu0 %579, %v574
        %v581 = vpop.permute.xlu0 %580
        %v583 = vsub.f32 %v569, %v581
        %v584 = vmul.f32 %v583, 1.442695
        %v585 = vpow.pop %v584
        %v586 = vld [vmem:[#allocation3] sm:$0xff]
        %v587 = vmul.f32 %v577, %v586
        %v588 = vsel %vm492, %v585, 0.0
        %589 = vadd.xlane.f32.xlu0 %v588
        %v590 = vpop.xlane.xlu0 %589
        %v591 = vadd.f32 %v587, %v590
        %vm592 = vcmask 7168
        %593 = vst.msk [vmem:[#allocation3] sm:$0xff] %vm592, %v591
        %v594 = vsel %vm491, %v585, 0.0
        %v595 = vld [vmem:[#allocation4] sm:$0xff]
        %597 = vset.pattern.permute.xlu0 0
        %598 = vperm.xlu0 %597, %v577
        %v599 = vpop.permute.xlu0 %598
        %v601 = vmul.f32 %v599, %v595
        %v603 = vsel %vm492, %v594, 0
        %605 = vmatprep.subr.mxu0 0.0
        %606 = vmatpush1.msra.mxu0 %v467
        %607 = vmatprep.subr.mxu0 0.0
        %608 = vmatpush1.msra.mxu0 0.0
        %609 = vmatprep.subr.mxu0 0.0
        %610 = vmatpush1.msra.mxu0 0.0
        %611 = vmatprep.subr.mxu0 0.0
        %612 = vmatpush1.msra.mxu0 0.0
        %613 = vmatprep.subr.mxu0 0.0
        %614 = vmatpush1.msra.mxu0 0.0
        %615 = vmatprep.subr.mxu0 0.0
        %616 = vmatpush1.msra.mxu0 0.0
        %617 = vmatprep.subr.mxu0 0.0
        %618 = vmatpush1.msra.mxu0 0.0
        %619 = vmatprep.subr.mxu0 0.0
        %620 = vmatpush1.msra.mxu0 0.0
        %621 = vmatprep.subr.mxu0 0.0
        %622 = vmatpush1.msra.mxu0 0.0
        %623 = vmatprep.subr.mxu0 0.0
        %624 = vmatpush1.msra.mxu0 0.0
        %625 = vmatprep.subr.mxu0 0.0
        %626 = vmatpush1.msra.mxu0 0.0
        %627 = vmatprep.subr.mxu0 0.0
        %628 = vmatpush1.msra.mxu0 0.0
        %629 = vmatprep.subr.mxu0 0.0
        %630 = vmatpush1.msra.mxu0 0.0
        %631 = vmatprep.subr.mxu0 0.0
        %632 = vmatpush1.msra.mxu0 0.0
        %633 = vmatprep.subr.mxu0 0.0
        %634 = vmatpush1.msra.mxu0 0.0
        %635 = vmatprep.subr.mxu0 0.0
        %636 = vmatpush1.msra.mxu0 0.0
        %637 = vmatprep.subr.mxu0 0.0
        %638 = vmatpush1.msra.mxu0 0.0
        %639 = vmatprep.subr.mxu0 0.0
        %640 = vmatpush1.msra.mxu0 0.0
        %641 = vmatprep.subr.mxu0 0.0
        %642 = vmatpush1.msra.mxu0 0.0
        %643 = vmatprep.subr.mxu0 0.0
        %644 = vmatpush1.msra.mxu0 0.0
        %645 = vmatprep.subr.mxu0 0.0
        %646 = vmatpush1.msra.mxu0 0.0
        %647 = vmatprep.subr.mxu0 0.0
        %648 = vmatpush1.msra.mxu0 0.0
        %649 = vmatprep.subr.mxu0 0.0
        %650 = vmatpush1.msra.mxu0 0.0
        %651 = vmatprep.subr.mxu0 0.0
        %652 = vmatpush1.msra.mxu0 0.0
        %653 = vmatprep.subr.mxu0 0.0
        %654 = vmatpush1.msra.mxu0 0.0
        %655 = vmatprep.subr.mxu0 0.0
        %656 = vmatpush1.msra.mxu0 0.0
        %657 = vmatprep.subr.mxu0 0.0
        %658 = vmatpush1.msra.mxu0 0.0
        %659 = vmatprep.subr.mxu0 0.0
        %660 = vmatpush1.msra.mxu0 0.0
        %661 = vmatprep.subr.mxu0 0.0
        %662 = vmatpush1.msra.mxu0 0.0
        %663 = vmatprep.subr.mxu0 0.0
        %664 = vmatpush1.msra.mxu0 0.0
        %665 = vmatprep.subr.mxu0 0.0
        %666 = vmatpush1.msra.mxu0 0.0
        %667 = vmatprep.subr.mxu0 0.0
        %668 = vmatpush1.msra.mxu0 0.0
        %669 = vmatprep.mubr.f32.mxu0 0.0
        %670 = vmatmul.mubr.f32.gmra.mrb[0].mxu0 %v603
        %v671 = vpop.f32.mrb[0].mxu0
        %v672 = vadd.f32 0.0, %v671
        %v673 = vpop.f32.mrb[0].mxu0
        %674 = vdwg.mxu0
        %v675 = vadd.f32 %v601, %v672
        %676 = vst.msk [vmem:[#allocation4] sm:$0xff] %vm492, %v675
        %677 = vst.msk [vmem:[#allocation2] sm:$0xff] %vm592, %v574
        %678 = vrot.lane.b32.xlu0 %v465, 120
        %v679 = vpop.permute.xlu0 %678
        %680 = vrot.lane.b32.xlu0 %v466, 120
        %v681 = vpop.permute.xlu0 %680
        %v682 = vsel %vm492, %v679, 0
        %v684 = vsel %vm492, %v681, 0
        %686 = vmatprep.subr.mxu0 0.0
        %687 = vmatpush1.xpose.msra.mxu0 %v684
        %688 = vmatprep.subr.mxu0 0.0
        %689 = vmatpush1.xpose.msra.mxu0 0.0
        %690 = vmatprep.subr.mxu0 0.0
        %691 = vmatpush1.xpose.msra.mxu0 0.0
        %692 = vmatprep.subr.mxu0 0.0
        %693 = vmatpush1.xpose.msra.mxu0 0.0
        %694 = vmatprep.subr.mxu0 0.0
        %695 = vmatpush1.xpose.msra.mxu0 0.0
        %696 = vmatprep.subr.mxu0 0.0
        %697 = vmatpush1.xpose.msra.mxu0 0.0
        %698 = vmatprep.subr.mxu0 0.0
        %699 = vmatpush1.xpose.msra.mxu0 0.0
        %700 = vmatprep.subr.mxu0 0.0
        %701 = vmatpush1.xpose.msra.mxu0 0.0
        %702 = vmatprep.subr.mxu0 0.0
        %703 = vmatpush1.xpose.msra.mxu0 0.0
        %704 = vmatprep.subr.mxu0 0.0
        %705 = vmatpush1.xpose.msra.mxu0 0.0
        %706 = vmatprep.subr.mxu0 0.0
        %707 = vmatpush1.xpose.msra.mxu0 0.0
        %708 = vmatprep.subr.mxu0 0.0
        %709 = vmatpush1.xpose.msra.mxu0 0.0
        %710 = vmatprep.subr.mxu0 0.0
        %711 = vmatpush1.xpose.msra.mxu0 0.0
        %712 = vmatprep.subr.mxu0 0.0
        %713 = vmatpush1.xpose.msra.mxu0 0.0
        %714 = vmatprep.subr.mxu0 0.0
        %715 = vmatpush1.xpose.msra.mxu0 0.0
        %716 = vmatprep.subr.mxu0 0.0
        %717 = vmatpush1.xpose.msra.mxu0 0.0
        %718 = vmatprep.subr.mxu0 0.0
        %719 = vmatpush1.xpose.msra.mxu0 0.0
        %720 = vmatprep.subr.mxu0 0.0
        %721 = vmatpush1.xpose.msra.mxu0 0.0
        %722 = vmatprep.subr.mxu0 0.0
        %723 = vmatpush1.xpose.msra.mxu0 0.0
        %724 = vmatprep.subr.mxu0 0.0
        %725 = vmatpush1.xpose.msra.mxu0 0.0
        %726 = vmatprep.subr.mxu0 0.0
        %727 = vmatpush1.xpose.msra.mxu0 0.0
        %728 = vmatprep.subr.mxu0 0.0
        %729 = vmatpush1.xpose.msra.mxu0 0.0
        %730 = vmatprep.subr.mxu0 0.0
        %731 = vmatpush1.xpose.msra.mxu0 0.0
        %732 = vmatprep.subr.mxu0 0.0
        %733 = vmatpush1.xpose.msra.mxu0 0.0
        %734 = vmatprep.subr.mxu0 0.0
        %735 = vmatpush1.xpose.msra.mxu0 0.0
        %736 = vmatprep.subr.mxu0 0.0
        %737 = vmatpush1.xpose.msra.mxu0 0.0
        %738 = vmatprep.subr.mxu0 0.0
        %739 = vmatpush1.xpose.msra.mxu0 0.0
        %740 = vmatprep.subr.mxu0 0.0
        %741 = vmatpush1.xpose.msra.mxu0 0.0
        %742 = vmatprep.subr.mxu0 0.0
        %743 = vmatpush1.xpose.msra.mxu0 0.0
        %744 = vmatprep.subr.mxu0 0.0
        %745 = vmatpush1.xpose.msra.mxu0 0.0
        %746 = vmatprep.subr.mxu0 0.0
        %747 = vmatpush1.xpose.msra.mxu0 0.0
        %748 = vmatprep.subr.mxu0 0.0
        %749 = vmatpush1.xpose.msra.mxu0 0.0
        %750 = vmatprep.mubr.f32.mxu0 0.0
        %751 = vmatmul.mubr.f32.gmra.mrb[0].mxu0 %v682
        %v752 = vpop.f32.mrb[0].mxu0
        %v753 = vadd.f32 0.0, %v752
        %v754 = vpop.f32.mrb[0].mxu0
        %755 = vdwg.mxu0
        %v756 = vsel %vm491, %v753, -9e+15
        %s757 = scalar_lea.vmem [#allocation2], 8
        %v758 = vld [vmem:[%s757] sm:$0xff]
        %v759 = vsel %vm492, %v756, -inf
        %760 = vmax.xlane.f32.xlu0 %v759
        %v761 = vpop.xlane.xlu0 %760
        %v762 = vmax.f32 %v758, %v761
        %v763 = vsub.f32 %v758, %v762
        %v764 = vmul.f32 %v763, 1.442695
        %v765 = vpow.pop %v764
        %767 = vset.pattern.permute.xlu0 0
        %768 = vperm.xlu0 %767, %v762
        %v769 = vpop.permute.xlu0 %768
        %v771 = vsub.f32 %v756, %v769
        %v772 = vmul.f32 %v771, 1.442695
        %v773 = vpow.pop %v772
        %s774 = scalar_lea.vmem [#allocation3], 8
        %v775 = vld [vmem:[%s774] sm:$0xff]
        %v776 = vmul.f32 %v765, %v775
        %v777 = vsel %vm492, %v773, 0.0
        %778 = vadd.xlane.f32.xlu0 %v777
        %v779 = vpop.xlane.xlu0 %778
        %v780 = vadd.f32 %v776, %v779
        %781 = vst.msk [vmem:[%s774] sm:$0xff] %vm592, %v780
        %v782 = vsel %vm491, %v773, 0.0
        %s783 = scalar_lea.vmem [#allocation4], 8
        %v784 = vld [vmem:[%s783] sm:$0xff]
        %786 = vset.pattern.permute.xlu0 0
        %787 = vperm.xlu0 %786, %v765
        %v788 = vpop.permute.xlu0 %787
        %v790 = vmul.f32 %v788, %v784
        %792 = vrot.lane.b32.xlu0 %v467, 120
        %v793 = vpop.permute.xlu0 %792
        %v796 = vsel %vm492, %v782, 0
        %798 = vmatprep.subr.mxu0 0.0
        %799 = vmatpush1.msra.mxu0 %v793
        %800 = vmatprep.subr.mxu0 0.0
        %801 = vmatpush1.msra.mxu0 0.0
        %802 = vmatprep.subr.mxu0 0.0
        %803 = vmatpush1.msra.mxu0 0.0
        %804 = vmatprep.subr.mxu0 0.0
        %805 = vmatpush1.msra.mxu0 0.0
        %806 = vmatprep.subr.mxu0 0.0
        %807 = vmatpush1.msra.mxu0 0.0
        %808 = vmatprep.subr.mxu0 0.0
        %809 = vmatpush1.msra.mxu0 0.0
        %810 = vmatprep.subr.mxu0 0.0
        %811 = vmatpush1.msra.mxu0 0.0
        %812 = vmatprep.subr.mxu0 0.0
        %813 = vmatpush1.msra.mxu0 0.0
        %814 = vmatprep.subr.mxu0 0.0
        %815 = vmatpush1.msra.mxu0 0.0
        %816 = vmatprep.subr.mxu0 0.0
        %817 = vmatpush1.msra.mxu0 0.0
        %818 = vmatprep.subr.mxu0 0.0
        %819 = vmatpush1.msra.mxu0 0.0
        %820 = vmatprep.subr.mxu0 0.0
        %821 = vmatpush1.msra.mxu0 0.0
        %822 = vmatprep.subr.mxu0 0.0
        %823 = vmatpush1.msra.mxu0 0.0
        %824 = vmatprep.subr.mxu0 0.0
        %825 = vmatpush1.msra.mxu0 0.0
        %826 = vmatprep.subr.mxu0 0.0
        %827 = vmatpush1.msra.mxu0 0.0
        %828 = vmatprep.subr.mxu0 0.0
        %829 = vmatpush1.msra.mxu0 0.0
        %830 = vmatprep.subr.mxu0 0.0
        %831 = vmatpush1.msra.mxu0 0.0
        %832 = vmatprep.subr.mxu0 0.0
        %833 = vmatpush1.msra.mxu0 0.0
        %834 = vmatprep.subr.mxu0 0.0
        %835 = vmatpush1.msra.mxu0 0.0
        %836 = vmatprep.subr.mxu0 0.0
        %837 = vmatpush1.msra.mxu0 0.0
        %838 = vmatprep.subr.mxu0 0.0
        %839 = vmatpush1.msra.mxu0 0.0
        %840 = vmatprep.subr.mxu0 0.0
        %841 = vmatpush1.msra.mxu0 0.0
        %842 = vmatprep.subr.mxu0 0.0
        %843 = vmatpush1.msra.mxu0 0.0
        %844 = vmatprep.subr.mxu0 0.0
        %845 = vmatpush1.msra.mxu0 0.0
        %846 = vmatprep.subr.mxu0 0.0
        %847 = vmatpush1.msra.mxu0 0.0
        %848 = vmatprep.subr.mxu0 0.0
        %849 = vmatpush1.msra.mxu0 0.0
        %850 = vmatprep.subr.mxu0 0.0
        %851 = vmatpush1.msra.mxu0 0.0
        %852 = vmatprep.subr.mxu0 0.0
        %853 = vmatpush1.msra.mxu0 0.0
        %854 = vmatprep.subr.mxu0 0.0
        %855 = vmatpush1.msra.mxu0 0.0
        %856 = vmatprep.subr.mxu0 0.0
        %857 = vmatpush1.msra.mxu0 0.0
        %858 = vmatprep.subr.mxu0 0.0
        %859 = vmatpush1.msra.mxu0 0.0
        %860 = vmatprep.subr.mxu0 0.0
        %861 = vmatpush1.msra.mxu0 0.0
        %862 = vmatprep.mubr.f32.mxu0 0.0
        %863 = vmatmul.mubr.f32.gmra.mrb[0].mxu0 %v796
        %v864 = vpop.f32.mrb[0].mxu0
        %v865 = vadd.f32 0.0, %v864
        %v866 = vpop.f32.mrb[0].mxu0
        %867 = vdwg.mxu0
        %v868 = vadd.f32 %v790, %v865
        %869 = vst.msk [vmem:[%s783] sm:$0xff] %vm492, %v868
        %870 = vst.msk [vmem:[%s757] sm:$0xff] %vm592, %v762
        %871 = vrot.lane.b32.xlu0 %v465, 112
        %v872 = vpop.permute.xlu0 %871
        %873 = vrot.lane.b32.xlu0 %v466, 112
        %v874 = vpop.permute.xlu0 %873
        %v875 = vsel %vm492, %v872, 0
        %v877 = vsel %vm492, %v874, 0
        %879 = vmatprep.subr.mxu0 0.0
        %880 = vmatpush1.xpose.msra.mxu0 %v877
        %881 = vmatprep.subr.mxu0 0.0
        %882 = vmatpush1.xpose.msra.mxu0 0.0
        %883 = vmatprep.subr.mxu0 0.0
        %884 = vmatpush1.xpose.msra.mxu0 0.0
        %885 = vmatprep.subr.mxu0 0.0
        %886 = vmatpush1.xpose.msra.mxu0 0.0
        %887 = vmatprep.subr.mxu0 0.0
        %888 = vmatpush1.xpose.msra.mxu0 0.0
        %889 = vmatprep.subr.mxu0 0.0
        %890 = vmatpush1.xpose.msra.mxu0 0.0
        %891 = vmatprep.subr.mxu0 0.0
        %892 = vmatpush1.xpose.msra.mxu0 0.0
        %893 = vmatprep.subr.mxu0 0.0
        %894 = vmatpush1.xpose.msra.mxu0 0.0
        %895 = vmatprep.subr.mxu0 0.0
        %896 = vmatpush1.xpose.msra.mxu0 0.0
        %897 = vmatprep.subr.mxu0 0.0
        %898 = vmatpush1.xpose.msra.mxu0 0.0
        %899 = vmatprep.subr.mxu0 0.0
        %900 = vmatpush1.xpose.msra.mxu0 0.0
        %901 = vmatprep.subr.mxu0 0.0
        %902 = vmatpush1.xpose.msra.mxu0 0.0
        %903 = vmatprep.subr.mxu0 0.0
        %904 = vmatpush1.xpose.msra.mxu0 0.0
        %905 = vmatprep.subr.mxu0 0.0
        %906 = vmatpush1.xpose.msra.mxu0 0.0
        %907 = vmatprep.subr.mxu0 0.0
        %908 = vmatpush1.xpose.msra.mxu0 0.0
        %909 = vmatprep.subr.mxu0 0.0
        %910 = vmatpush1.xpose.msra.mxu0 0.0
        %911 = vmatprep.subr.mxu0 0.0
        %912 = vmatpush1.xpose.msra.mxu0 0.0
        %913 = vmatprep.subr.mxu0 0.0
        %914 = vmatpush1.xpose.msra.mxu0 0.0
        %915 = vmatprep.subr.mxu0 0.0
        %916 = vmatpush1.xpose.msra.mxu0 0.0
        %917 = vmatprep.subr.mxu0 0.0
        %918 = vmatpush1.xpose.msra.mxu0 0.0
        %919 = vmatprep.subr.mxu0 0.0
        %920 = vmatpush1.xpose.msra.mxu0 0.0
        %921 = vmatprep.subr.mxu0 0.0
        %922 = vmatpush1.xpose.msra.mxu0 0.0
        %923 = vmatprep.subr.mxu0 0.0
        %924 = vmatpush1.xpose.msra.mxu0 0.0
        %925 = vmatprep.subr.mxu0 0.0
        %926 = vmatpush1.xpose.msra.mxu0 0.0
        %927 = vmatprep.subr.mxu0 0.0
        %928 = vmatpush1.xpose.msra.mxu0 0.0
        %929 = vmatprep.subr.mxu0 0.0
        %930 = vmatpush1.xpose.msra.mxu0 0.0
        %931 = vmatprep.subr.mxu0 0.0
        %932 = vmatpush1.xpose.msra.mxu0 0.0
        %933 = vmatprep.subr.mxu0 0.0
        %934 = vmatpush1.xpose.msra.mxu0 0.0
        %935 = vmatprep.subr.mxu0 0.0
        %936 = vmatpush1.xpose.msra.mxu0 0.0
        %937 = vmatprep.subr.mxu0 0.0
        %938 = vmatpush1.xpose.msra.mxu0 0.0
        %939 = vmatprep.subr.mxu0 0.0
        %940 = vmatpush1.xpose.msra.mxu0 0.0
        %941 = vmatprep.subr.mxu0 0.0
        %942 = vmatpush1.xpose.msra.mxu0 0.0
        %943 = vmatprep.mubr.f32.mxu0 0.0
        %944 = vmatmul.mubr.f32.gmra.mrb[0].mxu0 %v875
        %v945 = vpop.f32.mrb[0].mxu0
        %v946 = vadd.f32 0.0, %v945
        %v947 = vpop.f32.mrb[0].mxu0
        %948 = vdwg.mxu0
        %v949 = vsel %vm491, %v946, -9e+15
        %s950 = scalar_lea.vmem [#allocation2], 16
        %v951 = vld [vmem:[%s950] sm:$0xff]
        %v952 = vsel %vm492, %v949, -inf
        %953 = vmax.xlane.f32.xlu0 %v952
        %v954 = vpop.xlane.xlu0 %953
        %v955 = vmax.f32 %v951, %v954
        %v956 = vsub.f32 %v951, %v955
        %v957 = vmul.f32 %v956, 1.442695
        %v958 = vpow.pop %v957
        %960 = vset.pattern.permute.xlu0 0
        %961 = vperm.xlu0 %960, %v955
        %v962 = vpop.permute.xlu0 %961
        %v964 = vsub.f32 %v949, %v962
        %v965 = vmul.f32 %v964, 1.442695
        %v966 = vpow.pop %v965
        %s967 = scalar_lea.vmem [#allocation3], 16
        %v968 = vld [vmem:[%s967] sm:$0xff]
        %v969 = vmul.f32 %v958, %v968
        %v970 = vsel %vm492, %v966, 0.0
        %971 = vadd.xlane.f32.xlu0 %v970
        %v972 = vpop.xlane.xlu0 %971
        %v973 = vadd.f32 %v969, %v972
        %974 = vst.msk [vmem:[%s967] sm:$0xff] %vm592, %v973
        %v975 = vsel %vm491, %v966, 0.0
        %s976 = scalar_lea.vmem [#allocation4], 16
        %v977 = vld [vmem:[%s976] sm:$0xff]
        %979 = vset.pattern.permute.xlu0 0
        %980 = vperm.xlu0 %979, %v958
        %v981 = vpop.permute.xlu0 %980
        %v983 = vmul.f32 %v981, %v977
        %984 = vrot.lane.b32.xlu0 %v467, 112
        %v985 = vpop.permute.xlu0 %984
        %v988 = vsel %vm492, %v975, 0
        %990 = vmatprep.subr.mxu0 0.0
        %991 = vmatpush1.msra.mxu0 %v985
        %992 = vmatprep.subr.mxu0 0.0
        %993 = vmatpush1.msra.mxu0 0.0
        %994 = vmatprep.subr.mxu0 0.0
        %995 = vmatpush1.msra.mxu0 0.0
        %996 = vmatprep.subr.mxu0 0.0
        %997 = vmatpush1.msra.mxu0 0.0
        %998 = vmatprep.subr.mxu0 0.0
        %999 = vmatpush1.msra.mxu0 0.0
        %1000 = vmatprep.subr.mxu0 0.0
        %1001 = vmatpush1.msra.mxu0 0.0
        %1002 = vmatprep.subr.mxu0 0.0
        %1003 = vmatpush1.msra.mxu0 0.0
        %1004 = vmatprep.subr.mxu0 0.0
        %1005 = vmatpush1.msra.mxu0 0.0
        %1006 = vmatprep.subr.mxu0 0.0
        %1007 = vmatpush1.msra.mxu0 0.0
        %1008 = vmatprep.subr.mxu0 0.0
        %1009 = vmatpush1.msra.mxu0 0.0
        %1010 = vmatprep.subr.mxu0 0.0
        %1011 = vmatpush1.msra.mxu0 0.0
        %1012 = vmatprep.subr.mxu0 0.0
        %1013 = vmatpush1.msra.mxu0 0.0
        %1014 = vmatprep.subr.mxu0 0.0
        %1015 = vmatpush1.msra.mxu0 0.0
        %1016 = vmatprep.subr.mxu0 0.0
        %1017 = vmatpush1.msra.mxu0 0.0
        %1018 = vmatprep.subr.mxu0 0.0
        %1019 = vmatpush1.msra.mxu0 0.0
        %1020 = vmatprep.subr.mxu0 0.0
        %1021 = vmatpush1.msra.mxu0 0.0
        %1022 = vmatprep.subr.mxu0 0.0
        %1023 = vmatpush1.msra.mxu0 0.0
        %1024 = vmatprep.subr.mxu0 0.0
        %1025 = vmatpush1.msra.mxu0 0.0
        %1026 = vmatprep.subr.mxu0 0.0
        %1027 = vmatpush1.msra.mxu0 0.0
        %1028 = vmatprep.subr.mxu0 0.0
        %1029 = vmatpush1.msra.mxu0 0.0
        %1030 = vmatprep.subr.mxu0 0.0
        %1031 = vmatpush1.msra.mxu0 0.0
        %1032 = vmatprep.subr.mxu0 0.0
        %1033 = vmatpush1.msra.mxu0 0.0
        %1034 = vmatprep.subr.mxu0 0.0
        %1035 = vmatpush1.msra.mxu0 0.0
        %1036 = vmatprep.subr.mxu0 0.0
        %1037 = vmatpush1.msra.mxu0 0.0
        %1038 = vmatprep.subr.mxu0 0.0
        %1039 = vmatpush1.msra.mxu0 0.0
        %1040 = vmatprep.subr.mxu0 0.0
        %1041 = vmatpush1.msra.mxu0 0.0
        %1042 = vmatprep.subr.mxu0 0.0
        %1043 = vmatpush1.msra.mxu0 0.0
        %1044 = vmatprep.subr.mxu0 0.0
        %1045 = vmatpush1.msra.mxu0 0.0
        %1046 = vmatprep.subr.mxu0 0.0
        %1047 = vmatpush1.msra.mxu0 0.0
        %1048 = vmatprep.subr.mxu0 0.0
        %1049 = vmatpush1.msra.mxu0 0.0
        %1050 = vmatprep.subr.mxu0 0.0
        %1051 = vmatpush1.msra.mxu0 0.0
        %1052 = vmatprep.subr.mxu0 0.0
        %1053 = vmatpush1.msra.mxu0 0.0
        %1054 = vmatprep.mubr.f32.mxu0 0.0
        %1055 = vmatmul.mubr.f32.gmra.mrb[0].mxu0 %v988
        %v1056 = vpop.f32.mrb[0].mxu0
        %v1057 = vadd.f32 0.0, %v1056
        %v1058 = vpop.f32.mrb[0].mxu0
        %1059 = vdwg.mxu0
        %v1060 = vadd.f32 %v983, %v1057
        %1061 = vst.msk [vmem:[%s976] sm:$0xff] %vm492, %v1060
        %1062 = vst.msk [vmem:[%s950] sm:$0xff] %vm592, %v955
        %1063 = vrot.lane.b32.xlu0 %v465, 104
        %v1064 = vpop.permute.xlu0 %1063
        %1065 = vrot.lane.b32.xlu0 %v466, 104
        %v1066 = vpop.permute.xlu0 %1065
        %v1067 = vsel %vm492, %v1064, 0
        %v1069 = vsel %vm492, %v1066, 0
        %1071 = vmatprep.subr.mxu0 0.0
        %1072 = vmatpush1.xpose.msra.mxu0 %v1069
        %1073 = vmatprep.subr.mxu0 0.0
        %1074 = vmatpush1.xpose.msra.mxu0 0.0
        %1075 = vmatprep.subr.mxu0 0.0
        %1076 = vmatpush1.xpose.msra.mxu0 0.0
        %1077 = vmatprep.subr.mxu0 0.0
        %1078 = vmatpush1.xpose.msra.mxu0 0.0
        %1079 = vmatprep.subr.mxu0 0.0
        %1080 = vmatpush1.xpose.msra.mxu0 0.0
        %1081 = vmatprep.subr.mxu0 0.0
        %1082 = vmatpush1.xpose.msra.mxu0 0.0
        %1083 = vmatprep.subr.mxu0 0.0
        %1084 = vmatpush1.xpose.msra.mxu0 0.0
        %1085 = vmatprep.subr.mxu0 0.0
        %1086 = vmatpush1.xpose.msra.mxu0 0.0
        %1087 = vmatprep.subr.mxu0 0.0
        %1088 = vmatpush1.xpose.msra.mxu0 0.0
        %1089 = vmatprep.subr.mxu0 0.0
        %1090 = vmatpush1.xpose.msra.mxu0 0.0
        %1091 = vmatprep.subr.mxu0 0.0
        %1092 = vmatpush1.xpose.msra.mxu0 0.0
        %1093 = vmatprep.subr.mxu0 0.0
        %1094 = vmatpush1.xpose.msra.mxu0 0.0
        %1095 = vmatprep.subr.mxu0 0.0
        %1096 = vmatpush1.xpose.msra.mxu0 0.0
        %1097 = vmatprep.subr.mxu0 0.0
        %1098 = vmatpush1.xpose.msra.mxu0 0.0
        %1099 = vmatprep.subr.mxu0 0.0
        %1100 = vmatpush1.xpose.msra.mxu0 0.0
        %1101 = vmatprep.subr.mxu0 0.0
        %1102 = vmatpush1.xpose.msra.mxu0 0.0
        %1103 = vmatprep.subr.mxu0 0.0
        %1104 = vmatpush1.xpose.msra.mxu0 0.0
        %1105 = vmatprep.subr.mxu0 0.0
        %1106 = vmatpush1.xpose.msra.mxu0 0.0
        %1107 = vmatprep.subr.mxu0 0.0
        %1108 = vmatpush1.xpose.msra.mxu0 0.0
        %1109 = vmatprep.subr.mxu0 0.0
        %1110 = vmatpush1.xpose.msra.mxu0 0.0
        %1111 = vmatprep.subr.mxu0 0.0
        %1112 = vmatpush1.xpose.msra.mxu0 0.0
        %1113 = vmatprep.subr.mxu0 0.0
        %1114 = vmatpush1.xpose.msra.mxu0 0.0
        %1115 = vmatprep.subr.mxu0 0.0
        %1116 = vmatpush1.xpose.msra.mxu0 0.0
        %1117 = vmatprep.subr.mxu0 0.0
        %1118 = vmatpush1.xpose.msra.mxu0 0.0
        %1119 = vmatprep.subr.mxu0 0.0
        %1120 = vmatpush1.xpose.msra.mxu0 0.0
        %1121 = vmatprep.subr.mxu0 0.0
        %1122 = vmatpush1.xpose.msra.mxu0 0.0
        %1123 = vmatprep.subr.mxu0 0.0
        %1124 = vmatpush1.xpose.msra.mxu0 0.0
        %1125 = vmatprep.subr.mxu0 0.0
        %1126 = vmatpush1.xpose.msra.mxu0 0.0
        %1127 = vmatprep.subr.mxu0 0.0
        %1128 = vmatpush1.xpose.msra.mxu0 0.0
        %1129 = vmatprep.subr.mxu0 0.0
        %1130 = vmatpush1.xpose.msra.mxu0 0.0
        %1131 = vmatprep.subr.mxu0 0.0
        %1132 = vmatpush1.xpose.msra.mxu0 0.0
        %1133 = vmatprep.subr.mxu0 0.0
        %1134 = vmatpush1.xpose.msra.mxu0 0.0
        %1135 = vmatprep.mubr.f32.mxu0 0.0
        %1136 = vmatmul.mubr.f32.gmra.mrb[0].mxu0 %v1067
        %v1137 = vpop.f32.mrb[0].mxu0
        %v1138 = vadd.f32 0.0, %v1137
        %v1139 = vpop.f32.mrb[0].mxu0
        %1140 = vdwg.mxu0
        %v1141 = vsel %vm491, %v1138, -9e+15
        %s1142 = scalar_lea.vmem [#allocation2], 24
        %v1143 = vld [vmem:[%s1142] sm:$0xff]
        %v1144 = vsel %vm492, %v1141, -inf
        %1145 = vmax.xlane.f32.xlu0 %v1144
        %v1146 = vpop.xlane.xlu0 %1145
        %v1147 = vmax.f32 %v1143, %v1146
        %v1148 = vsub.f32 %v1143, %v1147
        %v1149 = vmul.f32 %v1148, 1.442695
        %v1150 = vpow.pop %v1149
        %1152 = vset.pattern.permute.xlu0 0
        %1153 = vperm.xlu0 %1152, %v1147
        %v1154 = vpop.permute.xlu0 %1153
        %v1156 = vsub.f32 %v1141, %v1154
        %v1157 = vmul.f32 %v1156, 1.442695
        %v1158 = vpow.pop %v1157
        %s1159 = scalar_lea.vmem [#allocation3], 24
        %v1160 = vld [vmem:[%s1159] sm:$0xff]
        %v1161 = vmul.f32 %v1150, %v1160
        %v1162 = vsel %vm492, %v1158, 0.0
        %1163 = vadd.xlane.f32.xlu0 %v1162
        %v1164 = vpop.xlane.xlu0 %1163
        %v1165 = vadd.f32 %v1161, %v1164
        %1166 = vst.msk [vmem:[%s1159] sm:$0xff] %vm592, %v1165
        %v1167 = vsel %vm491, %v1158, 0.0
        %s1168 = scalar_lea.vmem [#allocation4], 24
        %v1169 = vld [vmem:[%s1168] sm:$0xff]
        %1171 = vset.pattern.permute.xlu0 0
        %1172 = vperm.xlu0 %1171, %v1150
        %v1173 = vpop.permute.xlu0 %1172
        %v1175 = vmul.f32 %v1173, %v1169
        %1176 = vrot.lane.b32.xlu0 %v467, 104
        %v1177 = vpop.permute.xlu0 %1176
        %v1180 = vsel %vm492, %v1167, 0
        %1182 = vmatprep.subr.mxu0 0.0
        %1183 = vmatpush1.msra.mxu0 %v1177
        %1184 = vmatprep.subr.mxu0 0.0
        %1185 = vmatpush1.msra.mxu0 0.0
        %1186 = vmatprep.subr.mxu0 0.0
        %1187 = vmatpush1.msra.mxu0 0.0
        %1188 = vmatprep.subr.mxu0 0.0
        %1189 = vmatpush1.msra.mxu0 0.0
        %1190 = vmatprep.subr.mxu0 0.0
        %1191 = vmatpush1.msra.mxu0 0.0
        %1192 = vmatprep.subr.mxu0 0.0
        %1193 = vmatpush1.msra.mxu0 0.0
        %1194 = vmatprep.subr.mxu0 0.0
        %1195 = vmatpush1.msra.mxu0 0.0
        %1196 = vmatprep.subr.mxu0 0.0
        %1197 = vmatpush1.msra.mxu0 0.0
        %1198 = vmatprep.subr.mxu0 0.0
        %1199 = vmatpush1.msra.mxu0 0.0
        %1200 = vmatprep.subr.mxu0 0.0
        %1201 = vmatpush1.msra.mxu0 0.0
        %1202 = vmatprep.subr.mxu0 0.0
        %1203 = vmatpush1.msra.mxu0 0.0
        %1204 = vmatprep.subr.mxu0 0.0
        %1205 = vmatpush1.msra.mxu0 0.0
        %1206 = vmatprep.subr.mxu0 0.0
        %1207 = vmatpush1.msra.mxu0 0.0
        %1208 = vmatprep.subr.mxu0 0.0
        %1209 = vmatpush1.msra.mxu0 0.0
        %1210 = vmatprep.subr.mxu0 0.0
        %1211 = vmatpush1.msra.mxu0 0.0
        %1212 = vmatprep.subr.mxu0 0.0
        %1213 = vmatpush1.msra.mxu0 0.0
        %1214 = vmatprep.subr.mxu0 0.0
        %1215 = vmatpush1.msra.mxu0 0.0
        %1216 = vmatprep.subr.mxu0 0.0
        %1217 = vmatpush1.msra.mxu0 0.0
        %1218 = vmatprep.subr.mxu0 0.0
        %1219 = vmatpush1.msra.mxu0 0.0
        %1220 = vmatprep.subr.mxu0 0.0
        %1221 = vmatpush1.msra.mxu0 0.0
        %1222 = vmatprep.subr.mxu0 0.0
        %1223 = vmatpush1.msra.mxu0 0.0
        %1224 = vmatprep.subr.mxu0 0.0
        %1225 = vmatpush1.msra.mxu0 0.0
        %1226 = vmatprep.subr.mxu0 0.0
        %1227 = vmatpush1.msra.mxu0 0.0
        %1228 = vmatprep.subr.mxu0 0.0
        %1229 = vmatpush1.msra.mxu0 0.0
        %1230 = vmatprep.subr.mxu0 0.0
        %1231 = vmatpush1.msra.mxu0 0.0
        %1232 = vmatprep.subr.mxu0 0.0
        %1233 = vmatpush1.msra.mxu0 0.0
        %1234 = vmatprep.subr.mxu0 0.0
        %1235 = vmatpush1.msra.mxu0 0.0
        %1236 = vmatprep.subr.mxu0 0.0
        %1237 = vmatpush1.msra.mxu0 0.0
        %1238 = vmatprep.subr.mxu0 0.0
        %1239 = vmatpush1.msra.mxu0 0.0
        %1240 = vmatprep.subr.mxu0 0.0
        %1241 = vmatpush1.msra.mxu0 0.0
        %1242 = vmatprep.subr.mxu0 0.0
        %1243 = vmatpush1.msra.mxu0 0.0
        %1244 = vmatprep.subr.mxu0 0.0
        %1245 = vmatpush1.msra.mxu0 0.0
        %1246 = vmatprep.mubr.f32.mxu0 0.0
        %1247 = vmatmul.mubr.f32.gmra.mrb[0].mxu0 %v1180
        %v1248 = vpop.f32.mrb[0].mxu0
        %v1249 = vadd.f32 0.0, %v1248
        %v1250 = vpop.f32.mrb[0].mxu0
        %1251 = vdwg.mxu0
        %v1252 = vadd.f32 %v1175, %v1249
        %1253 = vst.msk [vmem:[%s1168] sm:$0xff] %vm492, %v1252
        %1254 = vst.msk [vmem:[%s1142] sm:$0xff] %vm592, %v1147
      $region44: #{encoder_layer_forward.5} parent=35 // pred_fallthru
        _
      %p1255 = scmp.eq.s32.totalorder %s22, 2
      // Predicated region
      $region45: #{encoder_layer_forward.5} parent=35 // pred_check
        %p1256 = pneg %p1255
      $region46: #{encoder_layer_forward.5} parent=35 // pred_check_branch
        %1258 = sbr.rel (%p1256) target = $region48
      $region47: #{encoder_layer_forward.5} parent=35 // pred_region
        %v1259 = vld [vmem:[#allocation4] sm:$0xff]
        %v1260 = vld [vmem:[#allocation3] sm:$0xff]
        %v1261 = vrcp.pop %v1260
        %1263 = vset.pattern.permute.xlu0 0
        %1264 = vperm.xlu0 %1263, %v1261
        %v1265 = vpop.permute.xlu0 %1264
        %v1267 = vmul.f32 %v1259, %v1265
        %s1268 = scalar_lea.vmem [#allocation4], 8
        %v1269 = vld [vmem:[%s1268] sm:$0xff]
        %s1270 = scalar_lea.vmem [#allocation3], 8
        %v1271 = vld [vmem:[%s1270] sm:$0xff]
        %v1272 = vrcp.pop %v1271
        %1274 = vset.pattern.permute.xlu0 0
        %1275 = vperm.xlu0 %1274, %v1272
        %v1276 = vpop.permute.xlu0 %1275
        %v1278 = vmul.f32 %v1269, %v1276
        %s1279 = scalar_lea.vmem [#allocation4], 16
        %v1280 = vld [vmem:[%s1279] sm:$0xff]
        %s1281 = scalar_lea.vmem [#allocation3], 16
        %v1282 = vld [vmem:[%s1281] sm:$0xff]
        %v1283 = vrcp.pop %v1282
        %1285 = vset.pattern.permute.xlu0 0
        %1286 = vperm.xlu0 %1285, %v1283
        %v1287 = vpop.permute.xlu0 %1286
        %v1289 = vmul.f32 %v1280, %v1287
        %s1290 = scalar_lea.vmem [#allocation4], 24
        %v1291 = vld [vmem:[%s1290] sm:$0xff]
        %s1292 = scalar_lea.vmem [#allocation3], 24
        %v1293 = vld [vmem:[%s1292] sm:$0xff]
        %v1294 = vrcp.pop %v1293
        %1296 = vset.pattern.permute.xlu0 0
        %1297 = vperm.xlu0 %1296, %v1294
        %v1298 = vpop.permute.xlu0 %1297
        %v1300 = vmul.f32 %v1291, %v1298
        %1302 = vrot.lane.b32.xlu0 %v1278, 8
        %v1303 = vpop.permute.xlu0 %1302
        %1306 = vrot.lane.b32.xlu0 %v1289, 16
        %v1307 = vpop.permute.xlu0 %1306
        %1310 = vrot.lane.b32.xlu0 %v1300, 24
        %v1311 = vpop.permute.xlu0 %1310
        %vm1313 = vcmask 64512
        %v1314 = vsel %vm1313, %v1267, %v1303
        %vm1315 = vcmask 130048
        %v1316 = vsel %vm1315, %v1314, %v1307
        %vm1317 = vcmask 195584
        %v1318 = vsel %vm1317, %v1316, %v1311
        %vm1319 = vcmask 261120
        %1320 = vst.msk [vmem:[%s437] sm:$0xff] %vm1319, %v1318
      $region48: #{encoder_layer_forward.5} parent=35 // pred_fallthru
        _
      %p1321 = scmp.lt.s32.totalorder %s20, 1
      %s1322 = scalar_select %p1321, %s20, 1
      %p1323 = scmp.lt.s32.totalorder %s21, 0
      %s1324 = scalar_select %p1323, %s21, 0
      %s1325 = sadd.s32 %s1324, %s1322
      %s1326 = smul.addr %s1325, 8
      %s1327 = scalar_lea.vmem %s4, %s1326
      // Predicated region
      $region49: #{encoder_layer_forward.5} parent=35 // pred_check
        %p1328 = pneg %p202
      $region50: #{encoder_layer_forward.5} parent=35 // pred_check_branch
        %1330 = sbr.rel (%p1328) target = $region52
      $region51: #{encoder_layer_forward.5} parent=35 // pred_region
        _
      $region52: #{encoder_layer_forward.5} parent=35 // pred_fallthru
        _
    $region36: #{encoder_layer_forward.5} parent=5 // pred_fallthru
      _
    %p1331 = scmp.le.s32.totalorder 2, %s10
    // Predicated region
    $region53: #{encoder_layer_forward.5} parent=5 // pred_check
      %p1332 = pneg %p1331
    $region54: #{encoder_layer_forward.5} parent=5 // pred_check_branch
      %1334 = sbr.rel (%p1332) target = $region56
    $region55: #{encoder_layer_forward.5} parent=5 // pred_region
      %s1335 = ssub.s32 %s10, 2
      // Predicated region
      $region57: #{encoder_layer_forward.5} parent=55 // pred_check
        %p1336 = pneg %p208
      $region58: #{encoder_layer_forward.5} parent=55 // pred_check_branch
        %1338 = sbr.rel (%p1336) target = $region60
      $region59: #{encoder_layer_forward.5} parent=55 // pred_region
        %p1339 = scmp.lt.s32.totalorder %s23, 1
        %s1340 = scalar_select %p1339, %s23, 1
        %p1341 = scmp.lt.s32.totalorder %s24, 0
        %s1342 = scalar_select %p1341, %s24, 0
        %s1343 = sadd.s32 %s1342, %s1340
        %s1344 = smul.addr %s1343, 8
        %s1345 = scalar_lea.vmem %s4, %s1344
      $region60: #{encoder_layer_forward.5} parent=55 // pred_fallthru
        _
    $region56: #{encoder_layer_forward.5} parent=5 // pred_fallthru
      _
  $region6: #{encoder_layer_forward.5} parent=0 // loop_footer
    %s14 = sadd.s32 1, %s10
  $region7: #{encoder_layer_forward.5} parent=0 // loop_footer_branch
    %9 = sbr.rel target = $region3
  $region8: #{encoder_layer_forward.5} parent=0 // loop_exit
    _

// kernel: encoder_layer_forward.7
$region0: #{encoder_layer_forward.7}
  #allocation0 [shape = 'u32[]', space=smem, size = 0x4, offset = 0x4, fixed_abs, tag = 'smem constant byte address 0x4 - core index']
  #allocation1 [shape = 'u32[144,128]{1,0:T(1,128)}', space=vmem, size = 0x12000, scoped, tag = 'internal scratch']
  #allocation2 [shape = 'f32[16,32]{1,0:T(8,128)}', space=vmem, size = 0x2000, scoped, tag = 'scratch operand']
  %s0 = inlined_call_operand.vmem [shape: f32[16,32], index: 0, kind: input, shape index: {}]
  %s1 = inlined_call_operand.vmem [shape: f32[32,64], index: 1, kind: input, shape index: {}]
  %s2 = inlined_call_operand.vmem [shape: f32[1,64], index: 2, kind: input, shape index: {}]
  %s3 = inlined_call_operand.vmem [shape: f32[64,32], index: 3, kind: input, shape index: {}]
  %s4 = inlined_call_operand.vmem [shape: f32[1,32], index: 4, kind: input, shape index: {}]
  %s5 = inlined_call_operand.vmem [shape: f32[1,32], index: 5, kind: input, shape index: {}]
  %s6 = inlined_call_operand.vmem [shape: f32[1,32], index: 6, kind: input, shape index: {}]
  %s7 = inlined_call_operand.hbm [shape: f32[16,32], index: 7, kind: output, shape index: {}]
  %s8 = sld [smem:[#allocation0]]
  $region46: #{encoder_layer_forward.7} parent=0
    _
  %s10 = ssub.s32 1, %s8
  %s11 = scalar_select 0, %s10, %s8
  $region1: #{encoder_layer_forward.7} parent=0
    #allocation3 [shape = 'u8[8192]{0}', space=vmem, size = 0x2000, scoped, tag = 'output window, operand 0, single buffered']
    #allocation4 [shape = 's32[1]{0}', space=sflag, size = 0x4, scoped, tag = 'scoped memory for encoder_layer_forward.7']
    %12 = vsyncpa [#allocation4], 0
    // Predicated region
    $region2: #{encoder_layer_forward.7} parent=1 // pred_check
      _
    $region3: #{encoder_layer_forward.7} parent=1 // pred_check_branch
      %14 = sbr.rel (0) target = $region5
    $region4: #{encoder_layer_forward.7} parent=1 // pred_region
      _
    $region5: #{encoder_layer_forward.7} parent=1 // pred_fallthru
      _
    // Predicated region
    $region6: #{encoder_layer_forward.7} parent=1 // pred_check
      _
    $region7: #{encoder_layer_forward.7} parent=1 // pred_check_branch
      %16 = sbr.rel (0) target = $region9
    $region8: #{encoder_layer_forward.7} parent=1 // pred_region
      _
    $region9: #{encoder_layer_forward.7} parent=1 // pred_fallthru
      _
    // Predicated region
    $region10: #{encoder_layer_forward.7} parent=1 // pred_check
      _
    $region11: #{encoder_layer_forward.7} parent=1 // pred_check_branch
      %18 = sbr.rel (0) target = $region13
    $region12: #{encoder_layer_forward.7} parent=1 // pred_region
      _
    $region13: #{encoder_layer_forward.7} parent=1 // pred_fallthru
      _
    // Predicated region
    $region14: #{encoder_layer_forward.7} parent=1 // pred_check
      _
    $region15: #{encoder_layer_forward.7} parent=1 // pred_check_branch
      %20 = sbr.rel (0) target = $region17
    $region16: #{encoder_layer_forward.7} parent=1 // pred_region
      _
    $region17: #{encoder_layer_forward.7} parent=1 // pred_fallthru
      _
    // Predicated region
    $region18: #{encoder_layer_forward.7} parent=1 // pred_check
      _
    $region19: #{encoder_layer_forward.7} parent=1 // pred_check_branch
      %22 = sbr.rel (0) target = $region21
    $region20: #{encoder_layer_forward.7} parent=1 // pred_region
      _
    $region21: #{encoder_layer_forward.7} parent=1 // pred_fallthru
      _
    // Predicated region
    $region22: #{encoder_layer_forward.7} parent=1 // pred_check
      _
    $region23: #{encoder_layer_forward.7} parent=1 // pred_check_branch
      %24 = sbr.rel (0) target = $region25
    $region24: #{encoder_layer_forward.7} parent=1 // pred_region
      _
    $region25: #{encoder_layer_forward.7} parent=1 // pred_fallthru
      _
    // Predicated region
    $region26: #{encoder_layer_forward.7} parent=1 // pred_check
      _
    $region27: #{encoder_layer_forward.7} parent=1 // pred_check_branch
      %26 = sbr.rel (0) target = $region29
    $region28: #{encoder_layer_forward.7} parent=1 // pred_region
      _
    $region29: #{encoder_layer_forward.7} parent=1 // pred_fallthru
      _
    %p27 = scmp.eq.s32.totalorder 0, 0
    // Predicated region
    $region30: #{encoder_layer_forward.7} parent=1 // pred_check
      %p28 = pneg %p27
    $region31: #{encoder_layer_forward.7} parent=1 // pred_check_branch
      %30 = sbr.rel (%p28) target = $region33
    $region32: #{encoder_layer_forward.7} parent=1 // pred_region
      %vm31 = vcmask 261120
      %32 = vst.msk [vmem:[#allocation2] sm:$0xff] %vm31, 0.0
      %33 = vst.msk [vmem:[#allocation2 + $0x8] sm:$0xff] %vm31, 0.0
    $region33: #{encoder_layer_forward.7} parent=1 // pred_fallthru
      _
    %v34 = vld [vmem:[%s0] sm:$0xff]
    %v35 = vld [vmem:[%s0 + $0x8] sm:$0xff]
    %v36 = vld [vmem:[%s1] sm:$0xff]
    %v37 = vld [vmem:[%s1 + $0x8] sm:$0xff]
    %v38 = vld [vmem:[%s1 + $0x10] sm:$0xff]
    %v39 = vld [vmem:[%s1 + $0x18] sm:$0xff]
    %v40 = vld [vmem:[%s2] sm:$0x1]
    %v42 = vlaneseq
    %v43 = vshrl.u32 %v42, 7
    %v44 = vsub.s32 0, %v43
    %v45 = vrot.slane %v40, %v44
    %vm47 = vcmask 261120
    %v49 = vsel %vm47, %v34, 0
    %v52 = vsel %vm47, %v35, 0
    %54 = vmatprep.subr.mxu0 0.0
    %55 = vmatpush1.msra.mxu0 %v36
    %56 = vmatprep.subr.mxu0 0.0
    %57 = vmatpush1.msra.mxu0 %v37
    %58 = vmatprep.subr.mxu0 0.0
    %59 = vmatpush1.msra.mxu0 %v38
    %60 = vmatprep.subr.mxu0 0.0
    %61 = vmatpush1.msra.mxu0 %v39
    %62 = vmatprep.subr.mxu0 0.0
    %63 = vmatpush1.msra.mxu0 0.0
    %64 = vmatprep.subr.mxu0 0.0
    %65 = vmatpush1.msra.mxu0 0.0
    %66 = vmatprep.subr.mxu0 0.0
    %67 = vmatpush1.msra.mxu0 0.0
    %68 = vmatprep.subr.mxu0 0.0
    %69 = vmatpush1.msra.mxu0 0.0
    %70 = vmatprep.subr.mxu0 0.0
    %71 = vmatpush1.msra.mxu0 0.0
    %72 = vmatprep.subr.mxu0 0.0
    %73 = vmatpush1.msra.mxu0 0.0
    %74 = vmatprep.subr.mxu0 0.0
    %75 = vmatpush1.msra.mxu0 0.0
    %76 = vmatprep.subr.mxu0 0.0
    %77 = vmatpush1.msra.mxu0 0.0
    %78 = vmatprep.subr.mxu0 0.0
    %79 = vmatpush1.msra.mxu0 0.0
    %80 = vmatprep.subr.mxu0 0.0
    %81 = vmatpush1.msra.mxu0 0.0
    %82 = vmatprep.subr.mxu0 0.0
    %83 = vmatpush1.msra.mxu0 0.0
    %84 = vmatprep.subr.mxu0 0.0
    %85 = vmatpush1.msra.mxu0 0.0
    %86 = vmatprep.subr.mxu0 0.0
    %87 = vmatpush1.msra.mxu0 0.0
    %88 = vmatprep.subr.mxu0 0.0
    %89 = vmatpush1.msra.mxu0 0.0
    %90 = vmatprep.subr.mxu0 0.0
    %91 = vmatpush1.msra.mxu0 0.0
    %92 = vmatprep.subr.mxu0 0.0
    %93 = vmatpush1.msra.mxu0 0.0
    %94 = vmatprep.subr.mxu0 0.0
    %95 = vmatpush1.msra.mxu0 0.0
    %96 = vmatprep.subr.mxu0 0.0
    %97 = vmatpush1.msra.mxu0 0.0
    %98 = vmatprep.subr.mxu0 0.0
    %99 = vmatpush1.msra.mxu0 0.0
    %100 = vmatprep.subr.mxu0 0.0
    %101 = vmatpush1.msra.mxu0 0.0
    %102 = vmatprep.subr.mxu0 0.0
    %103 = vmatpush1.msra.mxu0 0.0
    %104 = vmatprep.subr.mxu0 0.0
    %105 = vmatpush1.msra.mxu0 0.0
    %106 = vmatprep.subr.mxu0 0.0
    %107 = vmatpush1.msra.mxu0 0.0
    %108 = vmatprep.subr.mxu0 0.0
    %109 = vmatpush1.msra.mxu0 0.0
    %110 = vmatprep.subr.mxu0 0.0
    %111 = vmatpush1.msra.mxu0 0.0
    %112 = vmatprep.subr.mxu0 0.0
    %113 = vmatpush1.msra.mxu0 0.0
    %114 = vmatprep.subr.mxu0 0.0
    %115 = vmatpush1.msra.mxu0 0.0
    %116 = vmatprep.subr.mxu0 0.0
    %117 = vmatpush1.msra.mxu0 0.0
    %118 = vmatprep.mubr.f32.mxu0 0.0
    %119 = vmatmul.mubr.f32.gmra.mrb[0].mxu0 %v49
    %v120 = vpop.f32.mrb[0].mxu0
    %v121 = vadd.f32 %v45, %v120
    %v122 = vpop.f32.mrb[0].mxu0
    %123 = vmatprep.mubr.f32.mxu0 0.0
    %124 = vmatmul.mubr.f32.gmra.mrb[0].mxu0 %v52
    %v125 = vpop.f32.mrb[0].mxu0
    %v126 = vadd.f32 %v45, %v125
    %v127 = vpop.f32.mrb[0].mxu0
    %128 = vdwg.mxu0
    %v129 = vmul.f32 %v121, 0.5
    %v130 = vmul.f32 %v126, 0.5
    %v131 = vmul.f32 %v121, 0.70710677
    %v132 = vmul.f32 %v126, 0.70710677
    %v133 = vand.u32 2147483647, %v131
    %v134 = vand.u32 2147483647, %v132
    %v135 = vmul.f32 %v133, 0.3275911
    %v136 = vmul.f32 %v134, 0.3275911
    %v137 = vadd.f32 %v135, 1.0
    %v138 = vadd.f32 %v136, 1.0
    %v139 = vrcp.pop %v137
    %v140 = vmul.f32 1.0, %v139
    %v141 = vrcp.pop %v138
    %v142 = vmul.f32 1.0, %v141
    %v143 = vmul.f32 %v140, 1.0614054
    %v144 = vmul.f32 %v142, 1.0614054
    %v145 = vadd.f32 %v143, -1.4531521
    %v146 = vadd.f32 %v144, -1.4531521
    %v147 = vmul.f32 %v145, %v140
    %v148 = vmul.f32 %v146, %v142
    %v149 = vadd.f32 %v147, 1.4214138
    %v150 = vadd.f32 %v148, 1.4214138
    %v151 = vmul.f32 %v149, %v140
    %v152 = vmul.f32 %v150, %v142
    %v153 = vadd.f32 %v151, -0.28449672
    %v154 = vadd.f32 %v152, -0.28449672
    %v155 = vmul.f32 %v153, %v140
    %v156 = vmul.f32 %v154, %v142
    %v157 = vadd.f32 %v155, 0.2548296
    %v158 = vadd.f32 %v156, 0.2548296
    %v159 = vmul.f32 %v157, %v140
    %v160 = vmul.f32 %v158, %v142
    %v161 = vsub.f32 0.0, %v133
    %v162 = vsub.f32 0.0, %v134
    %v163 = vmul.f32 %v161, %v133
    %v164 = vmul.f32 %v162, %v134
    %v165 = vmul.f32 %v163, 1.442695
    %v166 = vpow.pop %v165
    %v167 = vmul.f32 %v164, 1.442695
    %v168 = vpow.pop %v167
    %v169 = vmul.f32 %v159, %v166
    %v170 = vmul.f32 %v160, %v168
    %v171 = vsub.f32 1.0, %v169
    %v172 = vsub.f32 1.0, %v170
    %vm173 = vcmp.ge.f32.partialorder %v131, 0.0
    %vm174 = vcmp.ge.f32.partialorder %v132, 0.0
    %v175 = vsub.f32 0.0, %v171
    %v176 = vsub.f32 0.0, %v172
    %v177 = vsel %vm173, %v171, %v175
    %v178 = vsel %vm174, %v172, %v176
    %v179 = vadd.f32 %v177, 1.0
    %v180 = vadd.f32 %v178, 1.0
    %v181 = vmul.f32 %v129, %v179
    %v182 = vmul.f32 %v130, %v180
    %v183 = vld [vmem:[#allocation2] sm:$0xff]
    %v184 = vld [vmem:[#allocation2 + $0x8] sm:$0xff]
    %v185 = vld [vmem:[%s3] sm:$0xff]
    %v186 = vld [vmem:[%s3 + $0x8] sm:$0xff]
    %v187 = vld [vmem:[%s3 + $0x10] sm:$0xff]
    %v188 = vld [vmem:[%s3 + $0x18] sm:$0xff]
    %v189 = vld [vmem:[%s3 + $0x20] sm:$0xff]
    %v190 = vld [vmem:[%s3 + $0x28] sm:$0xff]
    %v191 = vld [vmem:[%s3 + $0x30] sm:$0xff]
    %v192 = vld [vmem:[%s3 + $0x38] sm:$0xff]
    %vm193 = vcmask 523264
    %v195 = vsel %vm193, %v181, 0
    %v198 = vsel %vm193, %v182, 0
    %200 = vmatprep.subr.mxu0 0.0
    %201 = vmatpush1.msra.mxu0 %v185
    %202 = vmatprep.subr.mxu0 0.0
    %203 = vmatpush1.msra.mxu0 %v186
    %204 = vmatprep.subr.mxu0 0.0
    %205 = vmatpush1.msra.mxu0 %v187
    %206 = vmatprep.subr.mxu0 0.0
    %207 = vmatpush1.msra.mxu0 %v188
    %208 = vmatprep.subr.mxu0 0.0
    %209 = vmatpush1.msra.mxu0 %v189
    %210 = vmatprep.subr.mxu0 0.0
    %211 = vmatpush1.msra.mxu0 %v190
    %212 = vmatprep.subr.mxu0 0.0
    %213 = vmatpush1.msra.mxu0 %v191
    %214 = vmatprep.subr.mxu0 0.0
    %215 = vmatpush1.msra.mxu0 %v192
    %216 = vmatprep.subr.mxu0 0.0
    %217 = vmatpush1.msra.mxu0 0.0
    %218 = vmatprep.subr.mxu0 0.0
    %219 = vmatpush1.msra.mxu0 0.0
    %220 = vmatprep.subr.mxu0 0.0
    %221 = vmatpush1.msra.mxu0 0.0
    %222 = vmatprep.subr.mxu0 0.0
    %223 = vmatpush1.msra.mxu0 0.0
    %224 = vmatprep.subr.mxu0 0.0
    %225 = vmatpush1.msra.mxu0 0.0
    %226 = vmatprep.subr.mxu0 0.0
    %227 = vmatpush1.msra.mxu0 0.0
    %228 = vmatprep.subr.mxu0 0.0
    %229 = vmatpush1.msra.mxu0 0.0
    %230 = vmatprep.subr.mxu0 0.0
    %231 = vmatpush1.msra.mxu0 0.0
    %232 = vmatprep.subr.mxu0 0.0
    %233 = vmatpush1.msra.mxu0 0.0
    %234 = vmatprep.subr.mxu0 0.0
    %235 = vmatpush1.msra.mxu0 0.0
    %236 = vmatprep.subr.mxu0 0.0
    %237 = vmatpush1.msra.mxu0 0.0
    %238 = vmatprep.subr.mxu0 0.0
    %239 = vmatpush1.msra.mxu0 0.0
    %240 = vmatprep.subr.mxu0 0.0
    %241 = vmatpush1.msra.mxu0 0.0
    %242 = vmatprep.subr.mxu0 0.0
    %243 = vmatpush1.msra.mxu0 0.0
    %244 = vmatprep.subr.mxu0 0.0
    %245 = vmatpush1.msra.mxu0 0.0
    %246 = vmatprep.subr.mxu0 0.0
    %247 = vmatpush1.msra.mxu0 0.0
    %248 = vmatprep.subr.mxu0 0.0
    %249 = vmatpush1.msra.mxu0 0.0
    %250 = vmatprep.subr.mxu0 0.0
    %251 = vmatpush1.msra.mxu0 0.0
    %252 = vmatprep.subr.mxu0 0.0
    %253 = vmatpush1.msra.mxu0 0.0
    %254 = vmatprep.subr.mxu0 0.0
    %255 = vmatpush1.msra.mxu0 0.0
    %256 = vmatprep.subr.mxu0 0.0
    %257 = vmatpush1.msra.mxu0 0.0
    %258 = vmatprep.subr.mxu0 0.0
    %259 = vmatpush1.msra.mxu0 0.0
    %260 = vmatprep.subr.mxu0 0.0
    %261 = vmatpush1.msra.mxu0 0.0
    %262 = vmatprep.subr.mxu0 0.0
    %263 = vmatpush1.msra.mxu0 0.0
    %264 = vmatprep.mubr.f32.mxu0 0.0
    %265 = vmatmul.mubr.f32.gmra.mrb[0].mxu0 %v195
    %v266 = vpop.f32.mrb[0].mxu0
    %v267 = vadd.f32 0.0, %v266
    %v268 = vpop.f32.mrb[0].mxu0
    %269 = vmatprep.mubr.f32.mxu0 0.0
    %270 = vmatmul.mubr.f32.gmra.mrb[0].mxu0 %v198
    %v271 = vpop.f32.mrb[0].mxu0
    %v272 = vadd.f32 0.0, %v271
    %v273 = vpop.f32.mrb[0].mxu0
    %274 = vdwg.mxu0
    %v275 = vadd.f32 %v183, %v267
    %v276 = vadd.f32 %v184, %v272
    %277 = vst.msk [vmem:[#allocation2] sm:$0xff] %vm47, %v275
    %278 = vst.msk [vmem:[#allocation2 + $0x8] sm:$0xff] %vm47, %v276
    // Predicated region
    $region34: #{encoder_layer_forward.7} parent=1 // pred_check
      %p279 = pneg %p27
    $region35: #{encoder_layer_forward.7} parent=1 // pred_check_branch
      %281 = sbr.rel (%p279) target = $region37
    $region36: #{encoder_layer_forward.7} parent=1 // pred_region
      %v282 = vld [vmem:[#allocation2] sm:$0xff]
      %v283 = vld [vmem:[#allocation2 + $0x8] sm:$0xff]
      %v284 = vld [vmem:[%s4] sm:$0x1]
      %v286 = vlaneseq
      %v287 = vshrl.u32 %v286, 7
      %v288 = vsub.s32 0, %v287
      %v289 = vrot.slane %v284, %v288
      %v291 = vadd.f32 %v282, %v289
      %v292 = vadd.f32 %v283, %v289
      %v293 = vld [vmem:[%s0] sm:$0xff]
      %v294 = vld [vmem:[%s0 + $0x8] sm:$0xff]
      %v295 = vadd.f32 %v291, %v293
      %v296 = vadd.f32 %v292, %v294
      %v297 = vsel %vm47, %v295, 0.0
      %298 = vadd.xlane.f32.xlu0 %v297
      %v299 = vpop.xlane.xlu0 %298
      %v300 = vsel %vm47, %v296, 0.0
      %301 = vadd.xlane.f32.xlu0 %v300
      %v302 = vpop.xlane.xlu0 %301
      %v303 = vrcp.pop 32.0
      %v304 = vmul.f32 %v299, %v303
      %v305 = vmul.f32 %v302, %v303
      %v306 = vsub.f32 %v295, %v304
      %v307 = vsub.f32 %v296, %v305
      %v308 = vmul.f32 %v306, %v306
      %v309 = vmul.f32 %v307, %v307
      %v310 = vsel %vm47, %v308, 0.0
      %311 = vadd.xlane.f32.xlu0 %v310
      %v312 = vpop.xlane.xlu0 %311
      %v313 = vsel %vm47, %v309, 0.0
      %314 = vadd.xlane.f32.xlu0 %v313
      %v315 = vpop.xlane.xlu0 %314
      %v316 = vmul.f32 %v312, %v303
      %v317 = vmul.f32 %v315, %v303
      %v318 = vadd.f32 %v316, 1e-05
      %v319 = vadd.f32 %v317, 1e-05
      %v320 = vrsqrt.pop %v318
      %v321 = vrsqrt.pop %v319
      %v322 = vmul.f32 %v306, %v320
      %v323 = vmul.f32 %v307, %v321
      %v324 = vld [vmem:[%s5] sm:$0x1]
      %v326 = vlaneseq
      %v327 = vshrl.u32 %v326, 7
      %v328 = vsub.s32 0, %v327
      %v329 = vrot.slane %v324, %v328
      %v331 = vmul.f32 %v322, %v329
      %v332 = vmul.f32 %v323, %v329
      %v333 = vld [vmem:[%s6] sm:$0x1]
      %v335 = vlaneseq
      %v336 = vshrl.u32 %v335, 7
      %v337 = vsub.s32 0, %v336
      %v338 = vrot.slane %v333, %v337
      %v340 = vadd.f32 %v331, %v338
      %v341 = vadd.f32 %v332, %v338
      %342 = vst.msk [vmem:[#allocation3] sm:$0xff] %vm47, %v340
      %343 = vst.msk [vmem:[#allocation3 + $0x8] sm:$0xff] %vm47, %v341
    $region37: #{encoder_layer_forward.7} parent=1 // pred_fallthru
      _
    // Predicated region
    $region38: #{encoder_layer_forward.7} parent=1 // pred_check
      _
    $region39: #{encoder_layer_forward.7} parent=1 // pred_check_branch
      %345 = sbr.rel (0) target = $region41
    $region40: #{encoder_layer_forward.7} parent=1 // pred_region
      %s347 = ssub.s32 256, 256
      %348 = vsyncadd [#allocation4], %s347
      %s349 = sshll.u32 [#allocation3], 4
      %s350 = int_to_ptr.vmem [resolvable:$true] %s349
      %355 = dma.vmem_to_hbm [thread:$0]  %s350, 256, %s7, [#allocation4], 128, 128, 8
    $region41: #{encoder_layer_forward.7} parent=1 // pred_fallthru
      _
    // Predicated region
    $region42: #{encoder_layer_forward.7} parent=1 // pred_check
      _
    $region43: #{encoder_layer_forward.7} parent=1 // pred_check_branch
      %357 = sbr.rel (0) target = $region45
    $region44: #{encoder_layer_forward.7} parent=1 // pred_region
      %358 = dma.done [#allocation4], 256
    $region45: #{encoder_layer_forward.7} parent=1 // pred_fallthru
      _
    %359 = vsyncpa [#allocation4], 1

</llo_original>
